<compile_context>
chip_gen: v5e
topology: v5e:2x2
jax: 0.10.0
libtpu: 0.0.40
codegen_flags: <defaults>
</compile_context>

<pallas_src>
import functools

import jax
import jax.numpy as jnp
from jax import lax
from jax.experimental import pallas as pl
from jax.experimental.pallas import tpu as pltpu


# --------------------------------------------------------------------------- #
# Fused Pallas kernel: (conv3x3 -> BN -> ReLU) x 2 for one image
# --------------------------------------------------------------------------- #
def _double_conv_kernel(x_ref, w1_ref, s1_ref, w2_ref, s2_ref, o_ref,
                        xpad_ref, hpad_ref, *, compute_dtype):
    """One batch element per grid step.

    x_ref : (1, H, W, Cin)       input block (channels-last, lanes = channels)
    w1_ref: (3, 3, Cin, Cmid)    conv1 weight with BN1 scale folded in (HWIO)
    s1_ref: (1, Cmid)            BN1 shift (beta - mean*scale), f32
    w2_ref: (3, 3, Cmid, Cout)   conv2 weight with BN2 scale folded in (HWIO)
    s2_ref: (1, Cout)            BN2 shift, f32
    o_ref : (1, H, W, Cout)      output block
    xpad_ref: VMEM (H+2, W+2, Cin)  f32  zero-padded input   (built in VMEM only)
    hpad_ref: VMEM (H+2, W+2, Cmid) f32  zero-padded mid act  (never touches HBM)
    """
    _, H, W, Cin = x_ref.shape
    Cmid = w1_ref.shape[3]
    Cout = w2_ref.shape[3]

    # ---------------- conv1 (zero pad in VMEM) + BN1 (folded) + ReLU ----------
    xpad_ref[...] = jnp.zeros(xpad_ref.shape, xpad_ref.dtype)
    xpad_ref[1:H + 1, 1:W + 1, :] = x_ref[0].astype(xpad_ref.dtype)

    acc1 = jnp.zeros((H * W, Cmid), jnp.float32)
    for dh in range(3):                      # 9 shifted matmuls on the MXU
        for dw in range(3):
            patch = xpad_ref[dh:dh + H, dw:dw + W, :]            # (H, W, Cin)
            acc1 += jnp.dot(
                patch.reshape(H * W, Cin).astype(compute_dtype),
                w1_ref[dh, dw, :, :],
                preferred_element_type=jnp.float32)
    h = jnp.maximum(acc1 + s1_ref[...], 0.0)                      # (H*W, Cmid) f32

    # ---------------- conv2 (zero pad mid act in VMEM) + BN2 + ReLU -----------
    hpad_ref[...] = jnp.zeros(hpad_ref.shape, hpad_ref.dtype)
    hpad_ref[1:H + 1, 1:W + 1, :] = h.reshape(H, W, Cmid)

    acc2 = jnp.zeros((H * W, Cout), jnp.float32)
    for dh in range(3):
        for dw in range(3):
            patch = hpad_ref[dh:dh + H, dw:dw + W, :]             # (H, W, Cmid)
            acc2 += jnp.dot(
                patch.reshape(H * W, Cmid).astype(compute_dtype),
                w2_ref[dh, dw, :, :],
                preferred_element_type=jnp.float32)
    y = jnp.maximum(acc2 + s2_ref[...], 0.0)
    o_ref[0] = y.reshape(H, W, Cout).astype(o_ref.dtype)


# --------------------------------------------------------------------------- #
# Wrappers
# --------------------------------------------------------------------------- #
def _fold_bn(w_hwio, gamma, beta, mean, var, eps):
    """Fold eval-mode BatchNorm into the (bias-free) conv that precedes it."""
    scale = gamma / jnp.sqrt(var + eps)                 # (Cout,)
    w_folded = w_hwio * scale[None, None, None, :]      # scale per output channel
    shift = beta - mean * scale
    return w_folded, shift.reshape(1, -1)


def double_conv_nhwc(x_nhwc, params, *, eps=1e-5, compute_dtype=jnp.float32):
    """DoubleConv on channels-last input: (B,H,W,Cin) -> (B,H,W,Cout).

    Runs the whole forward as one fused Pallas kernel (grid over batch)."""
    B, H, W, Cin = x_nhwc.shape
    w1, s1 = _fold_bn(params["w1"], params["bn1_gamma"], params["bn1_beta"],
                      params["bn1_mean"], params["bn1_var"], eps)
    w2, s2 = _fold_bn(params["w2"], params["bn2_gamma"], params["bn2_beta"],
                      params["bn2_mean"], params["bn2_var"], eps)
    Cmid = w1.shape[3]
    Cout = w2.shape[3]

    kernel = functools.partial(_double_conv_kernel, compute_dtype=compute_dtype)

    return pl.pallas_call(
        kernel,
        out_shape=jax.ShapeDtypeStruct((B, H, W, Cout), x_nhwc.dtype),
        grid_spec=pltpu.PrefetchScalarGridSpec(
            num_scalar_prefetch=0,
            grid=(B,),
            in_specs=[
                pl.BlockSpec((1, H, W, Cin), lambda b: (b, 0, 0, 0)),
                pl.BlockSpec((3, 3, Cin, Cmid), lambda b: (0, 0, 0, 0)),
                pl.BlockSpec((1, Cmid), lambda b: (0, 0)),
                pl.BlockSpec((3, 3, Cmid, Cout), lambda b: (0, 0, 0, 0)),
                pl.BlockSpec((1, Cout), lambda b: (0, 0)),
            ],
            out_specs=pl.BlockSpec((1, H, W, Cout), lambda b: (b, 0, 0, 0)),
            scratch_shapes=[
                pltpu.VMEM((H + 2, W + 2, Cin), jnp.float32),    # padded input
                pltpu.VMEM((H + 2, W + 2, Cmid), jnp.float32),   # padded mid act
            ],
        ),
        compiler_params=pltpu.CompilerParams(
            dimension_semantics=("parallel",)),
    )(x_nhwc.astype(compute_dtype),
      w1.astype(compute_dtype), s1.astype(jnp.float32),
      w2.astype(compute_dtype), s2.astype(jnp.float32))


def double_conv_nchw(x_nchw, params, *, eps=1e-5, compute_dtype=jnp.float32):
    """PyTorch-style NCHW interface: one transpose in / one transpose out."""
    x_nhwc = jnp.transpose(x_nchw, (0, 2, 3, 1))
    y_nhwc = double_conv_nhwc(x_nhwc, params, eps=eps, compute_dtype=compute_dtype)
    return jnp.transpose(y_nhwc, (0, 3, 1, 2))


# --------------------------------------------------------------------------- #
# Deterministic parameter init (weights stored in HWIO = matmul-friendly layout)
# --------------------------------------------------------------------------- #
def init_double_conv_params(key, in_channels, out_channels, mid_channels=None):
    if mid_channels is None:
        mid_channels = out_channels
    ks = jax.random.split(key, 10)

    def conv_w(k, cin, cout):
        fan_in = cin * 9
        std = (2.0 / fan_in) ** 0.5
        return std * jax.random.normal(k, (3, 3, cin, cout), jnp.float32)   # HWIO

    def bn(k0, k1, k2, k3, c):
        return {
            "gamma": 1.0 + 0.1 * jax.random.normal(k0, (c,), jnp.float32),
            "beta": 0.1 * jax.random.normal(k1, (c,), jnp.float32),
            "mean": 0.1 * jax.random.normal(k2, (c,), jnp.float32),
            "var": jnp.abs(jax.random.normal(k3, (c,), jnp.float32)) + 0.5,
        }

    bn1 = bn(ks[1], ks[2], ks[3], ks[4], mid_channels)
    bn2 = bn(ks[6], ks[7], ks[8], ks[9], out_channels)
    return {
        "w1": conv_w(ks[0], in_channels, mid_channels),
        "bn1_gamma": bn1["gamma"], "bn1_beta": bn1["beta"],
        "bn1_mean": bn1["mean"], "bn1_var": bn1["var"],
        "w2": conv_w(ks[5], mid_channels, out_channels),
        "bn2_gamma": bn2["gamma"], "bn2_beta": bn2["beta"],
        "bn2_mean": bn2["mean"], "bn2_var": bn2["var"],
    }


# --------------------------------------------------------------------------- #
# Plain-JAX reference (mirrors the PyTorch forward exactly, NCHW)
# --------------------------------------------------------------------------- #
def double_conv_reference(x_nchw, params, eps=1e-5):
    def conv_bn_relu(x, w_hwio, gamma, beta, mean, var):
        w_oihw = jnp.transpose(w_hwio, (3, 2, 0, 1))
        y = lax.conv_general_dilated(
            x, w_oihw, window_strides=(1, 1),
            padding=[(1, 1), (1, 1)],
            dimension_numbers=("NCHW", "OIHW", "NCHW"))
        scale = gamma / jnp.sqrt(var + eps)
        shift = beta - mean * scale
        y = y * scale[None, :, None, None] + shift[None, :, None, None]
        return jnp.maximum(y, 0.0)

    h = conv_bn_relu(x_nchw, params["w1"], params["bn1_gamma"], params["bn1_beta"],
                     params["bn1_mean"], params["bn1_var"])
    return conv_bn_relu(h, params["w2"], params["bn2_gamma"], params["bn2_beta"],
                        params["bn2_mean"], params["bn2_var"])


# --------------------------------------------------------------------------- #
if __name__ == "__main__":
    key = jax.random.PRNGKey(0)
    kp, kx = jax.random.split(key)

    # Small shapes; Cout=128 keeps the output lane-dense, Cin=64 keeps K sane.
    B, Cin, Cout, H, W = 2, 64, 128, 16, 16
    params = init_double_conv_params(kp, Cin, Cout)
    x = jax.random.normal(kx, (B, Cin, H, W), jnp.float32)   # NCHW like PyTorch

    # f32 operand path
    y = double_conv_nchw(x, params)
    jax.block_until_ready(y)
    assert y.shape == (B, Cout, H, W), y.shape

    y_ref = double_conv_reference(x, params)
    assert jnp.allclose(y, y_ref, rtol=2e-2, atol=5e-2), \
        float(jnp.max(jnp.abs(y - y_ref)))

    # bf16 operand path (f32 accumulation + f32 BN/ReLU epilogue)
    y_bf16 = double_conv_nchw(x, params, compute_dtype=jnp.bfloat16)
    jax.block_until_ready(y_bf16)
    assert y_bf16.shape == (B, Cout, H, W), y_bf16.shape
    assert jnp.allclose(y_bf16, y_ref, rtol=5e-2, atol=1e-1), \
        float(jnp.max(jnp.abs(y_bf16 - y_ref)))

    print("KERNEL_OK")
</pallas_src>

<mosaic_0001>
module attributes {stable_mosaic.version = 11 : i64} {
  func.func @_double_conv_kernel(%arg0: i32, %arg1: memref<1x16x16x64xf32, #tpu.memory_space<vmem>>, %arg2: memref<3x3x64x128xf32, #tpu.memory_space<vmem>>, %arg3: memref<1x128xf32, #tpu.memory_space<vmem>>, %arg4: memref<3x3x128x128xf32, #tpu.memory_space<vmem>>, %arg5: memref<1x128xf32, #tpu.memory_space<vmem>>, %arg6: memref<1x16x16x128xf32, #tpu.memory_space<vmem>>, %arg7: memref<18x18x64xf32, #tpu.memory_space<vmem>>, %arg8: memref<18x18x128xf32, #tpu.memory_space<vmem>>) attributes {dimension_semantics = [#tpu.dimension_semantics<parallel>], iteration_bounds = array<i64: 2>, scalar_prefetch = 0 : i64, scratch_operands = 2 : i64, tpu.core_type = #tpu.core_type<tc>, window_params = [{transform_indices = @transform_0, window_bounds = array<i64: 1, 16, 16, 64>}, {pipeline_mode = #tpu.pipeline_mode<synchronous>, transform_indices = @transform_1, window_bounds = array<i64: 3, 3, 64, 128>}, {pipeline_mode = #tpu.pipeline_mode<synchronous>, transform_indices = @transform_2, window_bounds = array<i64: 1, 128>}, {pipeline_mode = #tpu.pipeline_mode<synchronous>, transform_indices = @transform_3, window_bounds = array<i64: 3, 3, 128, 128>}, {pipeline_mode = #tpu.pipeline_mode<synchronous>, transform_indices = @transform_4, window_bounds = array<i64: 1, 128>}, {transform_indices = @transform_5, window_bounds = array<i64: 1, 16, 16, 128>}]} {
    %cst = arith.constant 0.000000e+00 : f32
    %0 = vector.broadcast %cst : f32 to vector<18x18x64xf32>
    %c0 = arith.constant 0 : index
    %c0_0 = arith.constant 0 : index
    %c0_1 = arith.constant 0 : index
    %1 = vector.load %arg7[%c0, %c0_0, %c0_1] : memref<18x18x64xf32, #tpu.memory_space<vmem>>, vector<18x18x64xf32>
    tpu.vector_store %arg7[%c0, %c0_0, %c0_1], %0 {strides = array<i32>} : memref<18x18x64xf32, #tpu.memory_space<vmem>>, vector<18x18x64xf32>,
    %c0_2 = arith.constant 0 : index
    %c0_3 = arith.constant 0 : index
    %c0_4 = arith.constant 0 : index
    %c0_5 = arith.constant 0 : index
    %2 = vector.load %arg1[%c0_2, %c0_3, %c0_4, %c0_5] : memref<1x16x16x64xf32, #tpu.memory_space<vmem>>, vector<1x16x16x64xf32>
    %3 = vector.shape_cast %2 : vector<1x16x16x64xf32> to vector<16x16x64xf32>
    %c1 = arith.constant 1 : index
    %c1_6 = arith.constant 1 : index
    %c0_7 = arith.constant 0 : index
    %4 = vector.load %arg7[%c1, %c1_6, %c0_7] : memref<18x18x64xf32, #tpu.memory_space<vmem>>, vector<16x16x64xf32>
    tpu.vector_store %arg7[%c1, %c1_6, %c0_7], %3 {strides = array<i32>} : memref<18x18x64xf32, #tpu.memory_space<vmem>>, vector<16x16x64xf32>,
    %cst_8 = arith.constant 0.000000e+00 : f32
    %5 = vector.broadcast %cst_8 : f32 to vector<256x128xf32>
    %c0_9 = arith.constant 0 : index
    %c0_10 = arith.constant 0 : index
    %c0_11 = arith.constant 0 : index
    %6 = vector.load %arg7[%c0_9, %c0_10, %c0_11] : memref<18x18x64xf32, #tpu.memory_space<vmem>>, vector<16x16x64xf32>
    %7 = vector.shape_cast %6 : vector<16x16x64xf32> to vector<256x64xf32>
    %c0_12 = arith.constant 0 : index
    %c0_13 = arith.constant 0 : index
    %c0_14 = arith.constant 0 : index
    %c0_15 = arith.constant 0 : index
    %8 = vector.load %arg2[%c0_12, %c0_13, %c0_14, %c0_15] : memref<3x3x64x128xf32, #tpu.memory_space<vmem>>, vector<1x1x64x128xf32>
    %9 = vector.shape_cast %8 : vector<1x1x64x128xf32> to vector<64x128xf32>
    %cst_16 = arith.constant dense<0.000000e+00> : vector<256x128xf32>
    %10 = tpu.matmul %7, %9, %cst_16 {dimension_numbers = #tpu.dot_dimension_numbers<[1], [0], [0], [1], [0, 0, 1, 1], [], []>} : vector<256x64xf32>, vector<64x128xf32>, vector<256x128xf32> -> vector<256x128xf32>
    %11 = arith.addf %5, %10 : vector<256x128xf32>
    %c0_17 = arith.constant 0 : index
    %c1_18 = arith.constant 1 : index
    %c0_19 = arith.constant 0 : index
    %12 = vector.load %arg7[%c0_17, %c1_18, %c0_19] : memref<18x18x64xf32, #tpu.memory_space<vmem>>, vector<16x16x64xf32>
    %13 = vector.shape_cast %12 : vector<16x16x64xf32> to vector<256x64xf32>
    %c0_20 = arith.constant 0 : index
    %c1_21 = arith.constant 1 : index
    %c0_22 = arith.constant 0 : index
    %c0_23 = arith.constant 0 : index
    %14 = vector.load %arg2[%c0_20, %c1_21, %c0_22, %c0_23] : memref<3x3x64x128xf32, #tpu.memory_space<vmem>>, vector<1x1x64x128xf32>
    %15 = vector.shape_cast %14 : vector<1x1x64x128xf32> to vector<64x128xf32>
    %cst_24 = arith.constant dense<0.000000e+00> : vector<256x128xf32>
    %16 = tpu.matmul %13, %15, %cst_24 {dimension_numbers = #tpu.dot_dimension_numbers<[1], [0], [0], [1], [0, 0, 1, 1], [], []>} : vector<256x64xf32>, vector<64x128xf32>, vector<256x128xf32> -> vector<256x128xf32>
    %17 = arith.addf %11, %16 : vector<256x128xf32>
    %c0_25 = arith.constant 0 : index
    %c2 = arith.constant 2 : index
    %c0_26 = arith.constant 0 : index
    %18 = vector.load %arg7[%c0_25, %c2, %c0_26] : memref<18x18x64xf32, #tpu.memory_space<vmem>>, vector<16x16x64xf32>
    %19 = vector.shape_cast %18 : vector<16x16x64xf32> to vector<256x64xf32>
    %c0_27 = arith.constant 0 : index
    %c2_28 = arith.constant 2 : index
    %c0_29 = arith.constant 0 : index
    %c0_30 = arith.constant 0 : index
    %20 = vector.load %arg2[%c0_27, %c2_28, %c0_29, %c0_30] : memref<3x3x64x128xf32, #tpu.memory_space<vmem>>, vector<1x1x64x128xf32>
    %21 = vector.shape_cast %20 : vector<1x1x64x128xf32> to vector<64x128xf32>
    %cst_31 = arith.constant dense<0.000000e+00> : vector<256x128xf32>
    %22 = tpu.matmul %19, %21, %cst_31 {dimension_numbers = #tpu.dot_dimension_numbers<[1], [0], [0], [1], [0, 0, 1, 1], [], []>} : vector<256x64xf32>, vector<64x128xf32>, vector<256x128xf32> -> vector<256x128xf32>
    %23 = arith.addf %17, %22 : vector<256x128xf32>
    %c1_32 = arith.constant 1 : index
    %c0_33 = arith.constant 0 : index
    %c0_34 = arith.constant 0 : index
    %24 = vector.load %arg7[%c1_32, %c0_33, %c0_34] : memref<18x18x64xf32, #tpu.memory_space<vmem>>, vector<16x16x64xf32>
    %25 = vector.shape_cast %24 : vector<16x16x64xf32> to vector<256x64xf32>
    %c1_35 = arith.constant 1 : index
    %c0_36 = arith.constant 0 : index
    %c0_37 = arith.constant 0 : index
    %c0_38 = arith.constant 0 : index
    %26 = vector.load %arg2[%c1_35, %c0_36, %c0_37, %c0_38] : memref<3x3x64x128xf32, #tpu.memory_space<vmem>>, vector<1x1x64x128xf32>
    %27 = vector.shape_cast %26 : vector<1x1x64x128xf32> to vector<64x128xf32>
    %cst_39 = arith.constant dense<0.000000e+00> : vector<256x128xf32>
    %28 = tpu.matmul %25, %27, %cst_39 {dimension_numbers = #tpu.dot_dimension_numbers<[1], [0], [0], [1], [0, 0, 1, 1], [], []>} : vector<256x64xf32>, vector<64x128xf32>, vector<256x128xf32> -> vector<256x128xf32>
    %29 = arith.addf %23, %28 : vector<256x128xf32>
    %c1_40 = arith.constant 1 : index
    %c1_41 = arith.constant 1 : index
    %c0_42 = arith.constant 0 : index
    %30 = vector.load %arg7[%c1_40, %c1_41, %c0_42] : memref<18x18x64xf32, #tpu.memory_space<vmem>>, vector<16x16x64xf32>
    %31 = vector.shape_cast %30 : vector<16x16x64xf32> to vector<256x64xf32>
    %c1_43 = arith.constant 1 : index
    %c1_44 = arith.constant 1 : index
    %c0_45 = arith.constant 0 : index
    %c0_46 = arith.constant 0 : index
    %32 = vector.load %arg2[%c1_43, %c1_44, %c0_45, %c0_46] : memref<3x3x64x128xf32, #tpu.memory_space<vmem>>, vector<1x1x64x128xf32>
    %33 = vector.shape_cast %32 : vector<1x1x64x128xf32> to vector<64x128xf32>
    %cst_47 = arith.constant dense<0.000000e+00> : vector<256x128xf32>
    %34 = tpu.matmul %31, %33, %cst_47 {dimension_numbers = #tpu.dot_dimension_numbers<[1], [0], [0], [1], [0, 0, 1, 1], [], []>} : vector<256x64xf32>, vector<64x128xf32>, vector<256x128xf32> -> vector<256x128xf32>
    %35 = arith.addf %29, %34 : vector<256x128xf32>
    %c1_48 = arith.constant 1 : index
    %c2_49 = arith.constant 2 : index
    %c0_50 = arith.constant 0 : index
    %36 = vector.load %arg7[%c1_48, %c2_49, %c0_50] : memref<18x18x64xf32, #tpu.memory_space<vmem>>, vector<16x16x64xf32>
    %37 = vector.shape_cast %36 : vector<16x16x64xf32> to vector<256x64xf32>
    %c1_51 = arith.constant 1 : index
    %c2_52 = arith.constant 2 : index
    %c0_53 = arith.constant 0 : index
    %c0_54 = arith.constant 0 : index
    %38 = vector.load %arg2[%c1_51, %c2_52, %c0_53, %c0_54] : memref<3x3x64x128xf32, #tpu.memory_space<vmem>>, vector<1x1x64x128xf32>
    %39 = vector.shape_cast %38 : vector<1x1x64x128xf32> to vector<64x128xf32>
    %cst_55 = arith.constant dense<0.000000e+00> : vector<256x128xf32>
    %40 = tpu.matmul %37, %39, %cst_55 {dimension_numbers = #tpu.dot_dimension_numbers<[1], [0], [0], [1], [0, 0, 1, 1], [], []>} : vector<256x64xf32>, vector<64x128xf32>, vector<256x128xf32> -> vector<256x128xf32>
    %41 = arith.addf %35, %40 : vector<256x128xf32>
    %c2_56 = arith.constant 2 : index
    %c0_57 = arith.constant 0 : index
    %c0_58 = arith.constant 0 : index
    %42 = vector.load %arg7[%c2_56, %c0_57, %c0_58] : memref<18x18x64xf32, #tpu.memory_space<vmem>>, vector<16x16x64xf32>
    %43 = vector.shape_cast %42 : vector<16x16x64xf32> to vector<256x64xf32>
    %c2_59 = arith.constant 2 : index
    %c0_60 = arith.constant 0 : index
    %c0_61 = arith.constant 0 : index
    %c0_62 = arith.constant 0 : index
    %44 = vector.load %arg2[%c2_59, %c0_60, %c0_61, %c0_62] : memref<3x3x64x128xf32, #tpu.memory_space<vmem>>, vector<1x1x64x128xf32>
    %45 = vector.shape_cast %44 : vector<1x1x64x128xf32> to vector<64x128xf32>
    %cst_63 = arith.constant dense<0.000000e+00> : vector<256x128xf32>
    %46 = tpu.matmul %43, %45, %cst_63 {dimension_numbers = #tpu.dot_dimension_numbers<[1], [0], [0], [1], [0, 0, 1, 1], [], []>} : vector<256x64xf32>, vector<64x128xf32>, vector<256x128xf32> -> vector<256x128xf32>
    %47 = arith.addf %41, %46 : vector<256x128xf32>
    %c2_64 = arith.constant 2 : index
    %c1_65 = arith.constant 1 : index
    %c0_66 = arith.constant 0 : index
    %48 = vector.load %arg7[%c2_64, %c1_65, %c0_66] : memref<18x18x64xf32, #tpu.memory_space<vmem>>, vector<16x16x64xf32>
    %49 = vector.shape_cast %48 : vector<16x16x64xf32> to vector<256x64xf32>
    %c2_67 = arith.constant 2 : index
    %c1_68 = arith.constant 1 : index
    %c0_69 = arith.constant 0 : index
    %c0_70 = arith.constant 0 : index
    %50 = vector.load %arg2[%c2_67, %c1_68, %c0_69, %c0_70] : memref<3x3x64x128xf32, #tpu.memory_space<vmem>>, vector<1x1x64x128xf32>
    %51 = vector.shape_cast %50 : vector<1x1x64x128xf32> to vector<64x128xf32>
    %cst_71 = arith.constant dense<0.000000e+00> : vector<256x128xf32>
    %52 = tpu.matmul %49, %51, %cst_71 {dimension_numbers = #tpu.dot_dimension_numbers<[1], [0], [0], [1], [0, 0, 1, 1], [], []>} : vector<256x64xf32>, vector<64x128xf32>, vector<256x128xf32> -> vector<256x128xf32>
    %53 = arith.addf %47, %52 : vector<256x128xf32>
    %c2_72 = arith.constant 2 : index
    %c2_73 = arith.constant 2 : index
    %c0_74 = arith.constant 0 : index
    %54 = vector.load %arg7[%c2_72, %c2_73, %c0_74] : memref<18x18x64xf32, #tpu.memory_space<vmem>>, vector<16x16x64xf32>
    %55 = vector.shape_cast %54 : vector<16x16x64xf32> to vector<256x64xf32>
    %c2_75 = arith.constant 2 : index
    %c2_76 = arith.constant 2 : index
    %c0_77 = arith.constant 0 : index
    %c0_78 = arith.constant 0 : index
    %56 = vector.load %arg2[%c2_75, %c2_76, %c0_77, %c0_78] : memref<3x3x64x128xf32, #tpu.memory_space<vmem>>, vector<1x1x64x128xf32>
    %57 = vector.shape_cast %56 : vector<1x1x64x128xf32> to vector<64x128xf32>
    %cst_79 = arith.constant dense<0.000000e+00> : vector<256x128xf32>
    %58 = tpu.matmul %55, %57, %cst_79 {dimension_numbers = #tpu.dot_dimension_numbers<[1], [0], [0], [1], [0, 0, 1, 1], [], []>} : vector<256x64xf32>, vector<64x128xf32>, vector<256x128xf32> -> vector<256x128xf32>
    %59 = arith.addf %53, %58 : vector<256x128xf32>
    %c0_80 = arith.constant 0 : index
    %c0_81 = arith.constant 0 : index
    %60 = vector.load %arg3[%c0_80, %c0_81] : memref<1x128xf32, #tpu.memory_space<vmem>>, vector<1x128xf32>
    %61 = vector.broadcast %60 : vector<1x128xf32> to vector<256x128xf32>
    %62 = arith.addf %59, %61 : vector<256x128xf32>
    %cst_82 = arith.constant 0.000000e+00 : f32
    %63 = vector.broadcast %cst_82 : f32 to vector<256x128xf32>
    %64 = arith.maximumf %62, %63 : vector<256x128xf32>
    %cst_83 = arith.constant 0.000000e+00 : f32
    %65 = vector.broadcast %cst_83 : f32 to vector<18x18x128xf32>
    %c0_84 = arith.constant 0 : index
    %c0_85 = arith.constant 0 : index
    %c0_86 = arith.constant 0 : index
    %66 = vector.load %arg8[%c0_84, %c0_85, %c0_86] : memref<18x18x128xf32, #tpu.memory_space<vmem>>, vector<18x18x128xf32>
    tpu.vector_store %arg8[%c0_84, %c0_85, %c0_86], %65 {strides = array<i32>} : memref<18x18x128xf32, #tpu.memory_space<vmem>>, vector<18x18x128xf32>,
    %67 = vector.shape_cast %64 : vector<256x128xf32> to vector<16x16x128xf32>
    %c1_87 = arith.constant 1 : index
    %c1_88 = arith.constant 1 : index
    %c0_89 = arith.constant 0 : index
    %68 = vector.load %arg8[%c1_87, %c1_88, %c0_89] : memref<18x18x128xf32, #tpu.memory_space<vmem>>, vector<16x16x128xf32>
    tpu.vector_store %arg8[%c1_87, %c1_88, %c0_89], %67 {strides = array<i32>} : memref<18x18x128xf32, #tpu.memory_space<vmem>>, vector<16x16x128xf32>,
    %cst_90 = arith.constant 0.000000e+00 : f32
    %69 = vector.broadcast %cst_90 : f32 to vector<256x128xf32>
    %c0_91 = arith.constant 0 : index
    %c0_92 = arith.constant 0 : index
    %c0_93 = arith.constant 0 : index
    %70 = vector.load %arg8[%c0_91, %c0_92, %c0_93] : memref<18x18x128xf32, #tpu.memory_space<vmem>>, vector<16x16x128xf32>
    %71 = vector.shape_cast %70 : vector<16x16x128xf32> to vector<256x128xf32>
    %c0_94 = arith.constant 0 : index
    %c0_95 = arith.constant 0 : index
    %c0_96 = arith.constant 0 : index
    %c0_97 = arith.constant 0 : index
    %72 = vector.load %arg4[%c0_94, %c0_95, %c0_96, %c0_97] : memref<3x3x128x128xf32, #tpu.memory_space<vmem>>, vector<1x1x128x128xf32>
    %73 = vector.shape_cast %72 : vector<1x1x128x128xf32> to vector<128x128xf32>
    %cst_98 = arith.constant dense<0.000000e+00> : vector<256x128xf32>
    %74 = tpu.matmul %71, %73, %cst_98 {dimension_numbers = #tpu.dot_dimension_numbers<[1], [0], [0], [1], [0, 0, 1, 1], [], []>} : vector<256x128xf32>, vector<128x128xf32>, vector<256x128xf32> -> vector<256x128xf32>
    %75 = arith.addf %69, %74 : vector<256x128xf32>
    %c0_99 = arith.constant 0 : index
    %c1_100 = arith.constant 1 : index
    %c0_101 = arith.constant 0 : index
    %76 = vector.load %arg8[%c0_99, %c1_100, %c0_101] : memref<18x18x128xf32, #tpu.memory_space<vmem>>, vector<16x16x128xf32>
    %77 = vector.shape_cast %76 : vector<16x16x128xf32> to vector<256x128xf32>
    %c0_102 = arith.constant 0 : index
    %c1_103 = arith.constant 1 : index
    %c0_104 = arith.constant 0 : index
    %c0_105 = arith.constant 0 : index
    %78 = vector.load %arg4[%c0_102, %c1_103, %c0_104, %c0_105] : memref<3x3x128x128xf32, #tpu.memory_space<vmem>>, vector<1x1x128x128xf32>
    %79 = vector.shape_cast %78 : vector<1x1x128x128xf32> to vector<128x128xf32>
    %cst_106 = arith.constant dense<0.000000e+00> : vector<256x128xf32>
    %80 = tpu.matmul %77, %79, %cst_106 {dimension_numbers = #tpu.dot_dimension_numbers<[1], [0], [0], [1], [0, 0, 1, 1], [], []>} : vector<256x128xf32>, vector<128x128xf32>, vector<256x128xf32> -> vector<256x128xf32>
    %81 = arith.addf %75, %80 : vector<256x128xf32>
    %c0_107 = arith.constant 0 : index
    %c2_108 = arith.constant 2 : index
    %c0_109 = arith.constant 0 : index
    %82 = vector.load %arg8[%c0_107, %c2_108, %c0_109] : memref<18x18x128xf32, #tpu.memory_space<vmem>>, vector<16x16x128xf32>
    %83 = vector.shape_cast %82 : vector<16x16x128xf32> to vector<256x128xf32>
    %c0_110 = arith.constant 0 : index
    %c2_111 = arith.constant 2 : index
    %c0_112 = arith.constant 0 : index
    %c0_113 = arith.constant 0 : index
    %84 = vector.load %arg4[%c0_110, %c2_111, %c0_112, %c0_113] : memref<3x3x128x128xf32, #tpu.memory_space<vmem>>, vector<1x1x128x128xf32>
    %85 = vector.shape_cast %84 : vector<1x1x128x128xf32> to vector<128x128xf32>
    %cst_114 = arith.constant dense<0.000000e+00> : vector<256x128xf32>
    %86 = tpu.matmul %83, %85, %cst_114 {dimension_numbers = #tpu.dot_dimension_numbers<[1], [0], [0], [1], [0, 0, 1, 1], [], []>} : vector<256x128xf32>, vector<128x128xf32>, vector<256x128xf32> -> vector<256x128xf32>
    %87 = arith.addf %81, %86 : vector<256x128xf32>
    %c1_115 = arith.constant 1 : index
    %c0_116 = arith.constant 0 : index
    %c0_117 = arith.constant 0 : index
    %88 = vector.load %arg8[%c1_115, %c0_116, %c0_117] : memref<18x18x128xf32, #tpu.memory_space<vmem>>, vector<16x16x128xf32>
    %89 = vector.shape_cast %88 : vector<16x16x128xf32> to vector<256x128xf32>
    %c1_118 = arith.constant 1 : index
    %c0_119 = arith.constant 0 : index
    %c0_120 = arith.constant 0 : index
    %c0_121 = arith.constant 0 : index
    %90 = vector.load %arg4[%c1_118, %c0_119, %c0_120, %c0_121] : memref<3x3x128x128xf32, #tpu.memory_space<vmem>>, vector<1x1x128x128xf32>
    %91 = vector.shape_cast %90 : vector<1x1x128x128xf32> to vector<128x128xf32>
    %cst_122 = arith.constant dense<0.000000e+00> : vector<256x128xf32>
    %92 = tpu.matmul %89, %91, %cst_122 {dimension_numbers = #tpu.dot_dimension_numbers<[1], [0], [0], [1], [0, 0, 1, 1], [], []>} : vector<256x128xf32>, vector<128x128xf32>, vector<256x128xf32> -> vector<256x128xf32>
    %93 = arith.addf %87, %92 : vector<256x128xf32>
    %c1_123 = arith.constant 1 : index
    %c1_124 = arith.constant 1 : index
    %c0_125 = arith.constant 0 : index
    %94 = vector.load %arg8[%c1_123, %c1_124, %c0_125] : memref<18x18x128xf32, #tpu.memory_space<vmem>>, vector<16x16x128xf32>
    %95 = vector.shape_cast %94 : vector<16x16x128xf32> to vector<256x128xf32>
    %c1_126 = arith.constant 1 : index
    %c1_127 = arith.constant 1 : index
    %c0_128 = arith.constant 0 : index
    %c0_129 = arith.constant 0 : index
    %96 = vector.load %arg4[%c1_126, %c1_127, %c0_128, %c0_129] : memref<3x3x128x128xf32, #tpu.memory_space<vmem>>, vector<1x1x128x128xf32>
    %97 = vector.shape_cast %96 : vector<1x1x128x128xf32> to vector<128x128xf32>
    %cst_130 = arith.constant dense<0.000000e+00> : vector<256x128xf32>
    %98 = tpu.matmul %95, %97, %cst_130 {dimension_numbers = #tpu.dot_dimension_numbers<[1], [0], [0], [1], [0, 0, 1, 1], [], []>} : vector<256x128xf32>, vector<128x128xf32>, vector<256x128xf32> -> vector<256x128xf32>
    %99 = arith.addf %93, %98 : vector<256x128xf32>
    %c1_131 = arith.constant 1 : index
    %c2_132 = arith.constant 2 : index
    %c0_133 = arith.constant 0 : index
    %100 = vector.load %arg8[%c1_131, %c2_132, %c0_133] : memref<18x18x128xf32, #tpu.memory_space<vmem>>, vector<16x16x128xf32>
    %101 = vector.shape_cast %100 : vector<16x16x128xf32> to vector<256x128xf32>
    %c1_134 = arith.constant 1 : index
    %c2_135 = arith.constant 2 : index
    %c0_136 = arith.constant 0 : index
    %c0_137 = arith.constant 0 : index
    %102 = vector.load %arg4[%c1_134, %c2_135, %c0_136, %c0_137] : memref<3x3x128x128xf32, #tpu.memory_space<vmem>>, vector<1x1x128x128xf32>
    %103 = vector.shape_cast %102 : vector<1x1x128x128xf32> to vector<128x128xf32>
    %cst_138 = arith.constant dense<0.000000e+00> : vector<256x128xf32>
    %104 = tpu.matmul %101, %103, %cst_138 {dimension_numbers = #tpu.dot_dimension_numbers<[1], [0], [0], [1], [0, 0, 1, 1], [], []>} : vector<256x128xf32>, vector<128x128xf32>, vector<256x128xf32> -> vector<256x128xf32>
    %105 = arith.addf %99, %104 : vector<256x128xf32>
    %c2_139 = arith.constant 2 : index
    %c0_140 = arith.constant 0 : index
    %c0_141 = arith.constant 0 : index
    %106 = vector.load %arg8[%c2_139, %c0_140, %c0_141] : memref<18x18x128xf32, #tpu.memory_space<vmem>>, vector<16x16x128xf32>
    %107 = vector.shape_cast %106 : vector<16x16x128xf32> to vector<256x128xf32>
    %c2_142 = arith.constant 2 : index
    %c0_143 = arith.constant 0 : index
    %c0_144 = arith.constant 0 : index
    %c0_145 = arith.constant 0 : index
    %108 = vector.load %arg4[%c2_142, %c0_143, %c0_144, %c0_145] : memref<3x3x128x128xf32, #tpu.memory_space<vmem>>, vector<1x1x128x128xf32>
    %109 = vector.shape_cast %108 : vector<1x1x128x128xf32> to vector<128x128xf32>
    %cst_146 = arith.constant dense<0.000000e+00> : vector<256x128xf32>
    %110 = tpu.matmul %107, %109, %cst_146 {dimension_numbers = #tpu.dot_dimension_numbers<[1], [0], [0], [1], [0, 0, 1, 1], [], []>} : vector<256x128xf32>, vector<128x128xf32>, vector<256x128xf32> -> vector<256x128xf32>
    %111 = arith.addf %105, %110 : vector<256x128xf32>
    %c2_147 = arith.constant 2 : index
    %c1_148 = arith.constant 1 : index
    %c0_149 = arith.constant 0 : index
    %112 = vector.load %arg8[%c2_147, %c1_148, %c0_149] : memref<18x18x128xf32, #tpu.memory_space<vmem>>, vector<16x16x128xf32>
    %113 = vector.shape_cast %112 : vector<16x16x128xf32> to vector<256x128xf32>
    %c2_150 = arith.constant 2 : index
    %c1_151 = arith.constant 1 : index
    %c0_152 = arith.constant 0 : index
    %c0_153 = arith.constant 0 : index
    %114 = vector.load %arg4[%c2_150, %c1_151, %c0_152, %c0_153] : memref<3x3x128x128xf32, #tpu.memory_space<vmem>>, vector<1x1x128x128xf32>
    %115 = vector.shape_cast %114 : vector<1x1x128x128xf32> to vector<128x128xf32>
    %cst_154 = arith.constant dense<0.000000e+00> : vector<256x128xf32>
    %116 = tpu.matmul %113, %115, %cst_154 {dimension_numbers = #tpu.dot_dimension_numbers<[1], [0], [0], [1], [0, 0, 1, 1], [], []>} : vector<256x128xf32>, vector<128x128xf32>, vector<256x128xf32> -> vector<256x128xf32>
    %117 = arith.addf %111, %116 : vector<256x128xf32>
    %c2_155 = arith.constant 2 : index
    %c2_156 = arith.constant 2 : index
    %c0_157 = arith.constant 0 : index
    %118 = vector.load %arg8[%c2_155, %c2_156, %c0_157] : memref<18x18x128xf32, #tpu.memory_space<vmem>>, vector<16x16x128xf32>
    %119 = vector.shape_cast %118 : vector<16x16x128xf32> to vector<256x128xf32>
    %c2_158 = arith.constant 2 : index
    %c2_159 = arith.constant 2 : index
    %c0_160 = arith.constant 0 : index
    %c0_161 = arith.constant 0 : index
    %120 = vector.load %arg4[%c2_158, %c2_159, %c0_160, %c0_161] : memref<3x3x128x128xf32, #tpu.memory_space<vmem>>, vector<1x1x128x128xf32>
    %121 = vector.shape_cast %120 : vector<1x1x128x128xf32> to vector<128x128xf32>
    %cst_162 = arith.constant dense<0.000000e+00> : vector<256x128xf32>
    %122 = tpu.matmul %119, %121, %cst_162 {dimension_numbers = #tpu.dot_dimension_numbers<[1], [0], [0], [1], [0, 0, 1, 1], [], []>} : vector<256x128xf32>, vector<128x128xf32>, vector<256x128xf32> -> vector<256x128xf32>
    %123 = arith.addf %117, %122 : vector<256x128xf32>
    %c0_163 = arith.constant 0 : index
    %c0_164 = arith.constant 0 : index
    %124 = vector.load %arg5[%c0_163, %c0_164] : memref<1x128xf32, #tpu.memory_space<vmem>>, vector<1x128xf32>
    %125 = vector.broadcast %124 : vector<1x128xf32> to vector<256x128xf32>
    %126 = arith.addf %123, %125 : vector<256x128xf32>
    %cst_165 = arith.constant 0.000000e+00 : f32
    %127 = vector.broadcast %cst_165 : f32 to vector<256x128xf32>
    %128 = arith.maximumf %126, %127 : vector<256x128xf32>
    %129 = vector.shape_cast %128 : vector<256x128xf32> to vector<16x16x128xf32>
    %c0_166 = arith.constant 0 : index
    %c0_167 = arith.constant 0 : index
    %c0_168 = arith.constant 0 : index
    %c0_169 = arith.constant 0 : index
    %130 = vector.load %arg6[%c0_166, %c0_167, %c0_168, %c0_169] : memref<1x16x16x128xf32, #tpu.memory_space<vmem>>, vector<1x16x16x128xf32>
    %131 = vector.shape_cast %130 : vector<1x16x16x128xf32> to vector<16x16x128xf32>
    %132 = vector.shape_cast %129 : vector<16x16x128xf32> to vector<1x16x16x128xf32>
    tpu.vector_store %arg6[%c0_166, %c0_167, %c0_168, %c0_169], %132 {strides = array<i32>} : memref<1x16x16x128xf32, #tpu.memory_space<vmem>>, vector<1x16x16x128xf32>,
    return
  }
  func.func @transform_0(%arg0: i32) -> (i32, i32, i32, i32) {
    %c0_i32 = arith.constant 0 : i32
    %c0_i32_0 = arith.constant 0 : i32
    %c0_i32_1 = arith.constant 0 : i32
    %c0_i32_2 = arith.constant 0 : i32
    return %arg0, %c0_i32, %c0_i32_0, %c0_i32_1 : i32, i32, i32, i32
  }
  func.func @transform_1(%arg0: i32) -> (i32, i32, i32, i32) {
    %c0_i32 = arith.constant 0 : i32
    %c0_i32_0 = arith.constant 0 : i32
    %c0_i32_1 = arith.constant 0 : i32
    %c0_i32_2 = arith.constant 0 : i32
    %c0_i32_3 = arith.constant 0 : i32
    return %c0_i32, %c0_i32_0, %c0_i32_1, %c0_i32_2 : i32, i32, i32, i32
  }
  func.func @transform_2(%arg0: i32) -> (i32, i32) {
    %c0_i32 = arith.constant 0 : i32
    %c0_i32_0 = arith.constant 0 : i32
    %c0_i32_1 = arith.constant 0 : i32
    return %c0_i32, %c0_i32_0 : i32, i32
  }
  func.func @transform_3(%arg0: i32) -> (i32, i32, i32, i32) {
    %c0_i32 = arith.constant 0 : i32
    %c0_i32_0 = arith.constant 0 : i32
    %c0_i32_1 = arith.constant 0 : i32
    %c0_i32_2 = arith.constant 0 : i32
    %c0_i32_3 = arith.constant 0 : i32
    return %c0_i32, %c0_i32_0, %c0_i32_1, %c0_i32_2 : i32, i32, i32, i32
  }
  func.func @transform_4(%arg0: i32) -> (i32, i32) {
    %c0_i32 = arith.constant 0 : i32
    %c0_i32_0 = arith.constant 0 : i32
    %c0_i32_1 = arith.constant 0 : i32
    return %c0_i32, %c0_i32_0 : i32, i32
  }
  func.func @transform_5(%arg0: i32) -> (i32, i32, i32, i32) {
    %c0_i32 = arith.constant 0 : i32
    %c0_i32_0 = arith.constant 0 : i32
    %c0_i32_1 = arith.constant 0 : i32
    %c0_i32_2 = arith.constant 0 : i32
    return %arg0, %c0_i32, %c0_i32_0, %c0_i32_1 : i32, i32, i32, i32
  }
}

</mosaic_0001>

<llo_original>
// kernel: tpu_custom_call.1
$region0: #{tpu_custom_call.1}
  #allocation0 [shape = 'u32[]', space=smem, size = 0x4, offset = 0x4, fixed_abs, tag = 'smem constant byte address 0x4 - core index']
  #allocation1 [shape = 'u32[72,128]{1,0:T(1,128)}', space=vmem, size = 0x9000, scoped, tag = 'internal scratch']
  #allocation2 [shape = 'f32[18,18,64]{2,1,0:T(8,128)}', space=vmem, size = 0x36000, scoped, tag = 'scratch operand']
  #allocation3 [shape = 'f32[18,18,128]{2,1,0:T(8,128)}', space=vmem, size = 0x36000, scoped, tag = 'scratch operand']
  %s0 = inlined_call_operand.hbm [shape: f32[2,16,16,64], index: 0, kind: input, shape index: {}]
  %s1 = inlined_call_operand.hbm [shape: f32[3,3,64,128], index: 1, kind: input, shape index: {}]
  %s2 = inlined_call_operand.vmem [shape: f32[1,128], index: 2, kind: input, shape index: {}]
  %s3 = inlined_call_operand.hbm [shape: f32[3,3,128,128], index: 3, kind: input, shape index: {}]
  %s4 = inlined_call_operand.vmem [shape: f32[1,128], index: 4, kind: input, shape index: {}]
  %s5 = inlined_call_operand.hbm [shape: f32[2,16,16,128], index: 5, kind: output, shape index: {}]
  %s6 = sld [smem:[#allocation0]]
  $region65: #{tpu_custom_call.1} parent=0
    _
  %s8 = ssub.s32 1, %s6
  %s9 = scalar_select 0, %s8, %s6
  $region1: #{tpu_custom_call.1} parent=0
    #allocation4 [shape = 'u8[262144]{0}', space=vmem, size = 0x40000, scoped, tag = 'input window, operand 0']
    #allocation5 [shape = 's32[2]{0}', space=sflag, size = 0x8, scoped, tag = 'scoped memory for tpu_custom_call.1']
    #allocation6 [shape = 's32[2]{0}', space=sflag, size = 0x8, scoped, tag = 'scoped memory for tpu_custom_call.1']
    #allocation7 [shape = 'u8[294912]{0}', space=vmem, size = 0x48000, scoped, tag = 'input window, operand 1, single buffered']
    #allocation8 [shape = 's32[1]{0}', space=sflag, size = 0x4, scoped, tag = 'scoped memory for tpu_custom_call.1']
    #allocation9 [shape = 'u8[589824]{0}', space=vmem, size = 0x90000, scoped, tag = 'input window, operand 3, single buffered']
    #allocation10 [shape = 'u8[262144]{0}', space=vmem, size = 0x40000, scoped, tag = 'output window, operand 0']
    %10 = vsyncpa [#allocation5], 0
    %s11 = scalar_lea.sflag [#allocation5], 1
    %12 = vsyncpa %s11, 0
    %13 = vsyncpa [#allocation8], 0
    %14 = vsyncpa [#allocation6], 0
    %s15 = scalar_lea.sflag [#allocation6], 1
    %16 = vsyncpa %s15, 0
    loop: start=0, step=1, limit=4
    $region2: #{tpu_custom_call.1} parent=1 // loop_pre_header
      _
    $region3: #{tpu_custom_call.1} parent=1 // loop_header
      %s18 = sphi 0, %s22
      %p19 = scmp.ge.s32.totalorder %s18, 4
      %s28 = sphi 0, %s30
      %s31 = sphi 0, %s28
      %s32 = sphi 0, %s31
      %s48 = sphi 0, %s32
      %s52 = sphi 0, %s52
      %s54 = sphi 0, %s52
      %s55 = sphi 0, %s54
      %s69 = sphi 0, %s55
      %s73 = sphi 0, %s73
      %s75 = sphi 0, %s73
      %s76 = sphi 0, %s75
      %s90 = sphi 0, %s76
      %s94 = sphi 0, %s94
      %s96 = sphi 0, %s94
      %s97 = sphi 0, %s96
      %s111 = sphi 0, %s97
      %s115 = sphi 0, %s115
      %s117 = sphi 0, %s115
      %s118 = sphi 0, %s117
      %s132 = sphi 0, %s118
      %s138 = sphi 0, %s140
      %s141 = sphi 0, %s138
      %s142 = sphi 0, %s141
      %s158 = sphi 0, %s142
    $region4: #{tpu_custom_call.1} parent=1 // loop_header_branch
      %21 = sbr.rel (%p19) target = $region8
    $region5: #{tpu_custom_call.1} parent=1 // loop_body
      %s23 = ssub.s32 %s18, 1
      %s24 = ssub.s32 %s18, 2
      %s25 = sadd.s32 %s18, 1
      %s26 = ssub.s32 %s18, %s25
      %p27 = scmp.eq.s32.totalorder %s26, 0
      %s29 = sadd.s32 %s28, 1
      %s30 = scalar_select %p27, %s28, %s29
      %p33 = pneg %p27
      %p34 = scmp.eq.s32.totalorder %s18, 1
      %p35 = por %p33, %p34
      %p36 = scmp.ne.s32.totalorder %s28, %s31
      %p37 = scmp.eq.s32.totalorder %s18, 0
      %p38 = por %p36, %p37
      %p39 = scmp.ne.s32.totalorder %s28, %s31
      %p40 = scmp.eq.s32.totalorder %s23, 1
      %p41 = por %p39, %p40
      %p42 = scmp.ne.s32.totalorder %s31, %s32
      %p43 = scmp.eq.s32.totalorder %s23, 0
      %p44 = por %p42, %p43
      %p45 = scmp.ne.s32.totalorder %s31, %s32
      %p46 = scmp.eq.s32.totalorder %s24, 1
      %p47 = por %p45, %p46
      %p49 = scmp.ne.s32.totalorder %s32, %s48
      %p50 = scmp.eq.s32.totalorder %s24, 0
      %p51 = por %p49, %p50
      %s53 = sadd.s32 %s52, 1
      %p56 = scmp.eq.s32.totalorder %s18, 1
      %p57 = scmp.ne.s32.totalorder %s52, %s54
      %p58 = scmp.eq.s32.totalorder %s18, 0
      %p59 = por %p57, %p58
      %p60 = scmp.ne.s32.totalorder %s52, %s54
      %p61 = scmp.eq.s32.totalorder %s23, 1
      %p62 = por %p60, %p61
      %p63 = scmp.ne.s32.totalorder %s54, %s55
      %p64 = scmp.eq.s32.totalorder %s23, 0
      %p65 = por %p63, %p64
      %p66 = scmp.ne.s32.totalorder %s54, %s55
      %p67 = scmp.eq.s32.totalorder %s24, 1
      %p68 = por %p66, %p67
      %p70 = scmp.ne.s32.totalorder %s55, %s69
      %p71 = scmp.eq.s32.totalorder %s24, 0
      %p72 = por %p70, %p71
      %s74 = sadd.s32 %s73, 1
      %p77 = scmp.eq.s32.totalorder %s18, 1
      %p78 = scmp.ne.s32.totalorder %s73, %s75
      %p79 = scmp.eq.s32.totalorder %s18, 0
      %p80 = por %p78, %p79
      %p81 = scmp.ne.s32.totalorder %s73, %s75
      %p82 = scmp.eq.s32.totalorder %s23, 1
      %p83 = por %p81, %p82
      %p84 = scmp.ne.s32.totalorder %s75, %s76
      %p85 = scmp.eq.s32.totalorder %s23, 0
      %p86 = por %p84, %p85
      %p87 = scmp.ne.s32.totalorder %s75, %s76
      %p88 = scmp.eq.s32.totalorder %s24, 1
      %p89 = por %p87, %p88
      %p91 = scmp.ne.s32.totalorder %s76, %s90
      %p92 = scmp.eq.s32.totalorder %s24, 0
      %p93 = por %p91, %p92
      %s95 = sadd.s32 %s94, 1
      %p98 = scmp.eq.s32.totalorder %s18, 1
      %p99 = scmp.ne.s32.totalorder %s94, %s96
      %p100 = scmp.eq.s32.totalorder %s18, 0
      %p101 = por %p99, %p100
      %p102 = scmp.ne.s32.totalorder %s94, %s96
      %p103 = scmp.eq.s32.totalorder %s23, 1
      %p104 = por %p102, %p103
      %p105 = scmp.ne.s32.totalorder %s96, %s97
      %p106 = scmp.eq.s32.totalorder %s23, 0
      %p107 = por %p105, %p106
      %p108 = scmp.ne.s32.totalorder %s96, %s97
      %p109 = scmp.eq.s32.totalorder %s24, 1
      %p110 = por %p108, %p109
      %p112 = scmp.ne.s32.totalorder %s97, %s111
      %p113 = scmp.eq.s32.totalorder %s24, 0
      %p114 = por %p112, %p113
      %s116 = sadd.s32 %s115, 1
      %p119 = scmp.eq.s32.totalorder %s18, 1
      %p120 = scmp.ne.s32.totalorder %s115, %s117
      %p121 = scmp.eq.s32.totalorder %s18, 0
      %p122 = por %p120, %p121
      %p123 = scmp.ne.s32.totalorder %s115, %s117
      %p124 = scmp.eq.s32.totalorder %s23, 1
      %p125 = por %p123, %p124
      %p126 = scmp.ne.s32.totalorder %s117, %s118
      %p127 = scmp.eq.s32.totalorder %s23, 0
      %p128 = por %p126, %p127
      %p129 = scmp.ne.s32.totalorder %s117, %s118
      %p130 = scmp.eq.s32.totalorder %s24, 1
      %p131 = por %p129, %p130
      %p133 = scmp.ne.s32.totalorder %s118, %s132
      %p134 = scmp.eq.s32.totalorder %s24, 0
      %p135 = por %p133, %p134
      %s136 = ssub.s32 %s18, %s25
      %p137 = scmp.eq.s32.totalorder %s136, 0
      %s139 = sadd.s32 %s138, 1
      %s140 = scalar_select %p137, %s138, %s139
      %p143 = pneg %p137
      %p144 = scmp.eq.s32.totalorder %s18, 1
      %p145 = por %p143, %p144
      %p146 = scmp.ne.s32.totalorder %s138, %s141
      %p147 = scmp.eq.s32.totalorder %s18, 0
      %p148 = por %p146, %p147
      %p149 = scmp.ne.s32.totalorder %s138, %s141
      %p150 = scmp.eq.s32.totalorder %s23, 1
      %p151 = por %p149, %p150
      %p152 = scmp.ne.s32.totalorder %s141, %s142
      %p153 = scmp.eq.s32.totalorder %s23, 0
      %p154 = por %p152, %p153
      %p155 = scmp.ne.s32.totalorder %s141, %s142
      %p156 = scmp.eq.s32.totalorder %s24, 1
      %p157 = por %p155, %p156
      %p159 = scmp.ne.s32.totalorder %s142, %s158
      %p160 = scmp.eq.s32.totalorder %s24, 0
      %p161 = por %p159, %p160
      %p162 = scmp.le.s32.totalorder 1, %s18
      %p163 = scmp.lt.s32.totalorder %s18, 3
      %p164 = pnand %p162, %p163
      %p165 = pneg %p164
      // Predicated region
      $region9: #{tpu_custom_call.1} parent=5 // pred_check
        _
      $region10: #{tpu_custom_call.1} parent=5 // pred_check_branch
        %167 = sbr.rel (%p164) target = $region12
      $region11: #{tpu_custom_call.1} parent=5 // pred_region
        %s168 = ssub.s32 %s18, 1
        // Predicated region
        $region13: #{tpu_custom_call.1} parent=11 // pred_check
          %p169 = pneg %p65
        $region14: #{tpu_custom_call.1} parent=11 // pred_check_branch
          %171 = sbr.rel (%p169) target = $region16
        $region15: #{tpu_custom_call.1} parent=11 // pred_region
          %173 = vsyncadd [#allocation8], 0
          %s174 = sshll.u32 %s1, 4
          %s175 = int_to_ptr.hbm [resolvable:$true] %s174
          %s176 = sshll.u32 [#allocation7], 4
          %s177 = int_to_ptr.vmem [resolvable:$true] %s176
          %182 = dma.hbm_to_vmem [thread:$0]  %s175, 9216, %s177, [#allocation8], 128, 128, 8
        $region16: #{tpu_custom_call.1} parent=11 // pred_fallthru
          _
        // Predicated region
        $region17: #{tpu_custom_call.1} parent=11 // pred_check
          %p183 = pneg %p86
        $region18: #{tpu_custom_call.1} parent=11 // pred_check_branch
          %185 = sbr.rel (%p183) target = $region20
        $region19: #{tpu_custom_call.1} parent=11 // pred_region
          _
        $region20: #{tpu_custom_call.1} parent=11 // pred_fallthru
          _
        // Predicated region
        $region21: #{tpu_custom_call.1} parent=11 // pred_check
          %p186 = pneg %p107
        $region22: #{tpu_custom_call.1} parent=11 // pred_check_branch
          %188 = sbr.rel (%p186) target = $region24
        $region23: #{tpu_custom_call.1} parent=11 // pred_region
          %190 = vsyncadd [#allocation8], 0
          %s191 = sshll.u32 %s3, 4
          %s192 = int_to_ptr.hbm [resolvable:$true] %s191
          %s193 = sshll.u32 [#allocation9], 4
          %s194 = int_to_ptr.vmem [resolvable:$true] %s193
          %199 = dma.hbm_to_vmem [thread:$0]  %s192, 18432, %s194, [#allocation8], 128, 128, 8
        $region24: #{tpu_custom_call.1} parent=11 // pred_fallthru
          _
        // Predicated region
        $region25: #{tpu_custom_call.1} parent=11 // pred_check
          %p200 = pneg %p128
        $region26: #{tpu_custom_call.1} parent=11 // pred_check_branch
          %202 = sbr.rel (%p200) target = $region28
        $region27: #{tpu_custom_call.1} parent=11 // pred_region
          _
        $region28: #{tpu_custom_call.1} parent=11 // pred_fallthru
          _
      $region12: #{tpu_custom_call.1} parent=5 // pred_fallthru
        _
      %p203 = scmp.lt.s32.totalorder %s18, 2
      // Predicated region
      $region29: #{tpu_custom_call.1} parent=5 // pred_check
        %p204 = pneg %p203
      $region30: #{tpu_custom_call.1} parent=5 // pred_check_branch
        %206 = sbr.rel (%p204) target = $region32
      $region31: #{tpu_custom_call.1} parent=5 // pred_region
        // Predicated region
        $region33: #{tpu_custom_call.1} parent=31 // pred_check
          %p207 = pneg %p38
        $region34: #{tpu_custom_call.1} parent=31 // pred_check_branch
          %209 = sbr.rel (%p207) target = $region36
        $region35: #{tpu_custom_call.1} parent=31 // pred_region
          %s210 = sand.u32 %s28, 1
          %s211 = scalar_lea.sflag [#allocation5], %s210
          %s212 = sand.u32 %s28, 1
          %s213 = smul.addr %s212, 256
          %s214 = scalar_lea.vmem [#allocation4], %s213
          %216 = vsyncadd %s211, 0
          %s217 = smul.addr %s18, 32
          %s218 = smul.addr %s217, 8
          %s219 = scalar_lea.hbm %s0, %s218
          %s220 = sshll.u32 %s219, 4
          %s221 = int_to_ptr.hbm [resolvable:$true] %s220
          %s222 = sshll.u32 %s214, 4
          %s223 = int_to_ptr.vmem [resolvable:$true] %s222
          %228 = dma.hbm_to_vmem [thread:$0]  %s221, 4096, %s223, %s211, 128, 128, 8
        $region36: #{tpu_custom_call.1} parent=31 // pred_fallthru
          _
      $region32: #{tpu_custom_call.1} parent=5 // pred_fallthru
        _
      %p229 = scmp.le.s32.totalorder 1, %s18
      %p230 = scmp.lt.s32.totalorder %s18, 3
      %p231 = pnand %p229, %p230
      %p232 = pneg %p231
      // Predicated region
      $region37: #{tpu_custom_call.1} parent=5 // pred_check
        _
      $region38: #{tpu_custom_call.1} parent=5 // pred_check_branch
        %234 = sbr.rel (%p231) target = $region40
      $region39: #{tpu_custom_call.1} parent=5 // pred_region
        %s235 = ssub.s32 %s18, 1
        %s236 = sand.u32 %s31, 1
        %s237 = scalar_lea.sflag [#allocation5], %s236
        %s238 = sand.u32 %s31, 1
        %s239 = smul.addr %s238, 256
        %s240 = scalar_lea.vmem [#allocation4], %s239
        // Predicated region
        $region41: #{tpu_custom_call.1} parent=39 // pred_check
          %p241 = pneg %p44
        $region42: #{tpu_custom_call.1} parent=39 // pred_check_branch
          %243 = sbr.rel (%p241) target = $region44
        $region43: #{tpu_custom_call.1} parent=39 // pred_region
          %245 = dma.done %s237, 4096
        $region44: #{tpu_custom_call.1} parent=39 // pred_fallthru
          _
        // Predicated region
        $region45: #{tpu_custom_call.1} parent=39 // pred_check
          %p246 = pneg %p65
        $region46: #{tpu_custom_call.1} parent=39 // pred_check_branch
          %248 = sbr.rel (%p246) target = $region48
        $region47: #{tpu_custom_call.1} parent=39 // pred_region
          %250 = dma.done [#allocation8], 9216
        $region48: #{tpu_custom_call.1} parent=39 // pred_fallthru
          _
        // Predicated region
        $region49: #{tpu_custom_call.1} parent=39 // pred_check
          %p251 = pneg %p107
        $region50: #{tpu_custom_call.1} parent=39 // pred_check_branch
          %253 = sbr.rel (%p251) target = $region52
        $region51: #{tpu_custom_call.1} parent=39 // pred_region
          %255 = dma.done [#allocation8], 18432
        $region52: #{tpu_custom_call.1} parent=39 // pred_fallthru
          _
        %s256 = sand.u32 %s31, 1
        %s257 = scalar_lea.sflag [#allocation5], %s256
        %s258 = sand.u32 %s31, 1
        %s259 = smul.addr %s258, 256
        %s260 = scalar_lea.vmem [#allocation4], %s259
        %p261 = pneg %p44
        %p262 = pneg %p41
        %p263 = pneg %p65
        %p264 = pneg %p62
        %p265 = pneg %p86
        %p266 = pneg %p83
        %p267 = pneg %p107
        %p268 = pneg %p104
        %p269 = pneg %p128
        %p270 = pneg %p125
        %p271 = pneg %p154
        %p272 = pneg %p151
        %s273 = sand.u32 %s141, 1
        %s274 = scalar_lea.sflag [#allocation6], %s273
        %s275 = sand.u32 %s141, 1
        %s276 = smul.addr %s275, 256
        %s277 = scalar_lea.vmem [#allocation10], %s276
        %vm278 = vcmask 523264
        %279 = vst.msk [vmem:[#allocation2] sm:$0xff] %vm278, 0.0
        %280 = vst.msk [vmem:[#allocation2 + $0x8] sm:$0xff] %vm278, 0.0
        %vm281 = vcmask 517120
        %282 = vst.msk [vmem:[#allocation2 + $0x10] sm:$0x3] %vm281, 0.0
        %283 = vst.msk [vmem:[#allocation2 + $0x18] sm:$0xff] %vm278, 0.0
        %284 = vst.msk [vmem:[#allocation2 + $0x20] sm:$0xff] %vm278, 0.0
        %285 = vst.msk [vmem:[#allocation2 + $0x28] sm:$0x3] %vm281, 0.0
        %286 = vst.msk [vmem:[#allocation2 + $0x30] sm:$0xff] %vm278, 0.0
        %287 = vst.msk [vmem:[#allocation2 + $0x38] sm:$0xff] %vm278, 0.0
        %288 = vst.msk [vmem:[#allocation2 + $0x40] sm:$0x3] %vm281, 0.0
        %289 = vst.msk [vmem:[#allocation2 + $0x48] sm:$0xff] %vm278, 0.0
        %290 = vst.msk [vmem:[#allocation2 + $0x50] sm:$0xff] %vm278, 0.0
        %291 = vst.msk [vmem:[#allocation2 + $0x58] sm:$0x3] %vm281, 0.0
        %292 = vst.msk [vmem:[#allocation2 + $0x60] sm:$0xff] %vm278, 0.0
        %293 = vst.msk [vmem:[#allocation2 + $0x68] sm:$0xff] %vm278, 0.0
        %294 = vst.msk [vmem:[#allocation2 + $0x70] sm:$0x3] %vm281, 0.0
        %295 = vst.msk [vmem:[#allocation2 + $0x78] sm:$0xff] %vm278, 0.0
        %296 = vst.msk [vmem:[#allocation2 + $0x80] sm:$0xff] %vm278, 0.0
        %297 = vst.msk [vmem:[#allocation2 + $0x88] sm:$0x3] %vm281, 0.0
        %298 = vst.msk [vmem:[#allocation2 + $0x90] sm:$0xff] %vm278, 0.0
        %299 = vst.msk [vmem:[#allocation2 + $0x98] sm:$0xff] %vm278, 0.0
        %300 = vst.msk [vmem:[#allocation2 + $0xa0] sm:$0x3] %vm281, 0.0
        %301 = vst.msk [vmem:[#allocation2 + $0xa8] sm:$0xff] %vm278, 0.0
        %302 = vst.msk [vmem:[#allocation2 + $0xb0] sm:$0xff] %vm278, 0.0
        %303 = vst.msk [vmem:[#allocation2 + $0xb8] sm:$0x3] %vm281, 0.0
        %304 = vst.msk [vmem:[#allocation2 + $0xc0] sm:$0xff] %vm278, 0.0
        %305 = vst.msk [vmem:[#allocation2 + $0xc8] sm:$0xff] %vm278, 0.0
        %306 = vst.msk [vmem:[#allocation2 + $0xd0] sm:$0x3] %vm281, 0.0
        %307 = vst.msk [vmem:[#allocation2 + $0xd8] sm:$0xff] %vm278, 0.0
        %308 = vst.msk [vmem:[#allocation2 + $0xe0] sm:$0xff] %vm278, 0.0
        %309 = vst.msk [vmem:[#allocation2 + $0xe8] sm:$0x3] %vm281, 0.0
        %310 = vst.msk [vmem:[#allocation2 + $0xf0] sm:$0xff] %vm278, 0.0
        %311 = vst.msk [vmem:[#allocation2 + $0xf8] sm:$0xff] %vm278, 0.0
        %312 = vst.msk [vmem:[#allocation2 + $0x100] sm:$0x3] %vm281, 0.0
        %313 = vst.msk [vmem:[#allocation2 + $0x108] sm:$0xff] %vm278, 0.0
        %314 = vst.msk [vmem:[#allocation2 + $0x110] sm:$0xff] %vm278, 0.0
        %315 = vst.msk [vmem:[#allocation2 + $0x118] sm:$0x3] %vm281, 0.0
        %316 = vst.msk [vmem:[#allocation2 + $0x120] sm:$0xff] %vm278, 0.0
        %317 = vst.msk [vmem:[#allocation2 + $0x128] sm:$0xff] %vm278, 0.0
        %318 = vst.msk [vmem:[#allocation2 + $0x130] sm:$0x3] %vm281, 0.0
        %319 = vst.msk [vmem:[#allocation2 + $0x138] sm:$0xff] %vm278, 0.0
        %320 = vst.msk [vmem:[#allocation2 + $0x140] sm:$0xff] %vm278, 0.0
        %321 = vst.msk [vmem:[#allocation2 + $0x148] sm:$0x3] %vm281, 0.0
        %322 = vst.msk [vmem:[#allocation2 + $0x150] sm:$0xff] %vm278, 0.0
        %323 = vst.msk [vmem:[#allocation2 + $0x158] sm:$0xff] %vm278, 0.0
        %324 = vst.msk [vmem:[#allocation2 + $0x160] sm:$0x3] %vm281, 0.0
        %325 = vst.msk [vmem:[#allocation2 + $0x168] sm:$0xff] %vm278, 0.0
        %326 = vst.msk [vmem:[#allocation2 + $0x170] sm:$0xff] %vm278, 0.0
        %327 = vst.msk [vmem:[#allocation2 + $0x178] sm:$0x3] %vm281, 0.0
        %328 = vst.msk [vmem:[#allocation2 + $0x180] sm:$0xff] %vm278, 0.0
        %329 = vst.msk [vmem:[#allocation2 + $0x188] sm:$0xff] %vm278, 0.0
        %330 = vst.msk [vmem:[#allocation2 + $0x190] sm:$0x3] %vm281, 0.0
        %331 = vst.msk [vmem:[#allocation2 + $0x198] sm:$0xff] %vm278, 0.0
        %332 = vst.msk [vmem:[#allocation2 + $0x1a0] sm:$0xff] %vm278, 0.0
        %333 = vst.msk [vmem:[#allocation2 + $0x1a8] sm:$0x3] %vm281, 0.0
        %v334 = vld [vmem:[%s240] sm:$0xff]
        %v335 = vld [vmem:[%s240 + $0x8] sm:$0xff]
        %v336 = vld [vmem:[%s240 + $0x10] sm:$0xff]
        %v337 = vld [vmem:[%s240 + $0x18] sm:$0xff]
        %v338 = vld [vmem:[%s240 + $0x20] sm:$0xff]
        %v339 = vld [vmem:[%s240 + $0x28] sm:$0xff]
        %v340 = vld [vmem:[%s240 + $0x30] sm:$0xff]
        %v341 = vld [vmem:[%s240 + $0x38] sm:$0xff]
        %v342 = vld [vmem:[%s240 + $0x40] sm:$0xff]
        %v343 = vld [vmem:[%s240 + $0x48] sm:$0xff]
        %v344 = vld [vmem:[%s240 + $0x50] sm:$0xff]
        %v345 = vld [vmem:[%s240 + $0x58] sm:$0xff]
        %v346 = vld [vmem:[%s240 + $0x60] sm:$0xff]
        %v347 = vld [vmem:[%s240 + $0x68] sm:$0xff]
        %v348 = vld [vmem:[%s240 + $0x70] sm:$0xff]
        %v349 = vld [vmem:[%s240 + $0x78] sm:$0xff]
        %v350 = vld [vmem:[%s240 + $0x80] sm:$0xff]
        %v351 = vld [vmem:[%s240 + $0x88] sm:$0xff]
        %v352 = vld [vmem:[%s240 + $0x90] sm:$0xff]
        %v353 = vld [vmem:[%s240 + $0x98] sm:$0xff]
        %v354 = vld [vmem:[%s240 + $0xa0] sm:$0xff]
        %v355 = vld [vmem:[%s240 + $0xa8] sm:$0xff]
        %v356 = vld [vmem:[%s240 + $0xb0] sm:$0xff]
        %v357 = vld [vmem:[%s240 + $0xb8] sm:$0xff]
        %v358 = vld [vmem:[%s240 + $0xc0] sm:$0xff]
        %v359 = vld [vmem:[%s240 + $0xc8] sm:$0xff]
        %v360 = vld [vmem:[%s240 + $0xd0] sm:$0xff]
        %v361 = vld [vmem:[%s240 + $0xd8] sm:$0xff]
        %v362 = vld [vmem:[%s240 + $0xe0] sm:$0xff]
        %v363 = vld [vmem:[%s240 + $0xe8] sm:$0xff]
        %v364 = vld [vmem:[%s240 + $0xf0] sm:$0xff]
        %v365 = vld [vmem:[%s240 + $0xf8] sm:$0xff]
        %s366 = scalar_lea.vmem [#allocation2], 24
        %367 = vst.msk [vmem:[%s366 + $0x1] sm:$0xff] %vm278, %v334
        %368 = vst.msk [vmem:[%s366 + $0x9] sm:$0xff] %vm278, %v335
        %369 = vst.msk [vmem:[%s366 + $0x19] sm:$0xff] %vm278, %v336
        %370 = vst.msk [vmem:[%s366 + $0x21] sm:$0xff] %vm278, %v337
        %371 = vst.msk [vmem:[%s366 + $0x31] sm:$0xff] %vm278, %v338
        %372 = vst.msk [vmem:[%s366 + $0x39] sm:$0xff] %vm278, %v339
        %373 = vst.msk [vmem:[%s366 + $0x49] sm:$0xff] %vm278, %v340
        %374 = vst.msk [vmem:[%s366 + $0x51] sm:$0xff] %vm278, %v341
        %375 = vst.msk [vmem:[%s366 + $0x61] sm:$0xff] %vm278, %v342
        %376 = vst.msk [vmem:[%s366 + $0x69] sm:$0xff] %vm278, %v343
        %377 = vst.msk [vmem:[%s366 + $0x79] sm:$0xff] %vm278, %v344
        %378 = vst.msk [vmem:[%s366 + $0x81] sm:$0xff] %vm278, %v345
        %379 = vst.msk [vmem:[%s366 + $0x91] sm:$0xff] %vm278, %v346
        %380 = vst.msk [vmem:[%s366 + $0x99] sm:$0xff] %vm278, %v347
        %381 = vst.msk [vmem:[%s366 + $0xa9] sm:$0xff] %vm278, %v348
        %382 = vst.msk [vmem:[%s366 + $0xb1] sm:$0xff] %vm278, %v349
        %383 = vst.msk [vmem:[%s366 + $0xc1] sm:$0xff] %vm278, %v350
        %384 = vst.msk [vmem:[%s366 + $0xc9] sm:$0xff] %vm278, %v351
        %385 = vst.msk [vmem:[%s366 + $0xd9] sm:$0xff] %vm278, %v352
        %386 = vst.msk [vmem:[%s366 + $0xe1] sm:$0xff] %vm278, %v353
        %387 = vst.msk [vmem:[%s366 + $0xf1] sm:$0xff] %vm278, %v354
        %388 = vst.msk [vmem:[%s366 + $0xf9] sm:$0xff] %vm278, %v355
        %389 = vst.msk [vmem:[%s366 + $0x109] sm:$0xff] %vm278, %v356
        %390 = vst.msk [vmem:[%s366 + $0x111] sm:$0xff] %vm278, %v357
        %391 = vst.msk [vmem:[%s366 + $0x121] sm:$0xff] %vm278, %v358
        %392 = vst.msk [vmem:[%s366 + $0x129] sm:$0xff] %vm278, %v359
        %393 = vst.msk [vmem:[%s366 + $0x139] sm:$0xff] %vm278, %v360
        %394 = vst.msk [vmem:[%s366 + $0x141] sm:$0xff] %vm278, %v361
        %395 = vst.msk [vmem:[%s366 + $0x151] sm:$0xff] %vm278, %v362
        %396 = vst.msk [vmem:[%s366 + $0x159] sm:$0xff] %vm278, %v363
        %397 = vst.msk [vmem:[%s366 + $0x169] sm:$0xff] %vm278, %v364
        %398 = vst.msk [vmem:[%s366 + $0x171] sm:$0xff] %vm278, %v365
        %v399 = vld [vmem:[#allocation2] sm:$0xff]
        %v400 = vld [vmem:[#allocation2 + $0x8] sm:$0xff]
        %v401 = vld [vmem:[#allocation2 + $0x18] sm:$0xff]
        %v402 = vld [vmem:[#allocation2 + $0x20] sm:$0xff]
        %v403 = vld [vmem:[#allocation2 + $0x30] sm:$0xff]
        %v404 = vld [vmem:[#allocation2 + $0x38] sm:$0xff]
        %v405 = vld [vmem:[#allocation2 + $0x48] sm:$0xff]
        %v406 = vld [vmem:[#allocation2 + $0x50] sm:$0xff]
        %v407 = vld [vmem:[#allocation2 + $0x60] sm:$0xff]
        %v408 = vld [vmem:[#allocation2 + $0x68] sm:$0xff]
        %v409 = vld [vmem:[#allocation2 + $0x78] sm:$0xff]
        %v410 = vld [vmem:[#allocation2 + $0x80] sm:$0xff]
        %v411 = vld [vmem:[#allocation2 + $0x90] sm:$0xff]
        %v412 = vld [vmem:[#allocation2 + $0x98] sm:$0xff]
        %v413 = vld [vmem:[#allocation2 + $0xa8] sm:$0xff]
        %v414 = vld [vmem:[#allocation2 + $0xb0] sm:$0xff]
        %v415 = vld [vmem:[#allocation2 + $0xc0] sm:$0xff]
        %v416 = vld [vmem:[#allocation2 + $0xc8] sm:$0xff]
        %v417 = vld [vmem:[#allocation2 + $0xd8] sm:$0xff]
        %v418 = vld [vmem:[#allocation2 + $0xe0] sm:$0xff]
        %v419 = vld [vmem:[#allocation2 + $0xf0] sm:$0xff]
        %v420 = vld [vmem:[#allocation2 + $0xf8] sm:$0xff]
        %v421 = vld [vmem:[#allocation2 + $0x108] sm:$0xff]
        %v422 = vld [vmem:[#allocation2 + $0x110] sm:$0xff]
        %v423 = vld [vmem:[#allocation2 + $0x120] sm:$0xff]
        %v424 = vld [vmem:[#allocation2 + $0x128] sm:$0xff]
        %v425 = vld [vmem:[#allocation2 + $0x138] sm:$0xff]
        %v426 = vld [vmem:[#allocation2 + $0x140] sm:$0xff]
        %v427 = vld [vmem:[#allocation2 + $0x150] sm:$0xff]
        %v428 = vld [vmem:[#allocation2 + $0x158] sm:$0xff]
        %v429 = vld [vmem:[#allocation2 + $0x168] sm:$0xff]
        %v430 = vld [vmem:[#allocation2 + $0x170] sm:$0xff]
        %v431 = vld [vmem:[#allocation7] sm:$0xff]
        %v432 = vld [vmem:[#allocation7 + $0x8] sm:$0xff]
        %v433 = vld [vmem:[#allocation7 + $0x10] sm:$0xff]
        %v434 = vld [vmem:[#allocation7 + $0x18] sm:$0xff]
        %v435 = vld [vmem:[#allocation7 + $0x20] sm:$0xff]
        %v436 = vld [vmem:[#allocation7 + $0x28] sm:$0xff]
        %v437 = vld [vmem:[#allocation7 + $0x30] sm:$0xff]
        %v438 = vld [vmem:[#allocation7 + $0x38] sm:$0xff]
        %v439 = vld [vmem:[#allocation2 + $0x1] sm:$0xff]
        %v440 = vld [vmem:[#allocation2 + $0x9] sm:$0xff]
        %v441 = vld [vmem:[#allocation2 + $0x19] sm:$0xff]
        %v442 = vld [vmem:[#allocation2 + $0x21] sm:$0xff]
        %v443 = vld [vmem:[#allocation2 + $0x31] sm:$0xff]
        %v444 = vld [vmem:[#allocation2 + $0x39] sm:$0xff]
        %v445 = vld [vmem:[#allocation2 + $0x49] sm:$0xff]
        %v446 = vld [vmem:[#allocation2 + $0x51] sm:$0xff]
        %v447 = vld [vmem:[#allocation2 + $0x61] sm:$0xff]
        %v448 = vld [vmem:[#allocation2 + $0x69] sm:$0xff]
        %v449 = vld [vmem:[#allocation2 + $0x79] sm:$0xff]
        %v450 = vld [vmem:[#allocation2 + $0x81] sm:$0xff]
        %v451 = vld [vmem:[#allocation2 + $0x91] sm:$0xff]
        %v452 = vld [vmem:[#allocation2 + $0x99] sm:$0xff]
        %v453 = vld [vmem:[#allocation2 + $0xa9] sm:$0xff]
        %v454 = vld [vmem:[#allocation2 + $0xb1] sm:$0xff]
        %v455 = vld [vmem:[#allocation2 + $0xc1] sm:$0xff]
        %v456 = vld [vmem:[#allocation2 + $0xc9] sm:$0xff]
        %v457 = vld [vmem:[#allocation2 + $0xd9] sm:$0xff]
        %v458 = vld [vmem:[#allocation2 + $0xe1] sm:$0xff]
        %v459 = vld [vmem:[#allocation2 + $0xf1] sm:$0xff]
        %v460 = vld [vmem:[#allocation2 + $0xf9] sm:$0xff]
        %v461 = vld [vmem:[#allocation2 + $0x109] sm:$0xff]
        %v462 = vld [vmem:[#allocation2 + $0x111] sm:$0xff]
        %v463 = vld [vmem:[#allocation2 + $0x121] sm:$0xff]
        %v464 = vld [vmem:[#allocation2 + $0x129] sm:$0xff]
        %v465 = vld [vmem:[#allocation2 + $0x139] sm:$0xff]
        %v466 = vld [vmem:[#allocation2 + $0x141] sm:$0xff]
        %v467 = vld [vmem:[#allocation2 + $0x151] sm:$0xff]
        %v468 = vld [vmem:[#allocation2 + $0x159] sm:$0xff]
        %v469 = vld [vmem:[#allocation2 + $0x169] sm:$0xff]
        %v470 = vld [vmem:[#allocation2 + $0x171] sm:$0xff]
        %s471 = scalar_lea.vmem [#allocation7], 64
        %v472 = vld [vmem:[%s471] sm:$0xff]
        %v473 = vld [vmem:[%s471 + $0x8] sm:$0xff]
        %v474 = vld [vmem:[%s471 + $0x10] sm:$0xff]
        %v475 = vld [vmem:[%s471 + $0x18] sm:$0xff]
        %v476 = vld [vmem:[%s471 + $0x20] sm:$0xff]
        %v477 = vld [vmem:[%s471 + $0x28] sm:$0xff]
        %v478 = vld [vmem:[%s471 + $0x30] sm:$0xff]
        %v479 = vld [vmem:[%s471 + $0x38] sm:$0xff]
        %v481 = vsel %vm278, %v439, 0
        %v484 = vsel %vm278, %v440, 0
        %v487 = vsel %vm278, %v441, 0
        %v490 = vsel %vm278, %v442, 0
        %v493 = vsel %vm278, %v443, 0
        %v496 = vsel %vm278, %v444, 0
        %v499 = vsel %vm278, %v445, 0
        %v502 = vsel %vm278, %v446, 0
        %v505 = vsel %vm278, %v447, 0
        %v508 = vsel %vm278, %v448, 0
        %v511 = vsel %vm278, %v449, 0
        %v514 = vsel %vm278, %v450, 0
        %v517 = vsel %vm278, %v451, 0
        %v520 = vsel %vm278, %v452, 0
        %v523 = vsel %vm278, %v453, 0
        %v526 = vsel %vm278, %v454, 0
        %v529 = vsel %vm278, %v455, 0
        %v532 = vsel %vm278, %v456, 0
        %v535 = vsel %vm278, %v457, 0
        %v538 = vsel %vm278, %v458, 0
        %v541 = vsel %vm278, %v459, 0
        %v544 = vsel %vm278, %v460, 0
        %v547 = vsel %vm278, %v461, 0
        %v550 = vsel %vm278, %v462, 0
        %v553 = vsel %vm278, %v463, 0
        %v556 = vsel %vm278, %v464, 0
        %v559 = vsel %vm278, %v465, 0
        %v562 = vsel %vm278, %v466, 0
        %v565 = vsel %vm278, %v467, 0
        %v568 = vsel %vm278, %v468, 0
        %v571 = vsel %vm278, %v469, 0
        %v574 = vsel %vm278, %v470, 0
        %576 = vmatpush.msra.mxu0 0.0
        %577 = vmatpush.msra.mxu0 0.0
        %578 = vmatpush.msra.mxu0 0.0
        %579 = vmatpush.msra.mxu0 0.0
        %580 = vmatpush.msra.mxu0 0.0
        %581 = vmatpush.msra.mxu0 0.0
        %582 = vmatpush.msra.mxu0 0.0
        %583 = vmatpush.msra.mxu0 0.0
        %584 = vmatpush.msra.mxu0 %v479
        %585 = vmatpush.msra.mxu0 %v478
        %586 = vmatpush.msra.mxu0 %v477
        %587 = vmatpush.msra.mxu0 %v476
        %588 = vmatpush.msra.mxu0 %v475
        %589 = vmatpush.msra.mxu0 %v474
        %590 = vmatpush.msra.mxu0 %v473
        %591 = vmatpush.msra.mxu0 %v472
        %592 = vmatmul.f32.gmra.mxu0 %v481
        %v593 = vpop.f32.mrf.mxu0
        %v594 = vadd.f32 0.0, %v593
        %595 = vmatmul.f32.gmra.mxu0 %v484
        %v596 = vpop.f32.mrf.mxu0
        %v597 = vadd.f32 0.0, %v596
        %598 = vmatmul.f32.gmra.mxu0 %v487
        %v599 = vpop.f32.mrf.mxu0
        %v600 = vadd.f32 0.0, %v599
        %601 = vmatmul.f32.gmra.mxu0 %v490
        %v602 = vpop.f32.mrf.mxu0
        %v603 = vadd.f32 0.0, %v602
        %604 = vmatmul.f32.gmra.mxu0 %v493
        %v605 = vpop.f32.mrf.mxu0
        %v606 = vadd.f32 0.0, %v605
        %607 = vmatmul.f32.gmra.mxu0 %v496
        %v608 = vpop.f32.mrf.mxu0
        %v609 = vadd.f32 0.0, %v608
        %610 = vmatmul.f32.gmra.mxu0 %v499
        %v611 = vpop.f32.mrf.mxu0
        %v612 = vadd.f32 0.0, %v611
        %613 = vmatmul.f32.gmra.mxu0 %v502
        %v614 = vpop.f32.mrf.mxu0
        %v615 = vadd.f32 0.0, %v614
        %616 = vmatmul.f32.gmra.mxu0 %v505
        %v617 = vpop.f32.mrf.mxu0
        %v618 = vadd.f32 0.0, %v617
        %619 = vmatmul.f32.gmra.mxu0 %v508
        %v620 = vpop.f32.mrf.mxu0
        %v621 = vadd.f32 0.0, %v620
        %622 = vmatmul.f32.gmra.mxu0 %v511
        %v623 = vpop.f32.mrf.mxu0
        %v624 = vadd.f32 0.0, %v623
        %625 = vmatmul.f32.gmra.mxu0 %v514
        %v626 = vpop.f32.mrf.mxu0
        %v627 = vadd.f32 0.0, %v626
        %628 = vmatmul.f32.gmra.mxu0 %v517
        %v629 = vpop.f32.mrf.mxu0
        %v630 = vadd.f32 0.0, %v629
        %631 = vmatmul.f32.gmra.mxu0 %v520
        %v632 = vpop.f32.mrf.mxu0
        %v633 = vadd.f32 0.0, %v632
        %634 = vmatmul.f32.gmra.mxu0 %v523
        %v635 = vpop.f32.mrf.mxu0
        %v636 = vadd.f32 0.0, %v635
        %637 = vmatmul.f32.gmra.mxu0 %v526
        %v638 = vpop.f32.mrf.mxu0
        %v639 = vadd.f32 0.0, %v638
        %640 = vmatmul.f32.gmra.mxu0 %v529
        %v641 = vpop.f32.mrf.mxu0
        %v642 = vadd.f32 0.0, %v641
        %643 = vmatmul.f32.gmra.mxu0 %v532
        %v644 = vpop.f32.mrf.mxu0
        %v645 = vadd.f32 0.0, %v644
        %646 = vmatmul.f32.gmra.mxu0 %v535
        %v647 = vpop.f32.mrf.mxu0
        %v648 = vadd.f32 0.0, %v647
        %649 = vmatmul.f32.gmra.mxu0 %v538
        %v650 = vpop.f32.mrf.mxu0
        %v651 = vadd.f32 0.0, %v650
        %652 = vmatmul.f32.gmra.mxu0 %v541
        %v653 = vpop.f32.mrf.mxu0
        %v654 = vadd.f32 0.0, %v653
        %655 = vmatmul.f32.gmra.mxu0 %v544
        %v656 = vpop.f32.mrf.mxu0
        %v657 = vadd.f32 0.0, %v656
        %658 = vmatmul.f32.gmra.mxu0 %v547
        %v659 = vpop.f32.mrf.mxu0
        %v660 = vadd.f32 0.0, %v659
        %661 = vmatmul.f32.gmra.mxu0 %v550
        %v662 = vpop.f32.mrf.mxu0
        %v663 = vadd.f32 0.0, %v662
        %664 = vmatmul.f32.gmra.mxu0 %v553
        %v665 = vpop.f32.mrf.mxu0
        %v666 = vadd.f32 0.0, %v665
        %667 = vmatmul.f32.gmra.mxu0 %v556
        %v668 = vpop.f32.mrf.mxu0
        %v669 = vadd.f32 0.0, %v668
        %670 = vmatmul.f32.gmra.mxu0 %v559
        %v671 = vpop.f32.mrf.mxu0
        %v672 = vadd.f32 0.0, %v671
        %673 = vmatmul.f32.gmra.mxu0 %v562
        %v674 = vpop.f32.mrf.mxu0
        %v675 = vadd.f32 0.0, %v674
        %676 = vmatmul.f32.gmra.mxu0 %v565
        %v677 = vpop.f32.mrf.mxu0
        %v678 = vadd.f32 0.0, %v677
        %679 = vmatmul.f32.gmra.mxu0 %v568
        %v680 = vpop.f32.mrf.mxu0
        %v681 = vadd.f32 0.0, %v680
        %682 = vmatmul.f32.gmra.mxu0 %v571
        %v683 = vpop.f32.mrf.mxu0
        %v684 = vadd.f32 0.0, %v683
        %685 = vmatmul.f32.gmra.mxu0 %v574
        %v686 = vpop.f32.mrf.mxu0
        %v687 = vadd.f32 0.0, %v686
        %688 = vdwg.mxu0
        %v690 = vsel %vm278, %v399, 0
        %v693 = vsel %vm278, %v400, 0
        %v696 = vsel %vm278, %v401, 0
        %v699 = vsel %vm278, %v402, 0
        %v702 = vsel %vm278, %v403, 0
        %v705 = vsel %vm278, %v404, 0
        %v708 = vsel %vm278, %v405, 0
        %v711 = vsel %vm278, %v406, 0
        %v714 = vsel %vm278, %v407, 0
        %v717 = vsel %vm278, %v408, 0
        %v720 = vsel %vm278, %v409, 0
        %v723 = vsel %vm278, %v410, 0
        %v726 = vsel %vm278, %v411, 0
        %v729 = vsel %vm278, %v412, 0
        %v732 = vsel %vm278, %v413, 0
        %v735 = vsel %vm278, %v414, 0
        %v738 = vsel %vm278, %v415, 0
        %v741 = vsel %vm278, %v416, 0
        %v744 = vsel %vm278, %v417, 0
        %v747 = vsel %vm278, %v418, 0
        %v750 = vsel %vm278, %v419, 0
        %v753 = vsel %vm278, %v420, 0
        %v756 = vsel %vm278, %v421, 0
        %v759 = vsel %vm278, %v422, 0
        %v762 = vsel %vm278, %v423, 0
        %v765 = vsel %vm278, %v424, 0
        %v768 = vsel %vm278, %v425, 0
        %v771 = vsel %vm278, %v426, 0
        %v774 = vsel %vm278, %v427, 0
        %v777 = vsel %vm278, %v428, 0
        %v780 = vsel %vm278, %v429, 0
        %v783 = vsel %vm278, %v430, 0
        %785 = vmatpush.msra.mxu0 0.0
        %786 = vmatpush.msra.mxu0 0.0
        %787 = vmatpush.msra.mxu0 0.0
        %788 = vmatpush.msra.mxu0 0.0
        %789 = vmatpush.msra.mxu0 0.0
        %790 = vmatpush.msra.mxu0 0.0
        %791 = vmatpush.msra.mxu0 0.0
        %792 = vmatpush.msra.mxu0 0.0
        %793 = vmatpush.msra.mxu0 %v438
        %794 = vmatpush.msra.mxu0 %v437
        %795 = vmatpush.msra.mxu0 %v436
        %796 = vmatpush.msra.mxu0 %v435
        %797 = vmatpush.msra.mxu0 %v434
        %798 = vmatpush.msra.mxu0 %v433
        %799 = vmatpush.msra.mxu0 %v432
        %800 = vmatpush.msra.mxu0 %v431
        %801 = vmatmul.f32.gmra.mxu0 %v690
        %v802 = vpop.f32.mrf.mxu0
        %v803 = vadd.f32 %v594, %v802
        %804 = vmatmul.f32.gmra.mxu0 %v693
        %v805 = vpop.f32.mrf.mxu0
        %v806 = vadd.f32 %v597, %v805
        %807 = vmatmul.f32.gmra.mxu0 %v696
        %v808 = vpop.f32.mrf.mxu0
        %v809 = vadd.f32 %v600, %v808
        %810 = vmatmul.f32.gmra.mxu0 %v699
        %v811 = vpop.f32.mrf.mxu0
        %v812 = vadd.f32 %v603, %v811
        %813 = vmatmul.f32.gmra.mxu0 %v702
        %v814 = vpop.f32.mrf.mxu0
        %v815 = vadd.f32 %v606, %v814
        %816 = vmatmul.f32.gmra.mxu0 %v705
        %v817 = vpop.f32.mrf.mxu0
        %v818 = vadd.f32 %v609, %v817
        %819 = vmatmul.f32.gmra.mxu0 %v708
        %v820 = vpop.f32.mrf.mxu0
        %v821 = vadd.f32 %v612, %v820
        %822 = vmatmul.f32.gmra.mxu0 %v711
        %v823 = vpop.f32.mrf.mxu0
        %v824 = vadd.f32 %v615, %v823
        %825 = vmatmul.f32.gmra.mxu0 %v714
        %v826 = vpop.f32.mrf.mxu0
        %v827 = vadd.f32 %v618, %v826
        %828 = vmatmul.f32.gmra.mxu0 %v717
        %v829 = vpop.f32.mrf.mxu0
        %v830 = vadd.f32 %v621, %v829
        %831 = vmatmul.f32.gmra.mxu0 %v720
        %v832 = vpop.f32.mrf.mxu0
        %v833 = vadd.f32 %v624, %v832
        %834 = vmatmul.f32.gmra.mxu0 %v723
        %v835 = vpop.f32.mrf.mxu0
        %v836 = vadd.f32 %v627, %v835
        %837 = vmatmul.f32.gmra.mxu0 %v726
        %v838 = vpop.f32.mrf.mxu0
        %v839 = vadd.f32 %v630, %v838
        %840 = vmatmul.f32.gmra.mxu0 %v729
        %v841 = vpop.f32.mrf.mxu0
        %v842 = vadd.f32 %v633, %v841
        %843 = vmatmul.f32.gmra.mxu0 %v732
        %v844 = vpop.f32.mrf.mxu0
        %v845 = vadd.f32 %v636, %v844
        %846 = vmatmul.f32.gmra.mxu0 %v735
        %v847 = vpop.f32.mrf.mxu0
        %v848 = vadd.f32 %v639, %v847
        %849 = vmatmul.f32.gmra.mxu0 %v738
        %v850 = vpop.f32.mrf.mxu0
        %v851 = vadd.f32 %v642, %v850
        %852 = vmatmul.f32.gmra.mxu0 %v741
        %v853 = vpop.f32.mrf.mxu0
        %v854 = vadd.f32 %v645, %v853
        %855 = vmatmul.f32.gmra.mxu0 %v744
        %v856 = vpop.f32.mrf.mxu0
        %v857 = vadd.f32 %v648, %v856
        %858 = vmatmul.f32.gmra.mxu0 %v747
        %v859 = vpop.f32.mrf.mxu0
        %v860 = vadd.f32 %v651, %v859
        %861 = vmatmul.f32.gmra.mxu0 %v750
        %v862 = vpop.f32.mrf.mxu0
        %v863 = vadd.f32 %v654, %v862
        %864 = vmatmul.f32.gmra.mxu0 %v753
        %v865 = vpop.f32.mrf.mxu0
        %v866 = vadd.f32 %v657, %v865
        %867 = vmatmul.f32.gmra.mxu0 %v756
        %v868 = vpop.f32.mrf.mxu0
        %v869 = vadd.f32 %v660, %v868
        %870 = vmatmul.f32.gmra.mxu0 %v759
        %v871 = vpop.f32.mrf.mxu0
        %v872 = vadd.f32 %v663, %v871
        %873 = vmatmul.f32.gmra.mxu0 %v762
        %v874 = vpop.f32.mrf.mxu0
        %v875 = vadd.f32 %v666, %v874
        %876 = vmatmul.f32.gmra.mxu0 %v765
        %v877 = vpop.f32.mrf.mxu0
        %v878 = vadd.f32 %v669, %v877
        %879 = vmatmul.f32.gmra.mxu0 %v768
        %v880 = vpop.f32.mrf.mxu0
        %v881 = vadd.f32 %v672, %v880
        %882 = vmatmul.f32.gmra.mxu0 %v771
        %v883 = vpop.f32.mrf.mxu0
        %v884 = vadd.f32 %v675, %v883
        %885 = vmatmul.f32.gmra.mxu0 %v774
        %v886 = vpop.f32.mrf.mxu0
        %v887 = vadd.f32 %v678, %v886
        %888 = vmatmul.f32.gmra.mxu0 %v777
        %v889 = vpop.f32.mrf.mxu0
        %v890 = vadd.f32 %v681, %v889
        %891 = vmatmul.f32.gmra.mxu0 %v780
        %v892 = vpop.f32.mrf.mxu0
        %v893 = vadd.f32 %v684, %v892
        %894 = vmatmul.f32.gmra.mxu0 %v783
        %v895 = vpop.f32.mrf.mxu0
        %v896 = vadd.f32 %v687, %v895
        %897 = vdwg.mxu0
        %v898 = vld [vmem:[#allocation2 + $0x2] sm:$0xff]
        %v899 = vld [vmem:[#allocation2 + $0xa] sm:$0xff]
        %v900 = vld [vmem:[#allocation2 + $0x1a] sm:$0xff]
        %v901 = vld [vmem:[#allocation2 + $0x22] sm:$0xff]
        %v902 = vld [vmem:[#allocation2 + $0x32] sm:$0xff]
        %v903 = vld [vmem:[#allocation2 + $0x3a] sm:$0xff]
        %v904 = vld [vmem:[#allocation2 + $0x4a] sm:$0xff]
        %v905 = vld [vmem:[#allocation2 + $0x52] sm:$0xff]
        %v906 = vld [vmem:[#allocation2 + $0x62] sm:$0xff]
        %v907 = vld [vmem:[#allocation2 + $0x6a] sm:$0xff]
        %v908 = vld [vmem:[#allocation2 + $0x7a] sm:$0xff]
        %v909 = vld [vmem:[#allocation2 + $0x82] sm:$0xff]
        %v910 = vld [vmem:[#allocation2 + $0x92] sm:$0xff]
        %v911 = vld [vmem:[#allocation2 + $0x9a] sm:$0xff]
        %v912 = vld [vmem:[#allocation2 + $0xaa] sm:$0xff]
        %v913 = vld [vmem:[#allocation2 + $0xb2] sm:$0xff]
        %v914 = vld [vmem:[#allocation2 + $0xc2] sm:$0xff]
        %v915 = vld [vmem:[#allocation2 + $0xca] sm:$0xff]
        %v916 = vld [vmem:[#allocation2 + $0xda] sm:$0xff]
        %v917 = vld [vmem:[#allocation2 + $0xe2] sm:$0xff]
        %v918 = vld [vmem:[#allocation2 + $0xf2] sm:$0xff]
        %v919 = vld [vmem:[#allocation2 + $0xfa] sm:$0xff]
        %v920 = vld [vmem:[#allocation2 + $0x10a] sm:$0xff]
        %v921 = vld [vmem:[#allocation2 + $0x112] sm:$0xff]
        %v922 = vld [vmem:[#allocation2 + $0x122] sm:$0xff]
        %v923 = vld [vmem:[#allocation2 + $0x12a] sm:$0xff]
        %v924 = vld [vmem:[#allocation2 + $0x13a] sm:$0xff]
        %v925 = vld [vmem:[#allocation2 + $0x142] sm:$0xff]
        %v926 = vld [vmem:[#allocation2 + $0x152] sm:$0xff]
        %v927 = vld [vmem:[#allocation2 + $0x15a] sm:$0xff]
        %v928 = vld [vmem:[#allocation2 + $0x16a] sm:$0xff]
        %v929 = vld [vmem:[#allocation2 + $0x172] sm:$0xff]
        %s930 = scalar_lea.vmem [#allocation7], 128
        %v931 = vld [vmem:[%s930] sm:$0xff]
        %v932 = vld [vmem:[%s930 + $0x8] sm:$0xff]
        %v933 = vld [vmem:[%s930 + $0x10] sm:$0xff]
        %v934 = vld [vmem:[%s930 + $0x18] sm:$0xff]
        %v935 = vld [vmem:[%s930 + $0x20] sm:$0xff]
        %v936 = vld [vmem:[%s930 + $0x28] sm:$0xff]
        %v937 = vld [vmem:[%s930 + $0x30] sm:$0xff]
        %v938 = vld [vmem:[%s930 + $0x38] sm:$0xff]
        %v940 = vsel %vm278, %v898, 0
        %v943 = vsel %vm278, %v899, 0
        %v946 = vsel %vm278, %v900, 0
        %v949 = vsel %vm278, %v901, 0
        %v952 = vsel %vm278, %v902, 0
        %v955 = vsel %vm278, %v903, 0
        %v958 = vsel %vm278, %v904, 0
        %v961 = vsel %vm278, %v905, 0
        %v964 = vsel %vm278, %v906, 0
        %v967 = vsel %vm278, %v907, 0
        %v970 = vsel %vm278, %v908, 0
        %v973 = vsel %vm278, %v909, 0
        %v976 = vsel %vm278, %v910, 0
        %v979 = vsel %vm278, %v911, 0
        %v982 = vsel %vm278, %v912, 0
        %v985 = vsel %vm278, %v913, 0
        %v988 = vsel %vm278, %v914, 0
        %v991 = vsel %vm278, %v915, 0
        %v994 = vsel %vm278, %v916, 0
        %v997 = vsel %vm278, %v917, 0
        %v1000 = vsel %vm278, %v918, 0
        %v1003 = vsel %vm278, %v919, 0
        %v1006 = vsel %vm278, %v920, 0
        %v1009 = vsel %vm278, %v921, 0
        %v1012 = vsel %vm278, %v922, 0
        %v1015 = vsel %vm278, %v923, 0
        %v1018 = vsel %vm278, %v924, 0
        %v1021 = vsel %vm278, %v925, 0
        %v1024 = vsel %vm278, %v926, 0
        %v1027 = vsel %vm278, %v927, 0
        %v1030 = vsel %vm278, %v928, 0
        %v1033 = vsel %vm278, %v929, 0
        %1035 = vmatpush.msra.mxu0 0.0
        %1036 = vmatpush.msra.mxu0 0.0
        %1037 = vmatpush.msra.mxu0 0.0
        %1038 = vmatpush.msra.mxu0 0.0
        %1039 = vmatpush.msra.mxu0 0.0
        %1040 = vmatpush.msra.mxu0 0.0
        %1041 = vmatpush.msra.mxu0 0.0
        %1042 = vmatpush.msra.mxu0 0.0
        %1043 = vmatpush.msra.mxu0 %v938
        %1044 = vmatpush.msra.mxu0 %v937
        %1045 = vmatpush.msra.mxu0 %v936
        %1046 = vmatpush.msra.mxu0 %v935
        %1047 = vmatpush.msra.mxu0 %v934
        %1048 = vmatpush.msra.mxu0 %v933
        %1049 = vmatpush.msra.mxu0 %v932
        %1050 = vmatpush.msra.mxu0 %v931
        %1051 = vmatmul.f32.gmra.mxu0 %v940
        %v1052 = vpop.f32.mrf.mxu0
        %v1053 = vadd.f32 0.0, %v1052
        %1054 = vmatmul.f32.gmra.mxu0 %v943
        %v1055 = vpop.f32.mrf.mxu0
        %v1056 = vadd.f32 0.0, %v1055
        %1057 = vmatmul.f32.gmra.mxu0 %v946
        %v1058 = vpop.f32.mrf.mxu0
        %v1059 = vadd.f32 0.0, %v1058
        %1060 = vmatmul.f32.gmra.mxu0 %v949
        %v1061 = vpop.f32.mrf.mxu0
        %v1062 = vadd.f32 0.0, %v1061
        %1063 = vmatmul.f32.gmra.mxu0 %v952
        %v1064 = vpop.f32.mrf.mxu0
        %v1065 = vadd.f32 0.0, %v1064
        %1066 = vmatmul.f32.gmra.mxu0 %v955
        %v1067 = vpop.f32.mrf.mxu0
        %v1068 = vadd.f32 0.0, %v1067
        %1069 = vmatmul.f32.gmra.mxu0 %v958
        %v1070 = vpop.f32.mrf.mxu0
        %v1071 = vadd.f32 0.0, %v1070
        %1072 = vmatmul.f32.gmra.mxu0 %v961
        %v1073 = vpop.f32.mrf.mxu0
        %v1074 = vadd.f32 0.0, %v1073
        %1075 = vmatmul.f32.gmra.mxu0 %v964
        %v1076 = vpop.f32.mrf.mxu0
        %v1077 = vadd.f32 0.0, %v1076
        %1078 = vmatmul.f32.gmra.mxu0 %v967
        %v1079 = vpop.f32.mrf.mxu0
        %v1080 = vadd.f32 0.0, %v1079
        %1081 = vmatmul.f32.gmra.mxu0 %v970
        %v1082 = vpop.f32.mrf.mxu0
        %v1083 = vadd.f32 0.0, %v1082
        %1084 = vmatmul.f32.gmra.mxu0 %v973
        %v1085 = vpop.f32.mrf.mxu0
        %v1086 = vadd.f32 0.0, %v1085
        %1087 = vmatmul.f32.gmra.mxu0 %v976
        %v1088 = vpop.f32.mrf.mxu0
        %v1089 = vadd.f32 0.0, %v1088
        %1090 = vmatmul.f32.gmra.mxu0 %v979
        %v1091 = vpop.f32.mrf.mxu0
        %v1092 = vadd.f32 0.0, %v1091
        %1093 = vmatmul.f32.gmra.mxu0 %v982
        %v1094 = vpop.f32.mrf.mxu0
        %v1095 = vadd.f32 0.0, %v1094
        %1096 = vmatmul.f32.gmra.mxu0 %v985
        %v1097 = vpop.f32.mrf.mxu0
        %v1098 = vadd.f32 0.0, %v1097
        %1099 = vmatmul.f32.gmra.mxu0 %v988
        %v1100 = vpop.f32.mrf.mxu0
        %v1101 = vadd.f32 0.0, %v1100
        %1102 = vmatmul.f32.gmra.mxu0 %v991
        %v1103 = vpop.f32.mrf.mxu0
        %v1104 = vadd.f32 0.0, %v1103
        %1105 = vmatmul.f32.gmra.mxu0 %v994
        %v1106 = vpop.f32.mrf.mxu0
        %v1107 = vadd.f32 0.0, %v1106
        %1108 = vmatmul.f32.gmra.mxu0 %v997
        %v1109 = vpop.f32.mrf.mxu0
        %v1110 = vadd.f32 0.0, %v1109
        %1111 = vmatmul.f32.gmra.mxu0 %v1000
        %v1112 = vpop.f32.mrf.mxu0
        %v1113 = vadd.f32 0.0, %v1112
        %1114 = vmatmul.f32.gmra.mxu0 %v1003
        %v1115 = vpop.f32.mrf.mxu0
        %v1116 = vadd.f32 0.0, %v1115
        %1117 = vmatmul.f32.gmra.mxu0 %v1006
        %v1118 = vpop.f32.mrf.mxu0
        %v1119 = vadd.f32 0.0, %v1118
        %1120 = vmatmul.f32.gmra.mxu0 %v1009
        %v1121 = vpop.f32.mrf.mxu0
        %v1122 = vadd.f32 0.0, %v1121
        %1123 = vmatmul.f32.gmra.mxu0 %v1012
        %v1124 = vpop.f32.mrf.mxu0
        %v1125 = vadd.f32 0.0, %v1124
        %1126 = vmatmul.f32.gmra.mxu0 %v1015
        %v1127 = vpop.f32.mrf.mxu0
        %v1128 = vadd.f32 0.0, %v1127
        %1129 = vmatmul.f32.gmra.mxu0 %v1018
        %v1130 = vpop.f32.mrf.mxu0
        %v1131 = vadd.f32 0.0, %v1130
        %1132 = vmatmul.f32.gmra.mxu0 %v1021
        %v1133 = vpop.f32.mrf.mxu0
        %v1134 = vadd.f32 0.0, %v1133
        %1135 = vmatmul.f32.gmra.mxu0 %v1024
        %v1136 = vpop.f32.mrf.mxu0
        %v1137 = vadd.f32 0.0, %v1136
        %1138 = vmatmul.f32.gmra.mxu0 %v1027
        %v1139 = vpop.f32.mrf.mxu0
        %v1140 = vadd.f32 0.0, %v1139
        %1141 = vmatmul.f32.gmra.mxu0 %v1030
        %v1142 = vpop.f32.mrf.mxu0
        %v1143 = vadd.f32 0.0, %v1142
        %1144 = vmatmul.f32.gmra.mxu0 %v1033
        %v1145 = vpop.f32.mrf.mxu0
        %v1146 = vadd.f32 0.0, %v1145
        %1147 = vdwg.mxu0
        %v1148 = vadd.f32 %v803, %v1053
        %v1149 = vadd.f32 %v806, %v1056
        %v1150 = vadd.f32 %v809, %v1059
        %v1151 = vadd.f32 %v812, %v1062
        %v1152 = vadd.f32 %v815, %v1065
        %v1153 = vadd.f32 %v818, %v1068
        %v1154 = vadd.f32 %v821, %v1071
        %v1155 = vadd.f32 %v824, %v1074
        %v1156 = vadd.f32 %v827, %v1077
        %v1157 = vadd.f32 %v830, %v1080
        %v1158 = vadd.f32 %v833, %v1083
        %v1159 = vadd.f32 %v836, %v1086
        %v1160 = vadd.f32 %v839, %v1089
        %v1161 = vadd.f32 %v842, %v1092
        %v1162 = vadd.f32 %v845, %v1095
        %v1163 = vadd.f32 %v848, %v1098
        %v1164 = vadd.f32 %v851, %v1101
        %v1165 = vadd.f32 %v854, %v1104
        %v1166 = vadd.f32 %v857, %v1107
        %v1167 = vadd.f32 %v860, %v1110
        %v1168 = vadd.f32 %v863, %v1113
        %v1169 = vadd.f32 %v866, %v1116
        %v1170 = vadd.f32 %v869, %v1119
        %v1171 = vadd.f32 %v872, %v1122
        %v1172 = vadd.f32 %v875, %v1125
        %v1173 = vadd.f32 %v878, %v1128
        %v1174 = vadd.f32 %v881, %v1131
        %v1175 = vadd.f32 %v884, %v1134
        %v1176 = vadd.f32 %v887, %v1137
        %v1177 = vadd.f32 %v890, %v1140
        %v1178 = vadd.f32 %v893, %v1143
        %v1179 = vadd.f32 %v896, %v1146
        %v1180 = vld [vmem:[%s366] sm:$0xff]
        %v1181 = vld [vmem:[%s366 + $0x8] sm:$0xff]
        %v1182 = vld [vmem:[%s366 + $0x18] sm:$0xff]
        %v1183 = vld [vmem:[%s366 + $0x20] sm:$0xff]
        %v1184 = vld [vmem:[%s366 + $0x30] sm:$0xff]
        %v1185 = vld [vmem:[%s366 + $0x38] sm:$0xff]
        %v1186 = vld [vmem:[%s366 + $0x48] sm:$0xff]
        %v1187 = vld [vmem:[%s366 + $0x50] sm:$0xff]
        %v1188 = vld [vmem:[%s366 + $0x60] sm:$0xff]
        %v1189 = vld [vmem:[%s366 + $0x68] sm:$0xff]
        %v1190 = vld [vmem:[%s366 + $0x78] sm:$0xff]
        %v1191 = vld [vmem:[%s366 + $0x80] sm:$0xff]
        %v1192 = vld [vmem:[%s366 + $0x90] sm:$0xff]
        %v1193 = vld [vmem:[%s366 + $0x98] sm:$0xff]
        %v1194 = vld [vmem:[%s366 + $0xa8] sm:$0xff]
        %v1195 = vld [vmem:[%s366 + $0xb0] sm:$0xff]
        %v1196 = vld [vmem:[%s366 + $0xc0] sm:$0xff]
        %v1197 = vld [vmem:[%s366 + $0xc8] sm:$0xff]
        %v1198 = vld [vmem:[%s366 + $0xd8] sm:$0xff]
        %v1199 = vld [vmem:[%s366 + $0xe0] sm:$0xff]
        %v1200 = vld [vmem:[%s366 + $0xf0] sm:$0xff]
        %v1201 = vld [vmem:[%s366 + $0xf8] sm:$0xff]
        %v1202 = vld [vmem:[%s366 + $0x108] sm:$0xff]
        %v1203 = vld [vmem:[%s366 + $0x110] sm:$0xff]
        %v1204 = vld [vmem:[%s366 + $0x120] sm:$0xff]
        %v1205 = vld [vmem:[%s366 + $0x128] sm:$0xff]
        %v1206 = vld [vmem:[%s366 + $0x138] sm:$0xff]
        %v1207 = vld [vmem:[%s366 + $0x140] sm:$0xff]
        %v1208 = vld [vmem:[%s366 + $0x150] sm:$0xff]
        %v1209 = vld [vmem:[%s366 + $0x158] sm:$0xff]
        %v1210 = vld [vmem:[%s366 + $0x168] sm:$0xff]
        %v1211 = vld [vmem:[%s366 + $0x170] sm:$0xff]
        %s1212 = scalar_lea.vmem [#allocation7], 192
        %v1213 = vld [vmem:[%s1212] sm:$0xff]
        %v1214 = vld [vmem:[%s1212 + $0x8] sm:$0xff]
        %v1215 = vld [vmem:[%s1212 + $0x10] sm:$0xff]
        %v1216 = vld [vmem:[%s1212 + $0x18] sm:$0xff]
        %v1217 = vld [vmem:[%s1212 + $0x20] sm:$0xff]
        %v1218 = vld [vmem:[%s1212 + $0x28] sm:$0xff]
        %v1219 = vld [vmem:[%s1212 + $0x30] sm:$0xff]
        %v1220 = vld [vmem:[%s1212 + $0x38] sm:$0xff]
        %v1222 = vsel %vm278, %v1180, 0
        %v1225 = vsel %vm278, %v1181, 0
        %v1228 = vsel %vm278, %v1182, 0
        %v1231 = vsel %vm278, %v1183, 0
        %v1234 = vsel %vm278, %v1184, 0
        %v1237 = vsel %vm278, %v1185, 0
        %v1240 = vsel %vm278, %v1186, 0
        %v1243 = vsel %vm278, %v1187, 0
        %v1246 = vsel %vm278, %v1188, 0
        %v1249 = vsel %vm278, %v1189, 0
        %v1252 = vsel %vm278, %v1190, 0
        %v1255 = vsel %vm278, %v1191, 0
        %v1258 = vsel %vm278, %v1192, 0
        %v1261 = vsel %vm278, %v1193, 0
        %v1264 = vsel %vm278, %v1194, 0
        %v1267 = vsel %vm278, %v1195, 0
        %v1270 = vsel %vm278, %v1196, 0
        %v1273 = vsel %vm278, %v1197, 0
        %v1276 = vsel %vm278, %v1198, 0
        %v1279 = vsel %vm278, %v1199, 0
        %v1282 = vsel %vm278, %v1200, 0
        %v1285 = vsel %vm278, %v1201, 0
        %v1288 = vsel %vm278, %v1202, 0
        %v1291 = vsel %vm278, %v1203, 0
        %v1294 = vsel %vm278, %v1204, 0
        %v1297 = vsel %vm278, %v1205, 0
        %v1300 = vsel %vm278, %v1206, 0
        %v1303 = vsel %vm278, %v1207, 0
        %v1306 = vsel %vm278, %v1208, 0
        %v1309 = vsel %vm278, %v1209, 0
        %v1312 = vsel %vm278, %v1210, 0
        %v1315 = vsel %vm278, %v1211, 0
        %1317 = vmatpush.msra.mxu0 0.0
        %1318 = vmatpush.msra.mxu0 0.0
        %1319 = vmatpush.msra.mxu0 0.0
        %1320 = vmatpush.msra.mxu0 0.0
        %1321 = vmatpush.msra.mxu0 0.0
        %1322 = vmatpush.msra.mxu0 0.0
        %1323 = vmatpush.msra.mxu0 0.0
        %1324 = vmatpush.msra.mxu0 0.0
        %1325 = vmatpush.msra.mxu0 %v1220
        %1326 = vmatpush.msra.mxu0 %v1219
        %1327 = vmatpush.msra.mxu0 %v1218
        %1328 = vmatpush.msra.mxu0 %v1217
        %1329 = vmatpush.msra.mxu0 %v1216
        %1330 = vmatpush.msra.mxu0 %v1215
        %1331 = vmatpush.msra.mxu0 %v1214
        %1332 = vmatpush.msra.mxu0 %v1213
        %1333 = vmatmul.f32.gmra.mxu0 %v1222
        %v1334 = vpop.f32.mrf.mxu0
        %v1335 = vadd.f32 0.0, %v1334
        %1336 = vmatmul.f32.gmra.mxu0 %v1225
        %v1337 = vpop.f32.mrf.mxu0
        %v1338 = vadd.f32 0.0, %v1337
        %1339 = vmatmul.f32.gmra.mxu0 %v1228
        %v1340 = vpop.f32.mrf.mxu0
        %v1341 = vadd.f32 0.0, %v1340
        %1342 = vmatmul.f32.gmra.mxu0 %v1231
        %v1343 = vpop.f32.mrf.mxu0
        %v1344 = vadd.f32 0.0, %v1343
        %1345 = vmatmul.f32.gmra.mxu0 %v1234
        %v1346 = vpop.f32.mrf.mxu0
        %v1347 = vadd.f32 0.0, %v1346
        %1348 = vmatmul.f32.gmra.mxu0 %v1237
        %v1349 = vpop.f32.mrf.mxu0
        %v1350 = vadd.f32 0.0, %v1349
        %1351 = vmatmul.f32.gmra.mxu0 %v1240
        %v1352 = vpop.f32.mrf.mxu0
        %v1353 = vadd.f32 0.0, %v1352
        %1354 = vmatmul.f32.gmra.mxu0 %v1243
        %v1355 = vpop.f32.mrf.mxu0
        %v1356 = vadd.f32 0.0, %v1355
        %1357 = vmatmul.f32.gmra.mxu0 %v1246
        %v1358 = vpop.f32.mrf.mxu0
        %v1359 = vadd.f32 0.0, %v1358
        %1360 = vmatmul.f32.gmra.mxu0 %v1249
        %v1361 = vpop.f32.mrf.mxu0
        %v1362 = vadd.f32 0.0, %v1361
        %1363 = vmatmul.f32.gmra.mxu0 %v1252
        %v1364 = vpop.f32.mrf.mxu0
        %v1365 = vadd.f32 0.0, %v1364
        %1366 = vmatmul.f32.gmra.mxu0 %v1255
        %v1367 = vpop.f32.mrf.mxu0
        %v1368 = vadd.f32 0.0, %v1367
        %1369 = vmatmul.f32.gmra.mxu0 %v1258
        %v1370 = vpop.f32.mrf.mxu0
        %v1371 = vadd.f32 0.0, %v1370
        %1372 = vmatmul.f32.gmra.mxu0 %v1261
        %v1373 = vpop.f32.mrf.mxu0
        %v1374 = vadd.f32 0.0, %v1373
        %1375 = vmatmul.f32.gmra.mxu0 %v1264
        %v1376 = vpop.f32.mrf.mxu0
        %v1377 = vadd.f32 0.0, %v1376
        %1378 = vmatmul.f32.gmra.mxu0 %v1267
        %v1379 = vpop.f32.mrf.mxu0
        %v1380 = vadd.f32 0.0, %v1379
        %1381 = vmatmul.f32.gmra.mxu0 %v1270
        %v1382 = vpop.f32.mrf.mxu0
        %v1383 = vadd.f32 0.0, %v1382
        %1384 = vmatmul.f32.gmra.mxu0 %v1273
        %v1385 = vpop.f32.mrf.mxu0
        %v1386 = vadd.f32 0.0, %v1385
        %1387 = vmatmul.f32.gmra.mxu0 %v1276
        %v1388 = vpop.f32.mrf.mxu0
        %v1389 = vadd.f32 0.0, %v1388
        %1390 = vmatmul.f32.gmra.mxu0 %v1279
        %v1391 = vpop.f32.mrf.mxu0
        %v1392 = vadd.f32 0.0, %v1391
        %1393 = vmatmul.f32.gmra.mxu0 %v1282
        %v1394 = vpop.f32.mrf.mxu0
        %v1395 = vadd.f32 0.0, %v1394
        %1396 = vmatmul.f32.gmra.mxu0 %v1285
        %v1397 = vpop.f32.mrf.mxu0
        %v1398 = vadd.f32 0.0, %v1397
        %1399 = vmatmul.f32.gmra.mxu0 %v1288
        %v1400 = vpop.f32.mrf.mxu0
        %v1401 = vadd.f32 0.0, %v1400
        %1402 = vmatmul.f32.gmra.mxu0 %v1291
        %v1403 = vpop.f32.mrf.mxu0
        %v1404 = vadd.f32 0.0, %v1403
        %1405 = vmatmul.f32.gmra.mxu0 %v1294
        %v1406 = vpop.f32.mrf.mxu0
        %v1407 = vadd.f32 0.0, %v1406
        %1408 = vmatmul.f32.gmra.mxu0 %v1297
        %v1409 = vpop.f32.mrf.mxu0
        %v1410 = vadd.f32 0.0, %v1409
        %1411 = vmatmul.f32.gmra.mxu0 %v1300
        %v1412 = vpop.f32.mrf.mxu0
        %v1413 = vadd.f32 0.0, %v1412
        %1414 = vmatmul.f32.gmra.mxu0 %v1303
        %v1415 = vpop.f32.mrf.mxu0
        %v1416 = vadd.f32 0.0, %v1415
        %1417 = vmatmul.f32.gmra.mxu0 %v1306
        %v1418 = vpop.f32.mrf.mxu0
        %v1419 = vadd.f32 0.0, %v1418
        %1420 = vmatmul.f32.gmra.mxu0 %v1309
        %v1421 = vpop.f32.mrf.mxu0
        %v1422 = vadd.f32 0.0, %v1421
        %1423 = vmatmul.f32.gmra.mxu0 %v1312
        %v1424 = vpop.f32.mrf.mxu0
        %v1425 = vadd.f32 0.0, %v1424
        %1426 = vmatmul.f32.gmra.mxu0 %v1315
        %v1427 = vpop.f32.mrf.mxu0
        %v1428 = vadd.f32 0.0, %v1427
        %1429 = vdwg.mxu0
        %v1430 = vadd.f32 %v1148, %v1335
        %v1431 = vadd.f32 %v1149, %v1338
        %v1432 = vadd.f32 %v1150, %v1341
        %v1433 = vadd.f32 %v1151, %v1344
        %v1434 = vadd.f32 %v1152, %v1347
        %v1435 = vadd.f32 %v1153, %v1350
        %v1436 = vadd.f32 %v1154, %v1353
        %v1437 = vadd.f32 %v1155, %v1356
        %v1438 = vadd.f32 %v1156, %v1359
        %v1439 = vadd.f32 %v1157, %v1362
        %v1440 = vadd.f32 %v1158, %v1365
        %v1441 = vadd.f32 %v1159, %v1368
        %v1442 = vadd.f32 %v1160, %v1371
        %v1443 = vadd.f32 %v1161, %v1374
        %v1444 = vadd.f32 %v1162, %v1377
        %v1445 = vadd.f32 %v1163, %v1380
        %v1446 = vadd.f32 %v1164, %v1383
        %v1447 = vadd.f32 %v1165, %v1386
        %v1448 = vadd.f32 %v1166, %v1389
        %v1449 = vadd.f32 %v1167, %v1392
        %v1450 = vadd.f32 %v1168, %v1395
        %v1451 = vadd.f32 %v1169, %v1398
        %v1452 = vadd.f32 %v1170, %v1401
        %v1453 = vadd.f32 %v1171, %v1404
        %v1454 = vadd.f32 %v1172, %v1407
        %v1455 = vadd.f32 %v1173, %v1410
        %v1456 = vadd.f32 %v1174, %v1413
        %v1457 = vadd.f32 %v1175, %v1416
        %v1458 = vadd.f32 %v1176, %v1419
        %v1459 = vadd.f32 %v1177, %v1422
        %v1460 = vadd.f32 %v1178, %v1425
        %v1461 = vadd.f32 %v1179, %v1428
        %v1462 = vld [vmem:[%s366 + $0x1] sm:$0xff]
        %v1463 = vld [vmem:[%s366 + $0x9] sm:$0xff]
        %v1464 = vld [vmem:[%s366 + $0x19] sm:$0xff]
        %v1465 = vld [vmem:[%s366 + $0x21] sm:$0xff]
        %v1466 = vld [vmem:[%s366 + $0x31] sm:$0xff]
        %v1467 = vld [vmem:[%s366 + $0x39] sm:$0xff]
        %v1468 = vld [vmem:[%s366 + $0x49] sm:$0xff]
        %v1469 = vld [vmem:[%s366 + $0x51] sm:$0xff]
        %v1470 = vld [vmem:[%s366 + $0x61] sm:$0xff]
        %v1471 = vld [vmem:[%s366 + $0x69] sm:$0xff]
        %v1472 = vld [vmem:[%s366 + $0x79] sm:$0xff]
        %v1473 = vld [vmem:[%s366 + $0x81] sm:$0xff]
        %v1474 = vld [vmem:[%s366 + $0x91] sm:$0xff]
        %v1475 = vld [vmem:[%s366 + $0x99] sm:$0xff]
        %v1476 = vld [vmem:[%s366 + $0xa9] sm:$0xff]
        %v1477 = vld [vmem:[%s366 + $0xb1] sm:$0xff]
        %v1478 = vld [vmem:[%s366 + $0xc1] sm:$0xff]
        %v1479 = vld [vmem:[%s366 + $0xc9] sm:$0xff]
        %v1480 = vld [vmem:[%s366 + $0xd9] sm:$0xff]
        %v1481 = vld [vmem:[%s366 + $0xe1] sm:$0xff]
        %v1482 = vld [vmem:[%s366 + $0xf1] sm:$0xff]
        %v1483 = vld [vmem:[%s366 + $0xf9] sm:$0xff]
        %v1484 = vld [vmem:[%s366 + $0x109] sm:$0xff]
        %v1485 = vld [vmem:[%s366 + $0x111] sm:$0xff]
        %v1486 = vld [vmem:[%s366 + $0x121] sm:$0xff]
        %v1487 = vld [vmem:[%s366 + $0x129] sm:$0xff]
        %v1488 = vld [vmem:[%s366 + $0x139] sm:$0xff]
        %v1489 = vld [vmem:[%s366 + $0x141] sm:$0xff]
        %v1490 = vld [vmem:[%s366 + $0x151] sm:$0xff]
        %v1491 = vld [vmem:[%s366 + $0x159] sm:$0xff]
        %v1492 = vld [vmem:[%s366 + $0x169] sm:$0xff]
        %v1493 = vld [vmem:[%s366 + $0x171] sm:$0xff]
        %s1494 = scalar_lea.vmem [#allocation7], 256
        %v1495 = vld [vmem:[%s1494] sm:$0xff]
        %v1496 = vld [vmem:[%s1494 + $0x8] sm:$0xff]
        %v1497 = vld [vmem:[%s1494 + $0x10] sm:$0xff]
        %v1498 = vld [vmem:[%s1494 + $0x18] sm:$0xff]
        %v1499 = vld [vmem:[%s1494 + $0x20] sm:$0xff]
        %v1500 = vld [vmem:[%s1494 + $0x28] sm:$0xff]
        %v1501 = vld [vmem:[%s1494 + $0x30] sm:$0xff]
        %v1502 = vld [vmem:[%s1494 + $0x38] sm:$0xff]
        %v1504 = vsel %vm278, %v1462, 0
        %v1507 = vsel %vm278, %v1463, 0
        %v1510 = vsel %vm278, %v1464, 0
        %v1513 = vsel %vm278, %v1465, 0
        %v1516 = vsel %vm278, %v1466, 0
        %v1519 = vsel %vm278, %v1467, 0
        %v1522 = vsel %vm278, %v1468, 0
        %v1525 = vsel %vm278, %v1469, 0
        %v1528 = vsel %vm278, %v1470, 0
        %v1531 = vsel %vm278, %v1471, 0
        %v1534 = vsel %vm278, %v1472, 0
        %v1537 = vsel %vm278, %v1473, 0
        %v1540 = vsel %vm278, %v1474, 0
        %v1543 = vsel %vm278, %v1475, 0
        %v1546 = vsel %vm278, %v1476, 0
        %v1549 = vsel %vm278, %v1477, 0
        %v1552 = vsel %vm278, %v1478, 0
        %v1555 = vsel %vm278, %v1479, 0
        %v1558 = vsel %vm278, %v1480, 0
        %v1561 = vsel %vm278, %v1481, 0
        %v1564 = vsel %vm278, %v1482, 0
        %v1567 = vsel %vm278, %v1483, 0
        %v1570 = vsel %vm278, %v1484, 0
        %v1573 = vsel %vm278, %v1485, 0
        %v1576 = vsel %vm278, %v1486, 0
        %v1579 = vsel %vm278, %v1487, 0
        %v1582 = vsel %vm278, %v1488, 0
        %v1585 = vsel %vm278, %v1489, 0
        %v1588 = vsel %vm278, %v1490, 0
        %v1591 = vsel %vm278, %v1491, 0
        %v1594 = vsel %vm278, %v1492, 0
        %v1597 = vsel %vm278, %v1493, 0
        %1599 = vmatpush.msra.mxu0 0.0
        %1600 = vmatpush.msra.mxu0 0.0
        %1601 = vmatpush.msra.mxu0 0.0
        %1602 = vmatpush.msra.mxu0 0.0
        %1603 = vmatpush.msra.mxu0 0.0
        %1604 = vmatpush.msra.mxu0 0.0
        %1605 = vmatpush.msra.mxu0 0.0
        %1606 = vmatpush.msra.mxu0 0.0
        %1607 = vmatpush.msra.mxu0 %v1502
        %1608 = vmatpush.msra.mxu0 %v1501
        %1609 = vmatpush.msra.mxu0 %v1500
        %1610 = vmatpush.msra.mxu0 %v1499
        %1611 = vmatpush.msra.mxu0 %v1498
        %1612 = vmatpush.msra.mxu0 %v1497
        %1613 = vmatpush.msra.mxu0 %v1496
        %1614 = vmatpush.msra.mxu0 %v1495
        %1615 = vmatmul.f32.gmra.mxu0 %v1504
        %v1616 = vpop.f32.mrf.mxu0
        %v1617 = vadd.f32 0.0, %v1616
        %1618 = vmatmul.f32.gmra.mxu0 %v1507
        %v1619 = vpop.f32.mrf.mxu0
        %v1620 = vadd.f32 0.0, %v1619
        %1621 = vmatmul.f32.gmra.mxu0 %v1510
        %v1622 = vpop.f32.mrf.mxu0
        %v1623 = vadd.f32 0.0, %v1622
        %1624 = vmatmul.f32.gmra.mxu0 %v1513
        %v1625 = vpop.f32.mrf.mxu0
        %v1626 = vadd.f32 0.0, %v1625
        %1627 = vmatmul.f32.gmra.mxu0 %v1516
        %v1628 = vpop.f32.mrf.mxu0
        %v1629 = vadd.f32 0.0, %v1628
        %1630 = vmatmul.f32.gmra.mxu0 %v1519
        %v1631 = vpop.f32.mrf.mxu0
        %v1632 = vadd.f32 0.0, %v1631
        %1633 = vmatmul.f32.gmra.mxu0 %v1522
        %v1634 = vpop.f32.mrf.mxu0
        %v1635 = vadd.f32 0.0, %v1634
        %1636 = vmatmul.f32.gmra.mxu0 %v1525
        %v1637 = vpop.f32.mrf.mxu0
        %v1638 = vadd.f32 0.0, %v1637
        %1639 = vmatmul.f32.gmra.mxu0 %v1528
        %v1640 = vpop.f32.mrf.mxu0
        %v1641 = vadd.f32 0.0, %v1640
        %1642 = vmatmul.f32.gmra.mxu0 %v1531
        %v1643 = vpop.f32.mrf.mxu0
        %v1644 = vadd.f32 0.0, %v1643
        %1645 = vmatmul.f32.gmra.mxu0 %v1534
        %v1646 = vpop.f32.mrf.mxu0
        %v1647 = vadd.f32 0.0, %v1646
        %1648 = vmatmul.f32.gmra.mxu0 %v1537
        %v1649 = vpop.f32.mrf.mxu0
        %v1650 = vadd.f32 0.0, %v1649
        %1651 = vmatmul.f32.gmra.mxu0 %v1540
        %v1652 = vpop.f32.mrf.mxu0
        %v1653 = vadd.f32 0.0, %v1652
        %1654 = vmatmul.f32.gmra.mxu0 %v1543
        %v1655 = vpop.f32.mrf.mxu0
        %v1656 = vadd.f32 0.0, %v1655
        %1657 = vmatmul.f32.gmra.mxu0 %v1546
        %v1658 = vpop.f32.mrf.mxu0
        %v1659 = vadd.f32 0.0, %v1658
        %1660 = vmatmul.f32.gmra.mxu0 %v1549
        %v1661 = vpop.f32.mrf.mxu0
        %v1662 = vadd.f32 0.0, %v1661
        %1663 = vmatmul.f32.gmra.mxu0 %v1552
        %v1664 = vpop.f32.mrf.mxu0
        %v1665 = vadd.f32 0.0, %v1664
        %1666 = vmatmul.f32.gmra.mxu0 %v1555
        %v1667 = vpop.f32.mrf.mxu0
        %v1668 = vadd.f32 0.0, %v1667
        %1669 = vmatmul.f32.gmra.mxu0 %v1558
        %v1670 = vpop.f32.mrf.mxu0
        %v1671 = vadd.f32 0.0, %v1670
        %1672 = vmatmul.f32.gmra.mxu0 %v1561
        %v1673 = vpop.f32.mrf.mxu0
        %v1674 = vadd.f32 0.0, %v1673
        %1675 = vmatmul.f32.gmra.mxu0 %v1564
        %v1676 = vpop.f32.mrf.mxu0
        %v1677 = vadd.f32 0.0, %v1676
        %1678 = vmatmul.f32.gmra.mxu0 %v1567
        %v1679 = vpop.f32.mrf.mxu0
        %v1680 = vadd.f32 0.0, %v1679
        %1681 = vmatmul.f32.gmra.mxu0 %v1570
        %v1682 = vpop.f32.mrf.mxu0
        %v1683 = vadd.f32 0.0, %v1682
        %1684 = vmatmul.f32.gmra.mxu0 %v1573
        %v1685 = vpop.f32.mrf.mxu0
        %v1686 = vadd.f32 0.0, %v1685
        %1687 = vmatmul.f32.gmra.mxu0 %v1576
        %v1688 = vpop.f32.mrf.mxu0
        %v1689 = vadd.f32 0.0, %v1688
        %1690 = vmatmul.f32.gmra.mxu0 %v1579
        %v1691 = vpop.f32.mrf.mxu0
        %v1692 = vadd.f32 0.0, %v1691
        %1693 = vmatmul.f32.gmra.mxu0 %v1582
        %v1694 = vpop.f32.mrf.mxu0
        %v1695 = vadd.f32 0.0, %v1694
        %1696 = vmatmul.f32.gmra.mxu0 %v1585
        %v1697 = vpop.f32.mrf.mxu0
        %v1698 = vadd.f32 0.0, %v1697
        %1699 = vmatmul.f32.gmra.mxu0 %v1588
        %v1700 = vpop.f32.mrf.mxu0
        %v1701 = vadd.f32 0.0, %v1700
        %1702 = vmatmul.f32.gmra.mxu0 %v1591
        %v1703 = vpop.f32.mrf.mxu0
        %v1704 = vadd.f32 0.0, %v1703
        %1705 = vmatmul.f32.gmra.mxu0 %v1594
        %v1706 = vpop.f32.mrf.mxu0
        %v1707 = vadd.f32 0.0, %v1706
        %1708 = vmatmul.f32.gmra.mxu0 %v1597
        %v1709 = vpop.f32.mrf.mxu0
        %v1710 = vadd.f32 0.0, %v1709
        %1711 = vdwg.mxu0
        %v1712 = vadd.f32 %v1430, %v1617
        %v1713 = vadd.f32 %v1431, %v1620
        %v1714 = vadd.f32 %v1432, %v1623
        %v1715 = vadd.f32 %v1433, %v1626
        %v1716 = vadd.f32 %v1434, %v1629
        %v1717 = vadd.f32 %v1435, %v1632
        %v1718 = vadd.f32 %v1436, %v1635
        %v1719 = vadd.f32 %v1437, %v1638
        %v1720 = vadd.f32 %v1438, %v1641
        %v1721 = vadd.f32 %v1439, %v1644
        %v1722 = vadd.f32 %v1440, %v1647
        %v1723 = vadd.f32 %v1441, %v1650
        %v1724 = vadd.f32 %v1442, %v1653
        %v1725 = vadd.f32 %v1443, %v1656
        %v1726 = vadd.f32 %v1444, %v1659
        %v1727 = vadd.f32 %v1445, %v1662
        %v1728 = vadd.f32 %v1446, %v1665
        %v1729 = vadd.f32 %v1447, %v1668
        %v1730 = vadd.f32 %v1448, %v1671
        %v1731 = vadd.f32 %v1449, %v1674
        %v1732 = vadd.f32 %v1450, %v1677
        %v1733 = vadd.f32 %v1451, %v1680
        %v1734 = vadd.f32 %v1452, %v1683
        %v1735 = vadd.f32 %v1453, %v1686
        %v1736 = vadd.f32 %v1454, %v1689
        %v1737 = vadd.f32 %v1455, %v1692
        %v1738 = vadd.f32 %v1456, %v1695
        %v1739 = vadd.f32 %v1457, %v1698
        %v1740 = vadd.f32 %v1458, %v1701
        %v1741 = vadd.f32 %v1459, %v1704
        %v1742 = vadd.f32 %v1460, %v1707
        %v1743 = vadd.f32 %v1461, %v1710
        %v1744 = vld [vmem:[%s366 + $0x2] sm:$0xff]
        %v1745 = vld [vmem:[%s366 + $0xa] sm:$0xff]
        %v1746 = vld [vmem:[%s366 + $0x1a] sm:$0xff]
        %v1747 = vld [vmem:[%s366 + $0x22] sm:$0xff]
        %v1748 = vld [vmem:[%s366 + $0x32] sm:$0xff]
        %v1749 = vld [vmem:[%s366 + $0x3a] sm:$0xff]
        %v1750 = vld [vmem:[%s366 + $0x4a] sm:$0xff]
        %v1751 = vld [vmem:[%s366 + $0x52] sm:$0xff]
        %v1752 = vld [vmem:[%s366 + $0x62] sm:$0xff]
        %v1753 = vld [vmem:[%s366 + $0x6a] sm:$0xff]
        %v1754 = vld [vmem:[%s366 + $0x7a] sm:$0xff]
        %v1755 = vld [vmem:[%s366 + $0x82] sm:$0xff]
        %v1756 = vld [vmem:[%s366 + $0x92] sm:$0xff]
        %v1757 = vld [vmem:[%s366 + $0x9a] sm:$0xff]
        %v1758 = vld [vmem:[%s366 + $0xaa] sm:$0xff]
        %v1759 = vld [vmem:[%s366 + $0xb2] sm:$0xff]
        %v1760 = vld [vmem:[%s366 + $0xc2] sm:$0xff]
        %v1761 = vld [vmem:[%s366 + $0xca] sm:$0xff]
        %v1762 = vld [vmem:[%s366 + $0xda] sm:$0xff]
        %v1763 = vld [vmem:[%s366 + $0xe2] sm:$0xff]
        %v1764 = vld [vmem:[%s366 + $0xf2] sm:$0xff]
        %v1765 = vld [vmem:[%s366 + $0xfa] sm:$0xff]
        %v1766 = vld [vmem:[%s366 + $0x10a] sm:$0xff]
        %v1767 = vld [vmem:[%s366 + $0x112] sm:$0xff]
        %v1768 = vld [vmem:[%s366 + $0x122] sm:$0xff]
        %v1769 = vld [vmem:[%s366 + $0x12a] sm:$0xff]
        %v1770 = vld [vmem:[%s366 + $0x13a] sm:$0xff]
        %v1771 = vld [vmem:[%s366 + $0x142] sm:$0xff]
        %v1772 = vld [vmem:[%s366 + $0x152] sm:$0xff]
        %v1773 = vld [vmem:[%s366 + $0x15a] sm:$0xff]
        %v1774 = vld [vmem:[%s366 + $0x16a] sm:$0xff]
        %v1775 = vld [vmem:[%s366 + $0x172] sm:$0xff]
        %s1776 = scalar_lea.vmem [#allocation7], 320
        %v1777 = vld [vmem:[%s1776] sm:$0xff]
        %v1778 = vld [vmem:[%s1776 + $0x8] sm:$0xff]
        %v1779 = vld [vmem:[%s1776 + $0x10] sm:$0xff]
        %v1780 = vld [vmem:[%s1776 + $0x18] sm:$0xff]
        %v1781 = vld [vmem:[%s1776 + $0x20] sm:$0xff]
        %v1782 = vld [vmem:[%s1776 + $0x28] sm:$0xff]
        %v1783 = vld [vmem:[%s1776 + $0x30] sm:$0xff]
        %v1784 = vld [vmem:[%s1776 + $0x38] sm:$0xff]
        %v1786 = vsel %vm278, %v1744, 0
        %v1789 = vsel %vm278, %v1745, 0
        %v1792 = vsel %vm278, %v1746, 0
        %v1795 = vsel %vm278, %v1747, 0
        %v1798 = vsel %vm278, %v1748, 0
        %v1801 = vsel %vm278, %v1749, 0
        %v1804 = vsel %vm278, %v1750, 0
        %v1807 = vsel %vm278, %v1751, 0
        %v1810 = vsel %vm278, %v1752, 0
        %v1813 = vsel %vm278, %v1753, 0
        %v1816 = vsel %vm278, %v1754, 0
        %v1819 = vsel %vm278, %v1755, 0
        %v1822 = vsel %vm278, %v1756, 0
        %v1825 = vsel %vm278, %v1757, 0
        %v1828 = vsel %vm278, %v1758, 0
        %v1831 = vsel %vm278, %v1759, 0
        %v1834 = vsel %vm278, %v1760, 0
        %v1837 = vsel %vm278, %v1761, 0
        %v1840 = vsel %vm278, %v1762, 0
        %v1843 = vsel %vm278, %v1763, 0
        %v1846 = vsel %vm278, %v1764, 0
        %v1849 = vsel %vm278, %v1765, 0
        %v1852 = vsel %vm278, %v1766, 0
        %v1855 = vsel %vm278, %v1767, 0
        %v1858 = vsel %vm278, %v1768, 0
        %v1861 = vsel %vm278, %v1769, 0
        %v1864 = vsel %vm278, %v1770, 0
        %v1867 = vsel %vm278, %v1771, 0
        %v1870 = vsel %vm278, %v1772, 0
        %v1873 = vsel %vm278, %v1773, 0
        %v1876 = vsel %vm278, %v1774, 0
        %v1879 = vsel %vm278, %v1775, 0
        %1881 = vmatpush.msra.mxu0 0.0
        %1882 = vmatpush.msra.mxu0 0.0
        %1883 = vmatpush.msra.mxu0 0.0
        %1884 = vmatpush.msra.mxu0 0.0
        %1885 = vmatpush.msra.mxu0 0.0
        %1886 = vmatpush.msra.mxu0 0.0
        %1887 = vmatpush.msra.mxu0 0.0
        %1888 = vmatpush.msra.mxu0 0.0
        %1889 = vmatpush.msra.mxu0 %v1784
        %1890 = vmatpush.msra.mxu0 %v1783
        %1891 = vmatpush.msra.mxu0 %v1782
        %1892 = vmatpush.msra.mxu0 %v1781
        %1893 = vmatpush.msra.mxu0 %v1780
        %1894 = vmatpush.msra.mxu0 %v1779
        %1895 = vmatpush.msra.mxu0 %v1778
        %1896 = vmatpush.msra.mxu0 %v1777
        %1897 = vmatmul.f32.gmra.mxu0 %v1786
        %v1898 = vpop.f32.mrf.mxu0
        %v1899 = vadd.f32 0.0, %v1898
        %1900 = vmatmul.f32.gmra.mxu0 %v1789
        %v1901 = vpop.f32.mrf.mxu0
        %v1902 = vadd.f32 0.0, %v1901
        %1903 = vmatmul.f32.gmra.mxu0 %v1792
        %v1904 = vpop.f32.mrf.mxu0
        %v1905 = vadd.f32 0.0, %v1904
        %1906 = vmatmul.f32.gmra.mxu0 %v1795
        %v1907 = vpop.f32.mrf.mxu0
        %v1908 = vadd.f32 0.0, %v1907
        %1909 = vmatmul.f32.gmra.mxu0 %v1798
        %v1910 = vpop.f32.mrf.mxu0
        %v1911 = vadd.f32 0.0, %v1910
        %1912 = vmatmul.f32.gmra.mxu0 %v1801
        %v1913 = vpop.f32.mrf.mxu0
        %v1914 = vadd.f32 0.0, %v1913
        %1915 = vmatmul.f32.gmra.mxu0 %v1804
        %v1916 = vpop.f32.mrf.mxu0
        %v1917 = vadd.f32 0.0, %v1916
        %1918 = vmatmul.f32.gmra.mxu0 %v1807
        %v1919 = vpop.f32.mrf.mxu0
        %v1920 = vadd.f32 0.0, %v1919
        %1921 = vmatmul.f32.gmra.mxu0 %v1810
        %v1922 = vpop.f32.mrf.mxu0
        %v1923 = vadd.f32 0.0, %v1922
        %1924 = vmatmul.f32.gmra.mxu0 %v1813
        %v1925 = vpop.f32.mrf.mxu0
        %v1926 = vadd.f32 0.0, %v1925
        %1927 = vmatmul.f32.gmra.mxu0 %v1816
        %v1928 = vpop.f32.mrf.mxu0
        %v1929 = vadd.f32 0.0, %v1928
        %1930 = vmatmul.f32.gmra.mxu0 %v1819
        %v1931 = vpop.f32.mrf.mxu0
        %v1932 = vadd.f32 0.0, %v1931
        %1933 = vmatmul.f32.gmra.mxu0 %v1822
        %v1934 = vpop.f32.mrf.mxu0
        %v1935 = vadd.f32 0.0, %v1934
        %1936 = vmatmul.f32.gmra.mxu0 %v1825
        %v1937 = vpop.f32.mrf.mxu0
        %v1938 = vadd.f32 0.0, %v1937
        %1939 = vmatmul.f32.gmra.mxu0 %v1828
        %v1940 = vpop.f32.mrf.mxu0
        %v1941 = vadd.f32 0.0, %v1940
        %1942 = vmatmul.f32.gmra.mxu0 %v1831
        %v1943 = vpop.f32.mrf.mxu0
        %v1944 = vadd.f32 0.0, %v1943
        %1945 = vmatmul.f32.gmra.mxu0 %v1834
        %v1946 = vpop.f32.mrf.mxu0
        %v1947 = vadd.f32 0.0, %v1946
        %1948 = vmatmul.f32.gmra.mxu0 %v1837
        %v1949 = vpop.f32.mrf.mxu0
        %v1950 = vadd.f32 0.0, %v1949
        %1951 = vmatmul.f32.gmra.mxu0 %v1840
        %v1952 = vpop.f32.mrf.mxu0
        %v1953 = vadd.f32 0.0, %v1952
        %1954 = vmatmul.f32.gmra.mxu0 %v1843
        %v1955 = vpop.f32.mrf.mxu0
        %v1956 = vadd.f32 0.0, %v1955
        %1957 = vmatmul.f32.gmra.mxu0 %v1846
        %v1958 = vpop.f32.mrf.mxu0
        %v1959 = vadd.f32 0.0, %v1958
        %1960 = vmatmul.f32.gmra.mxu0 %v1849
        %v1961 = vpop.f32.mrf.mxu0
        %v1962 = vadd.f32 0.0, %v1961
        %1963 = vmatmul.f32.gmra.mxu0 %v1852
        %v1964 = vpop.f32.mrf.mxu0
        %v1965 = vadd.f32 0.0, %v1964
        %1966 = vmatmul.f32.gmra.mxu0 %v1855
        %v1967 = vpop.f32.mrf.mxu0
        %v1968 = vadd.f32 0.0, %v1967
        %1969 = vmatmul.f32.gmra.mxu0 %v1858
        %v1970 = vpop.f32.mrf.mxu0
        %v1971 = vadd.f32 0.0, %v1970
        %1972 = vmatmul.f32.gmra.mxu0 %v1861
        %v1973 = vpop.f32.mrf.mxu0
        %v1974 = vadd.f32 0.0, %v1973
        %1975 = vmatmul.f32.gmra.mxu0 %v1864
        %v1976 = vpop.f32.mrf.mxu0
        %v1977 = vadd.f32 0.0, %v1976
        %1978 = vmatmul.f32.gmra.mxu0 %v1867
        %v1979 = vpop.f32.mrf.mxu0
        %v1980 = vadd.f32 0.0, %v1979
        %1981 = vmatmul.f32.gmra.mxu0 %v1870
        %v1982 = vpop.f32.mrf.mxu0
        %v1983 = vadd.f32 0.0, %v1982
        %1984 = vmatmul.f32.gmra.mxu0 %v1873
        %v1985 = vpop.f32.mrf.mxu0
        %v1986 = vadd.f32 0.0, %v1985
        %1987 = vmatmul.f32.gmra.mxu0 %v1876
        %v1988 = vpop.f32.mrf.mxu0
        %v1989 = vadd.f32 0.0, %v1988
        %1990 = vmatmul.f32.gmra.mxu0 %v1879
        %v1991 = vpop.f32.mrf.mxu0
        %v1992 = vadd.f32 0.0, %v1991
        %1993 = vdwg.mxu0
        %v1994 = vadd.f32 %v1712, %v1899
        %v1995 = vadd.f32 %v1713, %v1902
        %v1996 = vadd.f32 %v1714, %v1905
        %v1997 = vadd.f32 %v1715, %v1908
        %v1998 = vadd.f32 %v1716, %v1911
        %v1999 = vadd.f32 %v1717, %v1914
        %v2000 = vadd.f32 %v1718, %v1917
        %v2001 = vadd.f32 %v1719, %v1920
        %v2002 = vadd.f32 %v1720, %v1923
        %v2003 = vadd.f32 %v1721, %v1926
        %v2004 = vadd.f32 %v1722, %v1929
        %v2005 = vadd.f32 %v1723, %v1932
        %v2006 = vadd.f32 %v1724, %v1935
        %v2007 = vadd.f32 %v1725, %v1938
        %v2008 = vadd.f32 %v1726, %v1941
        %v2009 = vadd.f32 %v1727, %v1944
        %v2010 = vadd.f32 %v1728, %v1947
        %v2011 = vadd.f32 %v1729, %v1950
        %v2012 = vadd.f32 %v1730, %v1953
        %v2013 = vadd.f32 %v1731, %v1956
        %v2014 = vadd.f32 %v1732, %v1959
        %v2015 = vadd.f32 %v1733, %v1962
        %v2016 = vadd.f32 %v1734, %v1965
        %v2017 = vadd.f32 %v1735, %v1968
        %v2018 = vadd.f32 %v1736, %v1971
        %v2019 = vadd.f32 %v1737, %v1974
        %v2020 = vadd.f32 %v1738, %v1977
        %v2021 = vadd.f32 %v1739, %v1980
        %v2022 = vadd.f32 %v1740, %v1983
        %v2023 = vadd.f32 %v1741, %v1986
        %v2024 = vadd.f32 %v1742, %v1989
        %v2025 = vadd.f32 %v1743, %v1992
        %s2026 = scalar_lea.vmem [#allocation2], 48
        %v2027 = vld [vmem:[%s2026] sm:$0xff]
        %v2028 = vld [vmem:[%s2026 + $0x8] sm:$0xff]
        %v2029 = vld [vmem:[%s2026 + $0x18] sm:$0xff]
        %v2030 = vld [vmem:[%s2026 + $0x20] sm:$0xff]
        %v2031 = vld [vmem:[%s2026 + $0x30] sm:$0xff]
        %v2032 = vld [vmem:[%s2026 + $0x38] sm:$0xff]
        %v2033 = vld [vmem:[%s2026 + $0x48] sm:$0xff]
        %v2034 = vld [vmem:[%s2026 + $0x50] sm:$0xff]
        %v2035 = vld [vmem:[%s2026 + $0x60] sm:$0xff]
        %v2036 = vld [vmem:[%s2026 + $0x68] sm:$0xff]
        %v2037 = vld [vmem:[%s2026 + $0x78] sm:$0xff]
        %v2038 = vld [vmem:[%s2026 + $0x80] sm:$0xff]
        %v2039 = vld [vmem:[%s2026 + $0x90] sm:$0xff]
        %v2040 = vld [vmem:[%s2026 + $0x98] sm:$0xff]
        %v2041 = vld [vmem:[%s2026 + $0xa8] sm:$0xff]
        %v2042 = vld [vmem:[%s2026 + $0xb0] sm:$0xff]
        %v2043 = vld [vmem:[%s2026 + $0xc0] sm:$0xff]
        %v2044 = vld [vmem:[%s2026 + $0xc8] sm:$0xff]
        %v2045 = vld [vmem:[%s2026 + $0xd8] sm:$0xff]
        %v2046 = vld [vmem:[%s2026 + $0xe0] sm:$0xff]
        %v2047 = vld [vmem:[%s2026 + $0xf0] sm:$0xff]
        %v2048 = vld [vmem:[%s2026 + $0xf8] sm:$0xff]
        %v2049 = vld [vmem:[%s2026 + $0x108] sm:$0xff]
        %v2050 = vld [vmem:[%s2026 + $0x110] sm:$0xff]
        %v2051 = vld [vmem:[%s2026 + $0x120] sm:$0xff]
        %v2052 = vld [vmem:[%s2026 + $0x128] sm:$0xff]
        %v2053 = vld [vmem:[%s2026 + $0x138] sm:$0xff]
        %v2054 = vld [vmem:[%s2026 + $0x140] sm:$0xff]
        %v2055 = vld [vmem:[%s2026 + $0x150] sm:$0xff]
        %v2056 = vld [vmem:[%s2026 + $0x158] sm:$0xff]
        %v2057 = vld [vmem:[%s2026 + $0x168] sm:$0xff]
        %v2058 = vld [vmem:[%s2026 + $0x170] sm:$0xff]
        %s2059 = scalar_lea.vmem [#allocation7], 384
        %v2060 = vld [vmem:[%s2059] sm:$0xff]
        %v2061 = vld [vmem:[%s2059 + $0x8] sm:$0xff]
        %v2062 = vld [vmem:[%s2059 + $0x10] sm:$0xff]
        %v2063 = vld [vmem:[%s2059 + $0x18] sm:$0xff]
        %v2064 = vld [vmem:[%s2059 + $0x20] sm:$0xff]
        %v2065 = vld [vmem:[%s2059 + $0x28] sm:$0xff]
        %v2066 = vld [vmem:[%s2059 + $0x30] sm:$0xff]
        %v2067 = vld [vmem:[%s2059 + $0x38] sm:$0xff]
        %v2069 = vsel %vm278, %v2027, 0
        %v2072 = vsel %vm278, %v2028, 0
        %v2075 = vsel %vm278, %v2029, 0
        %v2078 = vsel %vm278, %v2030, 0
        %v2081 = vsel %vm278, %v2031, 0
        %v2084 = vsel %vm278, %v2032, 0
        %v2087 = vsel %vm278, %v2033, 0
        %v2090 = vsel %vm278, %v2034, 0
        %v2093 = vsel %vm278, %v2035, 0
        %v2096 = vsel %vm278, %v2036, 0
        %v2099 = vsel %vm278, %v2037, 0
        %v2102 = vsel %vm278, %v2038, 0
        %v2105 = vsel %vm278, %v2039, 0
        %v2108 = vsel %vm278, %v2040, 0
        %v2111 = vsel %vm278, %v2041, 0
        %v2114 = vsel %vm278, %v2042, 0
        %v2117 = vsel %vm278, %v2043, 0
        %v2120 = vsel %vm278, %v2044, 0
        %v2123 = vsel %vm278, %v2045, 0
        %v2126 = vsel %vm278, %v2046, 0
        %v2129 = vsel %vm278, %v2047, 0
        %v2132 = vsel %vm278, %v2048, 0
        %v2135 = vsel %vm278, %v2049, 0
        %v2138 = vsel %vm278, %v2050, 0
        %v2141 = vsel %vm278, %v2051, 0
        %v2144 = vsel %vm278, %v2052, 0
        %v2147 = vsel %vm278, %v2053, 0
        %v2150 = vsel %vm278, %v2054, 0
        %v2153 = vsel %vm278, %v2055, 0
        %v2156 = vsel %vm278, %v2056, 0
        %v2159 = vsel %vm278, %v2057, 0
        %v2162 = vsel %vm278, %v2058, 0
        %2164 = vmatpush.msra.mxu0 0.0
        %2165 = vmatpush.msra.mxu0 0.0
        %2166 = vmatpush.msra.mxu0 0.0
        %2167 = vmatpush.msra.mxu0 0.0
        %2168 = vmatpush.msra.mxu0 0.0
        %2169 = vmatpush.msra.mxu0 0.0
        %2170 = vmatpush.msra.mxu0 0.0
        %2171 = vmatpush.msra.mxu0 0.0
        %2172 = vmatpush.msra.mxu0 %v2067
        %2173 = vmatpush.msra.mxu0 %v2066
        %2174 = vmatpush.msra.mxu0 %v2065
        %2175 = vmatpush.msra.mxu0 %v2064
        %2176 = vmatpush.msra.mxu0 %v2063
        %2177 = vmatpush.msra.mxu0 %v2062
        %2178 = vmatpush.msra.mxu0 %v2061
        %2179 = vmatpush.msra.mxu0 %v2060
        %2180 = vmatmul.f32.gmra.mxu0 %v2069
        %v2181 = vpop.f32.mrf.mxu0
        %v2182 = vadd.f32 0.0, %v2181
        %2183 = vmatmul.f32.gmra.mxu0 %v2072
        %v2184 = vpop.f32.mrf.mxu0
        %v2185 = vadd.f32 0.0, %v2184
        %2186 = vmatmul.f32.gmra.mxu0 %v2075
        %v2187 = vpop.f32.mrf.mxu0
        %v2188 = vadd.f32 0.0, %v2187
        %2189 = vmatmul.f32.gmra.mxu0 %v2078
        %v2190 = vpop.f32.mrf.mxu0
        %v2191 = vadd.f32 0.0, %v2190
        %2192 = vmatmul.f32.gmra.mxu0 %v2081
        %v2193 = vpop.f32.mrf.mxu0
        %v2194 = vadd.f32 0.0, %v2193
        %2195 = vmatmul.f32.gmra.mxu0 %v2084
        %v2196 = vpop.f32.mrf.mxu0
        %v2197 = vadd.f32 0.0, %v2196
        %2198 = vmatmul.f32.gmra.mxu0 %v2087
        %v2199 = vpop.f32.mrf.mxu0
        %v2200 = vadd.f32 0.0, %v2199
        %2201 = vmatmul.f32.gmra.mxu0 %v2090
        %v2202 = vpop.f32.mrf.mxu0
        %v2203 = vadd.f32 0.0, %v2202
        %2204 = vmatmul.f32.gmra.mxu0 %v2093
        %v2205 = vpop.f32.mrf.mxu0
        %v2206 = vadd.f32 0.0, %v2205
        %2207 = vmatmul.f32.gmra.mxu0 %v2096
        %v2208 = vpop.f32.mrf.mxu0
        %v2209 = vadd.f32 0.0, %v2208
        %2210 = vmatmul.f32.gmra.mxu0 %v2099
        %v2211 = vpop.f32.mrf.mxu0
        %v2212 = vadd.f32 0.0, %v2211
        %2213 = vmatmul.f32.gmra.mxu0 %v2102
        %v2214 = vpop.f32.mrf.mxu0
        %v2215 = vadd.f32 0.0, %v2214
        %2216 = vmatmul.f32.gmra.mxu0 %v2105
        %v2217 = vpop.f32.mrf.mxu0
        %v2218 = vadd.f32 0.0, %v2217
        %2219 = vmatmul.f32.gmra.mxu0 %v2108
        %v2220 = vpop.f32.mrf.mxu0
        %v2221 = vadd.f32 0.0, %v2220
        %2222 = vmatmul.f32.gmra.mxu0 %v2111
        %v2223 = vpop.f32.mrf.mxu0
        %v2224 = vadd.f32 0.0, %v2223
        %2225 = vmatmul.f32.gmra.mxu0 %v2114
        %v2226 = vpop.f32.mrf.mxu0
        %v2227 = vadd.f32 0.0, %v2226
        %2228 = vmatmul.f32.gmra.mxu0 %v2117
        %v2229 = vpop.f32.mrf.mxu0
        %v2230 = vadd.f32 0.0, %v2229
        %2231 = vmatmul.f32.gmra.mxu0 %v2120
        %v2232 = vpop.f32.mrf.mxu0
        %v2233 = vadd.f32 0.0, %v2232
        %2234 = vmatmul.f32.gmra.mxu0 %v2123
        %v2235 = vpop.f32.mrf.mxu0
        %v2236 = vadd.f32 0.0, %v2235
        %2237 = vmatmul.f32.gmra.mxu0 %v2126
        %v2238 = vpop.f32.mrf.mxu0
        %v2239 = vadd.f32 0.0, %v2238
        %2240 = vmatmul.f32.gmra.mxu0 %v2129
        %v2241 = vpop.f32.mrf.mxu0
        %v2242 = vadd.f32 0.0, %v2241
        %2243 = vmatmul.f32.gmra.mxu0 %v2132
        %v2244 = vpop.f32.mrf.mxu0
        %v2245 = vadd.f32 0.0, %v2244
        %2246 = vmatmul.f32.gmra.mxu0 %v2135
        %v2247 = vpop.f32.mrf.mxu0
        %v2248 = vadd.f32 0.0, %v2247
        %2249 = vmatmul.f32.gmra.mxu0 %v2138
        %v2250 = vpop.f32.mrf.mxu0
        %v2251 = vadd.f32 0.0, %v2250
        %2252 = vmatmul.f32.gmra.mxu0 %v2141
        %v2253 = vpop.f32.mrf.mxu0
        %v2254 = vadd.f32 0.0, %v2253
        %2255 = vmatmul.f32.gmra.mxu0 %v2144
        %v2256 = vpop.f32.mrf.mxu0
        %v2257 = vadd.f32 0.0, %v2256
        %2258 = vmatmul.f32.gmra.mxu0 %v2147
        %v2259 = vpop.f32.mrf.mxu0
        %v2260 = vadd.f32 0.0, %v2259
        %2261 = vmatmul.f32.gmra.mxu0 %v2150
        %v2262 = vpop.f32.mrf.mxu0
        %v2263 = vadd.f32 0.0, %v2262
        %2264 = vmatmul.f32.gmra.mxu0 %v2153
        %v2265 = vpop.f32.mrf.mxu0
        %v2266 = vadd.f32 0.0, %v2265
        %2267 = vmatmul.f32.gmra.mxu0 %v2156
        %v2268 = vpop.f32.mrf.mxu0
        %v2269 = vadd.f32 0.0, %v2268
        %2270 = vmatmul.f32.gmra.mxu0 %v2159
        %v2271 = vpop.f32.mrf.mxu0
        %v2272 = vadd.f32 0.0, %v2271
        %2273 = vmatmul.f32.gmra.mxu0 %v2162
        %v2274 = vpop.f32.mrf.mxu0
        %v2275 = vadd.f32 0.0, %v2274
        %2276 = vdwg.mxu0
        %v2277 = vadd.f32 %v1994, %v2182
        %v2278 = vadd.f32 %v1995, %v2185
        %v2279 = vadd.f32 %v1996, %v2188
        %v2280 = vadd.f32 %v1997, %v2191
        %v2281 = vadd.f32 %v1998, %v2194
        %v2282 = vadd.f32 %v1999, %v2197
        %v2283 = vadd.f32 %v2000, %v2200
        %v2284 = vadd.f32 %v2001, %v2203
        %v2285 = vadd.f32 %v2002, %v2206
        %v2286 = vadd.f32 %v2003, %v2209
        %v2287 = vadd.f32 %v2004, %v2212
        %v2288 = vadd.f32 %v2005, %v2215
        %v2289 = vadd.f32 %v2006, %v2218
        %v2290 = vadd.f32 %v2007, %v2221
        %v2291 = vadd.f32 %v2008, %v2224
        %v2292 = vadd.f32 %v2009, %v2227
        %v2293 = vadd.f32 %v2010, %v2230
        %v2294 = vadd.f32 %v2011, %v2233
        %v2295 = vadd.f32 %v2012, %v2236
        %v2296 = vadd.f32 %v2013, %v2239
        %v2297 = vadd.f32 %v2014, %v2242
        %v2298 = vadd.f32 %v2015, %v2245
        %v2299 = vadd.f32 %v2016, %v2248
        %v2300 = vadd.f32 %v2017, %v2251
        %v2301 = vadd.f32 %v2018, %v2254
        %v2302 = vadd.f32 %v2019, %v2257
        %v2303 = vadd.f32 %v2020, %v2260
        %v2304 = vadd.f32 %v2021, %v2263
        %v2305 = vadd.f32 %v2022, %v2266
        %v2306 = vadd.f32 %v2023, %v2269
        %v2307 = vadd.f32 %v2024, %v2272
        %v2308 = vadd.f32 %v2025, %v2275
        %v2309 = vld [vmem:[%s2026 + $0x1] sm:$0xff]
        %v2310 = vld [vmem:[%s2026 + $0x9] sm:$0xff]
        %v2311 = vld [vmem:[%s2026 + $0x19] sm:$0xff]
        %v2312 = vld [vmem:[%s2026 + $0x21] sm:$0xff]
        %v2313 = vld [vmem:[%s2026 + $0x31] sm:$0xff]
        %v2314 = vld [vmem:[%s2026 + $0x39] sm:$0xff]
        %v2315 = vld [vmem:[%s2026 + $0x49] sm:$0xff]
        %v2316 = vld [vmem:[%s2026 + $0x51] sm:$0xff]
        %v2317 = vld [vmem:[%s2026 + $0x61] sm:$0xff]
        %v2318 = vld [vmem:[%s2026 + $0x69] sm:$0xff]
        %v2319 = vld [vmem:[%s2026 + $0x79] sm:$0xff]
        %v2320 = vld [vmem:[%s2026 + $0x81] sm:$0xff]
        %v2321 = vld [vmem:[%s2026 + $0x91] sm:$0xff]
        %v2322 = vld [vmem:[%s2026 + $0x99] sm:$0xff]
        %v2323 = vld [vmem:[%s2026 + $0xa9] sm:$0xff]
        %v2324 = vld [vmem:[%s2026 + $0xb1] sm:$0xff]
        %v2325 = vld [vmem:[%s2026 + $0xc1] sm:$0xff]
        %v2326 = vld [vmem:[%s2026 + $0xc9] sm:$0xff]
        %v2327 = vld [vmem:[%s2026 + $0xd9] sm:$0xff]
        %v2328 = vld [vmem:[%s2026 + $0xe1] sm:$0xff]
        %v2329 = vld [vmem:[%s2026 + $0xf1] sm:$0xff]
        %v2330 = vld [vmem:[%s2026 + $0xf9] sm:$0xff]
        %v2331 = vld [vmem:[%s2026 + $0x109] sm:$0xff]
        %v2332 = vld [vmem:[%s2026 + $0x111] sm:$0xff]
        %v2333 = vld [vmem:[%s2026 + $0x121] sm:$0xff]
        %v2334 = vld [vmem:[%s2026 + $0x129] sm:$0xff]
        %v2335 = vld [vmem:[%s2026 + $0x139] sm:$0xff]
        %v2336 = vld [vmem:[%s2026 + $0x141] sm:$0xff]
        %v2337 = vld [vmem:[%s2026 + $0x151] sm:$0xff]
        %v2338 = vld [vmem:[%s2026 + $0x159] sm:$0xff]
        %v2339 = vld [vmem:[%s2026 + $0x169] sm:$0xff]
        %v2340 = vld [vmem:[%s2026 + $0x171] sm:$0xff]
        %s2341 = scalar_lea.vmem [#allocation7], 448
        %v2342 = vld [vmem:[%s2341] sm:$0xff]
        %v2343 = vld [vmem:[%s2341 + $0x8] sm:$0xff]
        %v2344 = vld [vmem:[%s2341 + $0x10] sm:$0xff]
        %v2345 = vld [vmem:[%s2341 + $0x18] sm:$0xff]
        %v2346 = vld [vmem:[%s2341 + $0x20] sm:$0xff]
        %v2347 = vld [vmem:[%s2341 + $0x28] sm:$0xff]
        %v2348 = vld [vmem:[%s2341 + $0x30] sm:$0xff]
        %v2349 = vld [vmem:[%s2341 + $0x38] sm:$0xff]
        %v2351 = vsel %vm278, %v2309, 0
        %v2354 = vsel %vm278, %v2310, 0
        %v2357 = vsel %vm278, %v2311, 0
        %v2360 = vsel %vm278, %v2312, 0
        %v2363 = vsel %vm278, %v2313, 0
        %v2366 = vsel %vm278, %v2314, 0
        %v2369 = vsel %vm278, %v2315, 0
        %v2372 = vsel %vm278, %v2316, 0
        %v2375 = vsel %vm278, %v2317, 0
        %v2378 = vsel %vm278, %v2318, 0
        %v2381 = vsel %vm278, %v2319, 0
        %v2384 = vsel %vm278, %v2320, 0
        %v2387 = vsel %vm278, %v2321, 0
        %v2390 = vsel %vm278, %v2322, 0
        %v2393 = vsel %vm278, %v2323, 0
        %v2396 = vsel %vm278, %v2324, 0
        %v2399 = vsel %vm278, %v2325, 0
        %v2402 = vsel %vm278, %v2326, 0
        %v2405 = vsel %vm278, %v2327, 0
        %v2408 = vsel %vm278, %v2328, 0
        %v2411 = vsel %vm278, %v2329, 0
        %v2414 = vsel %vm278, %v2330, 0
        %v2417 = vsel %vm278, %v2331, 0
        %v2420 = vsel %vm278, %v2332, 0
        %v2423 = vsel %vm278, %v2333, 0
        %v2426 = vsel %vm278, %v2334, 0
        %v2429 = vsel %vm278, %v2335, 0
        %v2432 = vsel %vm278, %v2336, 0
        %v2435 = vsel %vm278, %v2337, 0
        %v2438 = vsel %vm278, %v2338, 0
        %v2441 = vsel %vm278, %v2339, 0
        %v2444 = vsel %vm278, %v2340, 0
        %2446 = vmatpush.msra.mxu0 0.0
        %2447 = vmatpush.msra.mxu0 0.0
        %2448 = vmatpush.msra.mxu0 0.0
        %2449 = vmatpush.msra.mxu0 0.0
        %2450 = vmatpush.msra.mxu0 0.0
        %2451 = vmatpush.msra.mxu0 0.0
        %2452 = vmatpush.msra.mxu0 0.0
        %2453 = vmatpush.msra.mxu0 0.0
        %2454 = vmatpush.msra.mxu0 %v2349
        %2455 = vmatpush.msra.mxu0 %v2348
        %2456 = vmatpush.msra.mxu0 %v2347
        %2457 = vmatpush.msra.mxu0 %v2346
        %2458 = vmatpush.msra.mxu0 %v2345
        %2459 = vmatpush.msra.mxu0 %v2344
        %2460 = vmatpush.msra.mxu0 %v2343
        %2461 = vmatpush.msra.mxu0 %v2342
        %2462 = vmatmul.f32.gmra.mxu0 %v2351
        %v2463 = vpop.f32.mrf.mxu0
        %v2464 = vadd.f32 0.0, %v2463
        %2465 = vmatmul.f32.gmra.mxu0 %v2354
        %v2466 = vpop.f32.mrf.mxu0
        %v2467 = vadd.f32 0.0, %v2466
        %2468 = vmatmul.f32.gmra.mxu0 %v2357
        %v2469 = vpop.f32.mrf.mxu0
        %v2470 = vadd.f32 0.0, %v2469
        %2471 = vmatmul.f32.gmra.mxu0 %v2360
        %v2472 = vpop.f32.mrf.mxu0
        %v2473 = vadd.f32 0.0, %v2472
        %2474 = vmatmul.f32.gmra.mxu0 %v2363
        %v2475 = vpop.f32.mrf.mxu0
        %v2476 = vadd.f32 0.0, %v2475
        %2477 = vmatmul.f32.gmra.mxu0 %v2366
        %v2478 = vpop.f32.mrf.mxu0
        %v2479 = vadd.f32 0.0, %v2478
        %2480 = vmatmul.f32.gmra.mxu0 %v2369
        %v2481 = vpop.f32.mrf.mxu0
        %v2482 = vadd.f32 0.0, %v2481
        %2483 = vmatmul.f32.gmra.mxu0 %v2372
        %v2484 = vpop.f32.mrf.mxu0
        %v2485 = vadd.f32 0.0, %v2484
        %2486 = vmatmul.f32.gmra.mxu0 %v2375
        %v2487 = vpop.f32.mrf.mxu0
        %v2488 = vadd.f32 0.0, %v2487
        %2489 = vmatmul.f32.gmra.mxu0 %v2378
        %v2490 = vpop.f32.mrf.mxu0
        %v2491 = vadd.f32 0.0, %v2490
        %2492 = vmatmul.f32.gmra.mxu0 %v2381
        %v2493 = vpop.f32.mrf.mxu0
        %v2494 = vadd.f32 0.0, %v2493
        %2495 = vmatmul.f32.gmra.mxu0 %v2384
        %v2496 = vpop.f32.mrf.mxu0
        %v2497 = vadd.f32 0.0, %v2496
        %2498 = vmatmul.f32.gmra.mxu0 %v2387
        %v2499 = vpop.f32.mrf.mxu0
        %v2500 = vadd.f32 0.0, %v2499
        %2501 = vmatmul.f32.gmra.mxu0 %v2390
        %v2502 = vpop.f32.mrf.mxu0
        %v2503 = vadd.f32 0.0, %v2502
        %2504 = vmatmul.f32.gmra.mxu0 %v2393
        %v2505 = vpop.f32.mrf.mxu0
        %v2506 = vadd.f32 0.0, %v2505
        %2507 = vmatmul.f32.gmra.mxu0 %v2396
        %v2508 = vpop.f32.mrf.mxu0
        %v2509 = vadd.f32 0.0, %v2508
        %2510 = vmatmul.f32.gmra.mxu0 %v2399
        %v2511 = vpop.f32.mrf.mxu0
        %v2512 = vadd.f32 0.0, %v2511
        %2513 = vmatmul.f32.gmra.mxu0 %v2402
        %v2514 = vpop.f32.mrf.mxu0
        %v2515 = vadd.f32 0.0, %v2514
        %2516 = vmatmul.f32.gmra.mxu0 %v2405
        %v2517 = vpop.f32.mrf.mxu0
        %v2518 = vadd.f32 0.0, %v2517
        %2519 = vmatmul.f32.gmra.mxu0 %v2408
        %v2520 = vpop.f32.mrf.mxu0
        %v2521 = vadd.f32 0.0, %v2520
        %2522 = vmatmul.f32.gmra.mxu0 %v2411
        %v2523 = vpop.f32.mrf.mxu0
        %v2524 = vadd.f32 0.0, %v2523
        %2525 = vmatmul.f32.gmra.mxu0 %v2414
        %v2526 = vpop.f32.mrf.mxu0
        %v2527 = vadd.f32 0.0, %v2526
        %2528 = vmatmul.f32.gmra.mxu0 %v2417
        %v2529 = vpop.f32.mrf.mxu0
        %v2530 = vadd.f32 0.0, %v2529
        %2531 = vmatmul.f32.gmra.mxu0 %v2420
        %v2532 = vpop.f32.mrf.mxu0
        %v2533 = vadd.f32 0.0, %v2532
        %2534 = vmatmul.f32.gmra.mxu0 %v2423
        %v2535 = vpop.f32.mrf.mxu0
        %v2536 = vadd.f32 0.0, %v2535
        %2537 = vmatmul.f32.gmra.mxu0 %v2426
        %v2538 = vpop.f32.mrf.mxu0
        %v2539 = vadd.f32 0.0, %v2538
        %2540 = vmatmul.f32.gmra.mxu0 %v2429
        %v2541 = vpop.f32.mrf.mxu0
        %v2542 = vadd.f32 0.0, %v2541
        %2543 = vmatmul.f32.gmra.mxu0 %v2432
        %v2544 = vpop.f32.mrf.mxu0
        %v2545 = vadd.f32 0.0, %v2544
        %2546 = vmatmul.f32.gmra.mxu0 %v2435
        %v2547 = vpop.f32.mrf.mxu0
        %v2548 = vadd.f32 0.0, %v2547
        %2549 = vmatmul.f32.gmra.mxu0 %v2438
        %v2550 = vpop.f32.mrf.mxu0
        %v2551 = vadd.f32 0.0, %v2550
        %2552 = vmatmul.f32.gmra.mxu0 %v2441
        %v2553 = vpop.f32.mrf.mxu0
        %v2554 = vadd.f32 0.0, %v2553
        %2555 = vmatmul.f32.gmra.mxu0 %v2444
        %v2556 = vpop.f32.mrf.mxu0
        %v2557 = vadd.f32 0.0, %v2556
        %2558 = vdwg.mxu0
        %v2559 = vadd.f32 %v2277, %v2464
        %v2560 = vadd.f32 %v2278, %v2467
        %v2561 = vadd.f32 %v2279, %v2470
        %v2562 = vadd.f32 %v2280, %v2473
        %v2563 = vadd.f32 %v2281, %v2476
        %v2564 = vadd.f32 %v2282, %v2479
        %v2565 = vadd.f32 %v2283, %v2482
        %v2566 = vadd.f32 %v2284, %v2485
        %v2567 = vadd.f32 %v2285, %v2488
        %v2568 = vadd.f32 %v2286, %v2491
        %v2569 = vadd.f32 %v2287, %v2494
        %v2570 = vadd.f32 %v2288, %v2497
        %v2571 = vadd.f32 %v2289, %v2500
        %v2572 = vadd.f32 %v2290, %v2503
        %v2573 = vadd.f32 %v2291, %v2506
        %v2574 = vadd.f32 %v2292, %v2509
        %v2575 = vadd.f32 %v2293, %v2512
        %v2576 = vadd.f32 %v2294, %v2515
        %v2577 = vadd.f32 %v2295, %v2518
        %v2578 = vadd.f32 %v2296, %v2521
        %v2579 = vadd.f32 %v2297, %v2524
        %v2580 = vadd.f32 %v2298, %v2527
        %v2581 = vadd.f32 %v2299, %v2530
        %v2582 = vadd.f32 %v2300, %v2533
        %v2583 = vadd.f32 %v2301, %v2536
        %v2584 = vadd.f32 %v2302, %v2539
        %v2585 = vadd.f32 %v2303, %v2542
        %v2586 = vadd.f32 %v2304, %v2545
        %v2587 = vadd.f32 %v2305, %v2548
        %v2588 = vadd.f32 %v2306, %v2551
        %v2589 = vadd.f32 %v2307, %v2554
        %v2590 = vadd.f32 %v2308, %v2557
        %v2591 = vld [vmem:[%s2026 + $0x2] sm:$0xff]
        %v2592 = vld [vmem:[%s2026 + $0xa] sm:$0xff]
        %v2593 = vld [vmem:[%s2026 + $0x1a] sm:$0xff]
        %v2594 = vld [vmem:[%s2026 + $0x22] sm:$0xff]
        %v2595 = vld [vmem:[%s2026 + $0x32] sm:$0xff]
        %v2596 = vld [vmem:[%s2026 + $0x3a] sm:$0xff]
        %v2597 = vld [vmem:[%s2026 + $0x4a] sm:$0xff]
        %v2598 = vld [vmem:[%s2026 + $0x52] sm:$0xff]
        %v2599 = vld [vmem:[%s2026 + $0x62] sm:$0xff]
        %v2600 = vld [vmem:[%s2026 + $0x6a] sm:$0xff]
        %v2601 = vld [vmem:[%s2026 + $0x7a] sm:$0xff]
        %v2602 = vld [vmem:[%s2026 + $0x82] sm:$0xff]
        %v2603 = vld [vmem:[%s2026 + $0x92] sm:$0xff]
        %v2604 = vld [vmem:[%s2026 + $0x9a] sm:$0xff]
        %v2605 = vld [vmem:[%s2026 + $0xaa] sm:$0xff]
        %v2606 = vld [vmem:[%s2026 + $0xb2] sm:$0xff]
        %v2607 = vld [vmem:[%s2026 + $0xc2] sm:$0xff]
        %v2608 = vld [vmem:[%s2026 + $0xca] sm:$0xff]
        %v2609 = vld [vmem:[%s2026 + $0xda] sm:$0xff]
        %v2610 = vld [vmem:[%s2026 + $0xe2] sm:$0xff]
        %v2611 = vld [vmem:[%s2026 + $0xf2] sm:$0xff]
        %v2612 = vld [vmem:[%s2026 + $0xfa] sm:$0xff]
        %v2613 = vld [vmem:[%s2026 + $0x10a] sm:$0xff]
        %v2614 = vld [vmem:[%s2026 + $0x112] sm:$0xff]
        %v2615 = vld [vmem:[%s2026 + $0x122] sm:$0xff]
        %v2616 = vld [vmem:[%s2026 + $0x12a] sm:$0xff]
        %v2617 = vld [vmem:[%s2026 + $0x13a] sm:$0xff]
        %v2618 = vld [vmem:[%s2026 + $0x142] sm:$0xff]
        %v2619 = vld [vmem:[%s2026 + $0x152] sm:$0xff]
        %v2620 = vld [vmem:[%s2026 + $0x15a] sm:$0xff]
        %v2621 = vld [vmem:[%s2026 + $0x16a] sm:$0xff]
        %v2622 = vld [vmem:[%s2026 + $0x172] sm:$0xff]
        %s2623 = scalar_lea.vmem [#allocation7], 512
        %v2624 = vld [vmem:[%s2623] sm:$0xff]
        %v2625 = vld [vmem:[%s2623 + $0x8] sm:$0xff]
        %v2626 = vld [vmem:[%s2623 + $0x10] sm:$0xff]
        %v2627 = vld [vmem:[%s2623 + $0x18] sm:$0xff]
        %v2628 = vld [vmem:[%s2623 + $0x20] sm:$0xff]
        %v2629 = vld [vmem:[%s2623 + $0x28] sm:$0xff]
        %v2630 = vld [vmem:[%s2623 + $0x30] sm:$0xff]
        %v2631 = vld [vmem:[%s2623 + $0x38] sm:$0xff]
        %v2633 = vsel %vm278, %v2591, 0
        %v2636 = vsel %vm278, %v2592, 0
        %v2639 = vsel %vm278, %v2593, 0
        %v2642 = vsel %vm278, %v2594, 0
        %v2645 = vsel %vm278, %v2595, 0
        %v2648 = vsel %vm278, %v2596, 0
        %v2651 = vsel %vm278, %v2597, 0
        %v2654 = vsel %vm278, %v2598, 0
        %v2657 = vsel %vm278, %v2599, 0
        %v2660 = vsel %vm278, %v2600, 0
        %v2663 = vsel %vm278, %v2601, 0
        %v2666 = vsel %vm278, %v2602, 0
        %v2669 = vsel %vm278, %v2603, 0
        %v2672 = vsel %vm278, %v2604, 0
        %v2675 = vsel %vm278, %v2605, 0
        %v2678 = vsel %vm278, %v2606, 0
        %v2681 = vsel %vm278, %v2607, 0
        %v2684 = vsel %vm278, %v2608, 0
        %v2687 = vsel %vm278, %v2609, 0
        %v2690 = vsel %vm278, %v2610, 0
        %v2693 = vsel %vm278, %v2611, 0
        %v2696 = vsel %vm278, %v2612, 0
        %v2699 = vsel %vm278, %v2613, 0
        %v2702 = vsel %vm278, %v2614, 0
        %v2705 = vsel %vm278, %v2615, 0
        %v2708 = vsel %vm278, %v2616, 0
        %v2711 = vsel %vm278, %v2617, 0
        %v2714 = vsel %vm278, %v2618, 0
        %v2717 = vsel %vm278, %v2619, 0
        %v2720 = vsel %vm278, %v2620, 0
        %v2723 = vsel %vm278, %v2621, 0
        %v2726 = vsel %vm278, %v2622, 0
        %2728 = vmatpush.msra.mxu0 0.0
        %2729 = vmatpush.msra.mxu0 0.0
        %2730 = vmatpush.msra.mxu0 0.0
        %2731 = vmatpush.msra.mxu0 0.0
        %2732 = vmatpush.msra.mxu0 0.0
        %2733 = vmatpush.msra.mxu0 0.0
        %2734 = vmatpush.msra.mxu0 0.0
        %2735 = vmatpush.msra.mxu0 0.0
        %2736 = vmatpush.msra.mxu0 %v2631
        %2737 = vmatpush.msra.mxu0 %v2630
        %2738 = vmatpush.msra.mxu0 %v2629
        %2739 = vmatpush.msra.mxu0 %v2628
        %2740 = vmatpush.msra.mxu0 %v2627
        %2741 = vmatpush.msra.mxu0 %v2626
        %2742 = vmatpush.msra.mxu0 %v2625
        %2743 = vmatpush.msra.mxu0 %v2624
        %2744 = vmatmul.f32.gmra.mxu0 %v2633
        %v2745 = vpop.f32.mrf.mxu0
        %v2746 = vadd.f32 0.0, %v2745
        %2747 = vmatmul.f32.gmra.mxu0 %v2636
        %v2748 = vpop.f32.mrf.mxu0
        %v2749 = vadd.f32 0.0, %v2748
        %2750 = vmatmul.f32.gmra.mxu0 %v2639
        %v2751 = vpop.f32.mrf.mxu0
        %v2752 = vadd.f32 0.0, %v2751
        %2753 = vmatmul.f32.gmra.mxu0 %v2642
        %v2754 = vpop.f32.mrf.mxu0
        %v2755 = vadd.f32 0.0, %v2754
        %2756 = vmatmul.f32.gmra.mxu0 %v2645
        %v2757 = vpop.f32.mrf.mxu0
        %v2758 = vadd.f32 0.0, %v2757
        %2759 = vmatmul.f32.gmra.mxu0 %v2648
        %v2760 = vpop.f32.mrf.mxu0
        %v2761 = vadd.f32 0.0, %v2760
        %2762 = vmatmul.f32.gmra.mxu0 %v2651
        %v2763 = vpop.f32.mrf.mxu0
        %v2764 = vadd.f32 0.0, %v2763
        %2765 = vmatmul.f32.gmra.mxu0 %v2654
        %v2766 = vpop.f32.mrf.mxu0
        %v2767 = vadd.f32 0.0, %v2766
        %2768 = vmatmul.f32.gmra.mxu0 %v2657
        %v2769 = vpop.f32.mrf.mxu0
        %v2770 = vadd.f32 0.0, %v2769
        %2771 = vmatmul.f32.gmra.mxu0 %v2660
        %v2772 = vpop.f32.mrf.mxu0
        %v2773 = vadd.f32 0.0, %v2772
        %2774 = vmatmul.f32.gmra.mxu0 %v2663
        %v2775 = vpop.f32.mrf.mxu0
        %v2776 = vadd.f32 0.0, %v2775
        %2777 = vmatmul.f32.gmra.mxu0 %v2666
        %v2778 = vpop.f32.mrf.mxu0
        %v2779 = vadd.f32 0.0, %v2778
        %2780 = vmatmul.f32.gmra.mxu0 %v2669
        %v2781 = vpop.f32.mrf.mxu0
        %v2782 = vadd.f32 0.0, %v2781
        %2783 = vmatmul.f32.gmra.mxu0 %v2672
        %v2784 = vpop.f32.mrf.mxu0
        %v2785 = vadd.f32 0.0, %v2784
        %2786 = vmatmul.f32.gmra.mxu0 %v2675
        %v2787 = vpop.f32.mrf.mxu0
        %v2788 = vadd.f32 0.0, %v2787
        %2789 = vmatmul.f32.gmra.mxu0 %v2678
        %v2790 = vpop.f32.mrf.mxu0
        %v2791 = vadd.f32 0.0, %v2790
        %2792 = vmatmul.f32.gmra.mxu0 %v2681
        %v2793 = vpop.f32.mrf.mxu0
        %v2794 = vadd.f32 0.0, %v2793
        %2795 = vmatmul.f32.gmra.mxu0 %v2684
        %v2796 = vpop.f32.mrf.mxu0
        %v2797 = vadd.f32 0.0, %v2796
        %2798 = vmatmul.f32.gmra.mxu0 %v2687
        %v2799 = vpop.f32.mrf.mxu0
        %v2800 = vadd.f32 0.0, %v2799
        %2801 = vmatmul.f32.gmra.mxu0 %v2690
        %v2802 = vpop.f32.mrf.mxu0
        %v2803 = vadd.f32 0.0, %v2802
        %2804 = vmatmul.f32.gmra.mxu0 %v2693
        %v2805 = vpop.f32.mrf.mxu0
        %v2806 = vadd.f32 0.0, %v2805
        %2807 = vmatmul.f32.gmra.mxu0 %v2696
        %v2808 = vpop.f32.mrf.mxu0
        %v2809 = vadd.f32 0.0, %v2808
        %2810 = vmatmul.f32.gmra.mxu0 %v2699
        %v2811 = vpop.f32.mrf.mxu0
        %v2812 = vadd.f32 0.0, %v2811
        %2813 = vmatmul.f32.gmra.mxu0 %v2702
        %v2814 = vpop.f32.mrf.mxu0
        %v2815 = vadd.f32 0.0, %v2814
        %2816 = vmatmul.f32.gmra.mxu0 %v2705
        %v2817 = vpop.f32.mrf.mxu0
        %v2818 = vadd.f32 0.0, %v2817
        %2819 = vmatmul.f32.gmra.mxu0 %v2708
        %v2820 = vpop.f32.mrf.mxu0
        %v2821 = vadd.f32 0.0, %v2820
        %2822 = vmatmul.f32.gmra.mxu0 %v2711
        %v2823 = vpop.f32.mrf.mxu0
        %v2824 = vadd.f32 0.0, %v2823
        %2825 = vmatmul.f32.gmra.mxu0 %v2714
        %v2826 = vpop.f32.mrf.mxu0
        %v2827 = vadd.f32 0.0, %v2826
        %2828 = vmatmul.f32.gmra.mxu0 %v2717
        %v2829 = vpop.f32.mrf.mxu0
        %v2830 = vadd.f32 0.0, %v2829
        %2831 = vmatmul.f32.gmra.mxu0 %v2720
        %v2832 = vpop.f32.mrf.mxu0
        %v2833 = vadd.f32 0.0, %v2832
        %2834 = vmatmul.f32.gmra.mxu0 %v2723
        %v2835 = vpop.f32.mrf.mxu0
        %v2836 = vadd.f32 0.0, %v2835
        %2837 = vmatmul.f32.gmra.mxu0 %v2726
        %v2838 = vpop.f32.mrf.mxu0
        %v2839 = vadd.f32 0.0, %v2838
        %2840 = vdwg.mxu0
        %v2841 = vadd.f32 %v2559, %v2746
        %v2842 = vadd.f32 %v2560, %v2749
        %v2843 = vadd.f32 %v2561, %v2752
        %v2844 = vadd.f32 %v2562, %v2755
        %v2845 = vadd.f32 %v2563, %v2758
        %v2846 = vadd.f32 %v2564, %v2761
        %v2847 = vadd.f32 %v2565, %v2764
        %v2848 = vadd.f32 %v2566, %v2767
        %v2849 = vadd.f32 %v2567, %v2770
        %v2850 = vadd.f32 %v2568, %v2773
        %v2851 = vadd.f32 %v2569, %v2776
        %v2852 = vadd.f32 %v2570, %v2779
        %v2853 = vadd.f32 %v2571, %v2782
        %v2854 = vadd.f32 %v2572, %v2785
        %v2855 = vadd.f32 %v2573, %v2788
        %v2856 = vadd.f32 %v2574, %v2791
        %v2857 = vadd.f32 %v2575, %v2794
        %v2858 = vadd.f32 %v2576, %v2797
        %v2859 = vadd.f32 %v2577, %v2800
        %v2860 = vadd.f32 %v2578, %v2803
        %v2861 = vadd.f32 %v2579, %v2806
        %v2862 = vadd.f32 %v2580, %v2809
        %v2863 = vadd.f32 %v2581, %v2812
        %v2864 = vadd.f32 %v2582, %v2815
        %v2865 = vadd.f32 %v2583, %v2818
        %v2866 = vadd.f32 %v2584, %v2821
        %v2867 = vadd.f32 %v2585, %v2824
        %v2868 = vadd.f32 %v2586, %v2827
        %v2869 = vadd.f32 %v2587, %v2830
        %v2870 = vadd.f32 %v2588, %v2833
        %v2871 = vadd.f32 %v2589, %v2836
        %v2872 = vadd.f32 %v2590, %v2839
        %v2873 = vld [vmem:[%s2] sm:$0x1]
        %v2875 = vperm.slane %v2873, 0
        %v2877 = vadd.f32 %v2841, %v2875
        %v2878 = vadd.f32 %v2842, %v2875
        %v2879 = vadd.f32 %v2843, %v2875
        %v2880 = vadd.f32 %v2844, %v2875
        %v2881 = vadd.f32 %v2845, %v2875
        %v2882 = vadd.f32 %v2846, %v2875
        %v2883 = vadd.f32 %v2847, %v2875
        %v2884 = vadd.f32 %v2848, %v2875
        %v2885 = vadd.f32 %v2849, %v2875
        %v2886 = vadd.f32 %v2850, %v2875
        %v2887 = vadd.f32 %v2851, %v2875
        %v2888 = vadd.f32 %v2852, %v2875
        %v2889 = vadd.f32 %v2853, %v2875
        %v2890 = vadd.f32 %v2854, %v2875
        %v2891 = vadd.f32 %v2855, %v2875
        %v2892 = vadd.f32 %v2856, %v2875
        %v2893 = vadd.f32 %v2857, %v2875
        %v2894 = vadd.f32 %v2858, %v2875
        %v2895 = vadd.f32 %v2859, %v2875
        %v2896 = vadd.f32 %v2860, %v2875
        %v2897 = vadd.f32 %v2861, %v2875
        %v2898 = vadd.f32 %v2862, %v2875
        %v2899 = vadd.f32 %v2863, %v2875
        %v2900 = vadd.f32 %v2864, %v2875
        %v2901 = vadd.f32 %v2865, %v2875
        %v2902 = vadd.f32 %v2866, %v2875
        %v2903 = vadd.f32 %v2867, %v2875
        %v2904 = vadd.f32 %v2868, %v2875
        %v2905 = vadd.f32 %v2869, %v2875
        %v2906 = vadd.f32 %v2870, %v2875
        %v2907 = vadd.f32 %v2871, %v2875
        %v2908 = vadd.f32 %v2872, %v2875
        %v2909 = vmax.f32 %v2877, 0.0
        %v2910 = vmax.f32 %v2878, 0.0
        %v2911 = vmax.f32 %v2879, 0.0
        %v2912 = vmax.f32 %v2880, 0.0
        %v2913 = vmax.f32 %v2881, 0.0
        %v2914 = vmax.f32 %v2882, 0.0
        %v2915 = vmax.f32 %v2883, 0.0
        %v2916 = vmax.f32 %v2884, 0.0
        %v2917 = vmax.f32 %v2885, 0.0
        %v2918 = vmax.f32 %v2886, 0.0
        %v2919 = vmax.f32 %v2887, 0.0
        %v2920 = vmax.f32 %v2888, 0.0
        %v2921 = vmax.f32 %v2889, 0.0
        %v2922 = vmax.f32 %v2890, 0.0
        %v2923 = vmax.f32 %v2891, 0.0
        %v2924 = vmax.f32 %v2892, 0.0
        %v2925 = vmax.f32 %v2893, 0.0
        %v2926 = vmax.f32 %v2894, 0.0
        %v2927 = vmax.f32 %v2895, 0.0
        %v2928 = vmax.f32 %v2896, 0.0
        %v2929 = vmax.f32 %v2897, 0.0
        %v2930 = vmax.f32 %v2898, 0.0
        %v2931 = vmax.f32 %v2899, 0.0
        %v2932 = vmax.f32 %v2900, 0.0
        %v2933 = vmax.f32 %v2901, 0.0
        %v2934 = vmax.f32 %v2902, 0.0
        %v2935 = vmax.f32 %v2903, 0.0
        %v2936 = vmax.f32 %v2904, 0.0
        %v2937 = vmax.f32 %v2905, 0.0
        %v2938 = vmax.f32 %v2906, 0.0
        %v2939 = vmax.f32 %v2907, 0.0
        %v2940 = vmax.f32 %v2908, 0.0
        %2941 = vst [vmem:[#allocation3] sm:$0xff] 0.0
        %2942 = vst [vmem:[#allocation3 + $0x8] sm:$0xff] 0.0
        %2943 = vst [vmem:[#allocation3 + $0x10] sm:$0x3] 0.0
        %2944 = vst [vmem:[#allocation3 + $0x18] sm:$0xff] 0.0
        %2945 = vst [vmem:[#allocation3 + $0x20] sm:$0xff] 0.0
        %2946 = vst [vmem:[#allocation3 + $0x28] sm:$0x3] 0.0
        %2947 = vst [vmem:[#allocation3 + $0x30] sm:$0xff] 0.0
        %2948 = vst [vmem:[#allocation3 + $0x38] sm:$0xff] 0.0
        %2949 = vst [vmem:[#allocation3 + $0x40] sm:$0x3] 0.0
        %2950 = vst [vmem:[#allocation3 + $0x48] sm:$0xff] 0.0
        %2951 = vst [vmem:[#allocation3 + $0x50] sm:$0xff] 0.0
        %2952 = vst [vmem:[#allocation3 + $0x58] sm:$0x3] 0.0
        %2953 = vst [vmem:[#allocation3 + $0x60] sm:$0xff] 0.0
        %2954 = vst [vmem:[#allocation3 + $0x68] sm:$0xff] 0.0
        %2955 = vst [vmem:[#allocation3 + $0x70] sm:$0x3] 0.0
        %2956 = vst [vmem:[#allocation3 + $0x78] sm:$0xff] 0.0
        %2957 = vst [vmem:[#allocation3 + $0x80] sm:$0xff] 0.0
        %2958 = vst [vmem:[#allocation3 + $0x88] sm:$0x3] 0.0
        %2959 = vst [vmem:[#allocation3 + $0x90] sm:$0xff] 0.0
        %2960 = vst [vmem:[#allocation3 + $0x98] sm:$0xff] 0.0
        %2961 = vst [vmem:[#allocation3 + $0xa0] sm:$0x3] 0.0
        %2962 = vst [vmem:[#allocation3 + $0xa8] sm:$0xff] 0.0
        %2963 = vst [vmem:[#allocation3 + $0xb0] sm:$0xff] 0.0
        %2964 = vst [vmem:[#allocation3 + $0xb8] sm:$0x3] 0.0
        %2965 = vst [vmem:[#allocation3 + $0xc0] sm:$0xff] 0.0
        %2966 = vst [vmem:[#allocation3 + $0xc8] sm:$0xff] 0.0
        %2967 = vst [vmem:[#allocation3 + $0xd0] sm:$0x3] 0.0
        %2968 = vst [vmem:[#allocation3 + $0xd8] sm:$0xff] 0.0
        %2969 = vst [vmem:[#allocation3 + $0xe0] sm:$0xff] 0.0
        %2970 = vst [vmem:[#allocation3 + $0xe8] sm:$0x3] 0.0
        %2971 = vst [vmem:[#allocation3 + $0xf0] sm:$0xff] 0.0
        %2972 = vst [vmem:[#allocation3 + $0xf8] sm:$0xff] 0.0
        %2973 = vst [vmem:[#allocation3 + $0x100] sm:$0x3] 0.0
        %2974 = vst [vmem:[#allocation3 + $0x108] sm:$0xff] 0.0
        %2975 = vst [vmem:[#allocation3 + $0x110] sm:$0xff] 0.0
        %2976 = vst [vmem:[#allocation3 + $0x118] sm:$0x3] 0.0
        %2977 = vst [vmem:[#allocation3 + $0x120] sm:$0xff] 0.0
        %2978 = vst [vmem:[#allocation3 + $0x128] sm:$0xff] 0.0
        %2979 = vst [vmem:[#allocation3 + $0x130] sm:$0x3] 0.0
        %2980 = vst [vmem:[#allocation3 + $0x138] sm:$0xff] 0.0
        %2981 = vst [vmem:[#allocation3 + $0x140] sm:$0xff] 0.0
        %2982 = vst [vmem:[#allocation3 + $0x148] sm:$0x3] 0.0
        %2983 = vst [vmem:[#allocation3 + $0x150] sm:$0xff] 0.0
        %2984 = vst [vmem:[#allocation3 + $0x158] sm:$0xff] 0.0
        %2985 = vst [vmem:[#allocation3 + $0x160] sm:$0x3] 0.0
        %2986 = vst [vmem:[#allocation3 + $0x168] sm:$0xff] 0.0
        %2987 = vst [vmem:[#allocation3 + $0x170] sm:$0xff] 0.0
        %2988 = vst [vmem:[#allocation3 + $0x178] sm:$0x3] 0.0
        %2989 = vst [vmem:[#allocation3 + $0x180] sm:$0xff] 0.0
        %2990 = vst [vmem:[#allocation3 + $0x188] sm:$0xff] 0.0
        %2991 = vst [vmem:[#allocation3 + $0x190] sm:$0x3] 0.0
        %2992 = vst [vmem:[#allocation3 + $0x198] sm:$0xff] 0.0
        %2993 = vst [vmem:[#allocation3 + $0x1a0] sm:$0xff] 0.0
        %2994 = vst [vmem:[#allocation3 + $0x1a8] sm:$0x3] 0.0
        %s2995 = scalar_lea.vmem [#allocation3], 24
        %2996 = vst [vmem:[%s2995 + $0x1] sm:$0xff] %v2909
        %2997 = vst [vmem:[%s2995 + $0x9] sm:$0xff] %v2910
        %2998 = vst [vmem:[%s2995 + $0x19] sm:$0xff] %v2911
        %2999 = vst [vmem:[%s2995 + $0x21] sm:$0xff] %v2912
        %3000 = vst [vmem:[%s2995 + $0x31] sm:$0xff] %v2913
        %3001 = vst [vmem:[%s2995 + $0x39] sm:$0xff] %v2914
        %3002 = vst [vmem:[%s2995 + $0x49] sm:$0xff] %v2915
        %3003 = vst [vmem:[%s2995 + $0x51] sm:$0xff] %v2916
        %3004 = vst [vmem:[%s2995 + $0x61] sm:$0xff] %v2917
        %3005 = vst [vmem:[%s2995 + $0x69] sm:$0xff] %v2918
        %3006 = vst [vmem:[%s2995 + $0x79] sm:$0xff] %v2919
        %3007 = vst [vmem:[%s2995 + $0x81] sm:$0xff] %v2920
        %3008 = vst [vmem:[%s2995 + $0x91] sm:$0xff] %v2921
        %3009 = vst [vmem:[%s2995 + $0x99] sm:$0xff] %v2922
        %3010 = vst [vmem:[%s2995 + $0xa9] sm:$0xff] %v2923
        %3011 = vst [vmem:[%s2995 + $0xb1] sm:$0xff] %v2924
        %3012 = vst [vmem:[%s2995 + $0xc1] sm:$0xff] %v2925
        %3013 = vst [vmem:[%s2995 + $0xc9] sm:$0xff] %v2926
        %3014 = vst [vmem:[%s2995 + $0xd9] sm:$0xff] %v2927
        %3015 = vst [vmem:[%s2995 + $0xe1] sm:$0xff] %v2928
        %3016 = vst [vmem:[%s2995 + $0xf1] sm:$0xff] %v2929
        %3017 = vst [vmem:[%s2995 + $0xf9] sm:$0xff] %v2930
        %3018 = vst [vmem:[%s2995 + $0x109] sm:$0xff] %v2931
        %3019 = vst [vmem:[%s2995 + $0x111] sm:$0xff] %v2932
        %3020 = vst [vmem:[%s2995 + $0x121] sm:$0xff] %v2933
        %3021 = vst [vmem:[%s2995 + $0x129] sm:$0xff] %v2934
        %3022 = vst [vmem:[%s2995 + $0x139] sm:$0xff] %v2935
        %3023 = vst [vmem:[%s2995 + $0x141] sm:$0xff] %v2936
        %3024 = vst [vmem:[%s2995 + $0x151] sm:$0xff] %v2937
        %3025 = vst [vmem:[%s2995 + $0x159] sm:$0xff] %v2938
        %3026 = vst [vmem:[%s2995 + $0x169] sm:$0xff] %v2939
        %3027 = vst [vmem:[%s2995 + $0x171] sm:$0xff] %v2940
        %v3028 = vld [vmem:[#allocation3] sm:$0xff]
        %v3029 = vld [vmem:[#allocation3 + $0x8] sm:$0xff]
        %v3030 = vld [vmem:[#allocation3 + $0x18] sm:$0xff]
        %v3031 = vld [vmem:[#allocation3 + $0x20] sm:$0xff]
        %v3032 = vld [vmem:[#allocation3 + $0x30] sm:$0xff]
        %v3033 = vld [vmem:[#allocation3 + $0x38] sm:$0xff]
        %v3034 = vld [vmem:[#allocation3 + $0x48] sm:$0xff]
        %v3035 = vld [vmem:[#allocation3 + $0x50] sm:$0xff]
        %v3036 = vld [vmem:[#allocation3 + $0x60] sm:$0xff]
        %v3037 = vld [vmem:[#allocation3 + $0x68] sm:$0xff]
        %v3038 = vld [vmem:[#allocation3 + $0x78] sm:$0xff]
        %v3039 = vld [vmem:[#allocation3 + $0x80] sm:$0xff]
        %v3040 = vld [vmem:[#allocation3 + $0x90] sm:$0xff]
        %v3041 = vld [vmem:[#allocation3 + $0x98] sm:$0xff]
        %v3042 = vld [vmem:[#allocation3 + $0xa8] sm:$0xff]
        %v3043 = vld [vmem:[#allocation3 + $0xb0] sm:$0xff]
        %v3044 = vld [vmem:[#allocation3 + $0xc0] sm:$0xff]
        %v3045 = vld [vmem:[#allocation3 + $0xc8] sm:$0xff]
        %v3046 = vld [vmem:[#allocation3 + $0xd8] sm:$0xff]
        %v3047 = vld [vmem:[#allocation3 + $0xe0] sm:$0xff]
        %v3048 = vld [vmem:[#allocation3 + $0xf0] sm:$0xff]
        %v3049 = vld [vmem:[#allocation3 + $0xf8] sm:$0xff]
        %v3050 = vld [vmem:[#allocation3 + $0x108] sm:$0xff]
        %v3051 = vld [vmem:[#allocation3 + $0x110] sm:$0xff]
        %v3052 = vld [vmem:[#allocation3 + $0x120] sm:$0xff]
        %v3053 = vld [vmem:[#allocation3 + $0x128] sm:$0xff]
        %v3054 = vld [vmem:[#allocation3 + $0x138] sm:$0xff]
        %v3055 = vld [vmem:[#allocation3 + $0x140] sm:$0xff]
        %v3056 = vld [vmem:[#allocation3 + $0x150] sm:$0xff]
        %v3057 = vld [vmem:[#allocation3 + $0x158] sm:$0xff]
        %v3058 = vld [vmem:[#allocation3 + $0x168] sm:$0xff]
        %v3059 = vld [vmem:[#allocation3 + $0x170] sm:$0xff]
        %v3060 = vld [vmem:[#allocation9] sm:$0xff]
        %v3061 = vld [vmem:[#allocation9 + $0x8] sm:$0xff]
        %v3062 = vld [vmem:[#allocation9 + $0x10] sm:$0xff]
        %v3063 = vld [vmem:[#allocation9 + $0x18] sm:$0xff]
        %v3064 = vld [vmem:[#allocation9 + $0x20] sm:$0xff]
        %v3065 = vld [vmem:[#allocation9 + $0x28] sm:$0xff]
        %v3066 = vld [vmem:[#allocation9 + $0x30] sm:$0xff]
        %v3067 = vld [vmem:[#allocation9 + $0x38] sm:$0xff]
        %v3068 = vld [vmem:[#allocation9 + $0x40] sm:$0xff]
        %v3069 = vld [vmem:[#allocation9 + $0x48] sm:$0xff]
        %v3070 = vld [vmem:[#allocation9 + $0x50] sm:$0xff]
        %v3071 = vld [vmem:[#allocation9 + $0x58] sm:$0xff]
        %v3072 = vld [vmem:[#allocation9 + $0x60] sm:$0xff]
        %v3073 = vld [vmem:[#allocation9 + $0x68] sm:$0xff]
        %v3074 = vld [vmem:[#allocation9 + $0x70] sm:$0xff]
        %v3075 = vld [vmem:[#allocation9 + $0x78] sm:$0xff]
        %v3076 = vld [vmem:[#allocation3 + $0x1] sm:$0xff]
        %v3077 = vld [vmem:[#allocation3 + $0x9] sm:$0xff]
        %v3078 = vld [vmem:[#allocation3 + $0x19] sm:$0xff]
        %v3079 = vld [vmem:[#allocation3 + $0x21] sm:$0xff]
        %v3080 = vld [vmem:[#allocation3 + $0x31] sm:$0xff]
        %v3081 = vld [vmem:[#allocation3 + $0x39] sm:$0xff]
        %v3082 = vld [vmem:[#allocation3 + $0x49] sm:$0xff]
        %v3083 = vld [vmem:[#allocation3 + $0x51] sm:$0xff]
        %v3084 = vld [vmem:[#allocation3 + $0x61] sm:$0xff]
        %v3085 = vld [vmem:[#allocation3 + $0x69] sm:$0xff]
        %v3086 = vld [vmem:[#allocation3 + $0x79] sm:$0xff]
        %v3087 = vld [vmem:[#allocation3 + $0x81] sm:$0xff]
        %v3088 = vld [vmem:[#allocation3 + $0x91] sm:$0xff]
        %v3089 = vld [vmem:[#allocation3 + $0x99] sm:$0xff]
        %v3090 = vld [vmem:[#allocation3 + $0xa9] sm:$0xff]
        %v3091 = vld [vmem:[#allocation3 + $0xb1] sm:$0xff]
        %v3092 = vld [vmem:[#allocation3 + $0xc1] sm:$0xff]
        %v3093 = vld [vmem:[#allocation3 + $0xc9] sm:$0xff]
        %v3094 = vld [vmem:[#allocation3 + $0xd9] sm:$0xff]
        %v3095 = vld [vmem:[#allocation3 + $0xe1] sm:$0xff]
        %v3096 = vld [vmem:[#allocation3 + $0xf1] sm:$0xff]
        %v3097 = vld [vmem:[#allocation3 + $0xf9] sm:$0xff]
        %v3098 = vld [vmem:[#allocation3 + $0x109] sm:$0xff]
        %v3099 = vld [vmem:[#allocation3 + $0x111] sm:$0xff]
        %v3100 = vld [vmem:[#allocation3 + $0x121] sm:$0xff]
        %v3101 = vld [vmem:[#allocation3 + $0x129] sm:$0xff]
        %v3102 = vld [vmem:[#allocation3 + $0x139] sm:$0xff]
        %v3103 = vld [vmem:[#allocation3 + $0x141] sm:$0xff]
        %v3104 = vld [vmem:[#allocation3 + $0x151] sm:$0xff]
        %v3105 = vld [vmem:[#allocation3 + $0x159] sm:$0xff]
        %v3106 = vld [vmem:[#allocation3 + $0x169] sm:$0xff]
        %v3107 = vld [vmem:[#allocation3 + $0x171] sm:$0xff]
        %s3108 = scalar_lea.vmem [#allocation9], 128
        %v3109 = vld [vmem:[%s3108] sm:$0xff]
        %v3110 = vld [vmem:[%s3108 + $0x8] sm:$0xff]
        %v3111 = vld [vmem:[%s3108 + $0x10] sm:$0xff]
        %v3112 = vld [vmem:[%s3108 + $0x18] sm:$0xff]
        %v3113 = vld [vmem:[%s3108 + $0x20] sm:$0xff]
        %v3114 = vld [vmem:[%s3108 + $0x28] sm:$0xff]
        %v3115 = vld [vmem:[%s3108 + $0x30] sm:$0xff]
        %v3116 = vld [vmem:[%s3108 + $0x38] sm:$0xff]
        %v3117 = vld [vmem:[%s3108 + $0x40] sm:$0xff]
        %v3118 = vld [vmem:[%s3108 + $0x48] sm:$0xff]
        %v3119 = vld [vmem:[%s3108 + $0x50] sm:$0xff]
        %v3120 = vld [vmem:[%s3108 + $0x58] sm:$0xff]
        %v3121 = vld [vmem:[%s3108 + $0x60] sm:$0xff]
        %v3122 = vld [vmem:[%s3108 + $0x68] sm:$0xff]
        %v3123 = vld [vmem:[%s3108 + $0x70] sm:$0xff]
        %v3124 = vld [vmem:[%s3108 + $0x78] sm:$0xff]
        %3125 = vmatpush.msra.mxu0 %v3124
        %3126 = vmatpush.msra.mxu0 %v3123
        %3127 = vmatpush.msra.mxu0 %v3122
        %3128 = vmatpush.msra.mxu0 %v3121
        %3129 = vmatpush.msra.mxu0 %v3120
        %3130 = vmatpush.msra.mxu0 %v3119
        %3131 = vmatpush.msra.mxu0 %v3118
        %3132 = vmatpush.msra.mxu0 %v3117
        %3133 = vmatpush.msra.mxu0 %v3116
        %3134 = vmatpush.msra.mxu0 %v3115
        %3135 = vmatpush.msra.mxu0 %v3114
        %3136 = vmatpush.msra.mxu0 %v3113
        %3137 = vmatpush.msra.mxu0 %v3112
        %3138 = vmatpush.msra.mxu0 %v3111
        %3139 = vmatpush.msra.mxu0 %v3110
        %3140 = vmatpush.msra.mxu0 %v3109
        %3141 = vmatmul.f32.gmra.mxu0 %v3076
        %v3142 = vpop.f32.mrf.mxu0
        %v3143 = vadd.f32 0.0, %v3142
        %3144 = vmatmul.f32.gmra.mxu0 %v3077
        %v3145 = vpop.f32.mrf.mxu0
        %v3146 = vadd.f32 0.0, %v3145
        %3147 = vmatmul.f32.gmra.mxu0 %v3078
        %v3148 = vpop.f32.mrf.mxu0
        %v3149 = vadd.f32 0.0, %v3148
        %3150 = vmatmul.f32.gmra.mxu0 %v3079
        %v3151 = vpop.f32.mrf.mxu0
        %v3152 = vadd.f32 0.0, %v3151
        %3153 = vmatmul.f32.gmra.mxu0 %v3080
        %v3154 = vpop.f32.mrf.mxu0
        %v3155 = vadd.f32 0.0, %v3154
        %3156 = vmatmul.f32.gmra.mxu0 %v3081
        %v3157 = vpop.f32.mrf.mxu0
        %v3158 = vadd.f32 0.0, %v3157
        %3159 = vmatmul.f32.gmra.mxu0 %v3082
        %v3160 = vpop.f32.mrf.mxu0
        %v3161 = vadd.f32 0.0, %v3160
        %3162 = vmatmul.f32.gmra.mxu0 %v3083
        %v3163 = vpop.f32.mrf.mxu0
        %v3164 = vadd.f32 0.0, %v3163
        %3165 = vmatmul.f32.gmra.mxu0 %v3084
        %v3166 = vpop.f32.mrf.mxu0
        %v3167 = vadd.f32 0.0, %v3166
        %3168 = vmatmul.f32.gmra.mxu0 %v3085
        %v3169 = vpop.f32.mrf.mxu0
        %v3170 = vadd.f32 0.0, %v3169
        %3171 = vmatmul.f32.gmra.mxu0 %v3086
        %v3172 = vpop.f32.mrf.mxu0
        %v3173 = vadd.f32 0.0, %v3172
        %3174 = vmatmul.f32.gmra.mxu0 %v3087
        %v3175 = vpop.f32.mrf.mxu0
        %v3176 = vadd.f32 0.0, %v3175
        %3177 = vmatmul.f32.gmra.mxu0 %v3088
        %v3178 = vpop.f32.mrf.mxu0
        %v3179 = vadd.f32 0.0, %v3178
        %3180 = vmatmul.f32.gmra.mxu0 %v3089
        %v3181 = vpop.f32.mrf.mxu0
        %v3182 = vadd.f32 0.0, %v3181
        %3183 = vmatmul.f32.gmra.mxu0 %v3090
        %v3184 = vpop.f32.mrf.mxu0
        %v3185 = vadd.f32 0.0, %v3184
        %3186 = vmatmul.f32.gmra.mxu0 %v3091
        %v3187 = vpop.f32.mrf.mxu0
        %v3188 = vadd.f32 0.0, %v3187
        %3189 = vmatmul.f32.gmra.mxu0 %v3092
        %v3190 = vpop.f32.mrf.mxu0
        %v3191 = vadd.f32 0.0, %v3190
        %3192 = vmatmul.f32.gmra.mxu0 %v3093
        %v3193 = vpop.f32.mrf.mxu0
        %v3194 = vadd.f32 0.0, %v3193
        %3195 = vmatmul.f32.gmra.mxu0 %v3094
        %v3196 = vpop.f32.mrf.mxu0
        %v3197 = vadd.f32 0.0, %v3196
        %3198 = vmatmul.f32.gmra.mxu0 %v3095
        %v3199 = vpop.f32.mrf.mxu0
        %v3200 = vadd.f32 0.0, %v3199
        %3201 = vmatmul.f32.gmra.mxu0 %v3096
        %v3202 = vpop.f32.mrf.mxu0
        %v3203 = vadd.f32 0.0, %v3202
        %3204 = vmatmul.f32.gmra.mxu0 %v3097
        %v3205 = vpop.f32.mrf.mxu0
        %v3206 = vadd.f32 0.0, %v3205
        %3207 = vmatmul.f32.gmra.mxu0 %v3098
        %v3208 = vpop.f32.mrf.mxu0
        %v3209 = vadd.f32 0.0, %v3208
        %3210 = vmatmul.f32.gmra.mxu0 %v3099
        %v3211 = vpop.f32.mrf.mxu0
        %v3212 = vadd.f32 0.0, %v3211
        %3213 = vmatmul.f32.gmra.mxu0 %v3100
        %v3214 = vpop.f32.mrf.mxu0
        %v3215 = vadd.f32 0.0, %v3214
        %3216 = vmatmul.f32.gmra.mxu0 %v3101
        %v3217 = vpop.f32.mrf.mxu0
        %v3218 = vadd.f32 0.0, %v3217
        %3219 = vmatmul.f32.gmra.mxu0 %v3102
        %v3220 = vpop.f32.mrf.mxu0
        %v3221 = vadd.f32 0.0, %v3220
        %3222 = vmatmul.f32.gmra.mxu0 %v3103
        %v3223 = vpop.f32.mrf.mxu0
        %v3224 = vadd.f32 0.0, %v3223
        %3225 = vmatmul.f32.gmra.mxu0 %v3104
        %v3226 = vpop.f32.mrf.mxu0
        %v3227 = vadd.f32 0.0, %v3226
        %3228 = vmatmul.f32.gmra.mxu0 %v3105
        %v3229 = vpop.f32.mrf.mxu0
        %v3230 = vadd.f32 0.0, %v3229
        %3231 = vmatmul.f32.gmra.mxu0 %v3106
        %v3232 = vpop.f32.mrf.mxu0
        %v3233 = vadd.f32 0.0, %v3232
        %3234 = vmatmul.f32.gmra.mxu0 %v3107
        %v3235 = vpop.f32.mrf.mxu0
        %v3236 = vadd.f32 0.0, %v3235
        %3237 = vdwg.mxu0
        %3238 = vmatpush.msra.mxu0 %v3075
        %3239 = vmatpush.msra.mxu0 %v3074
        %3240 = vmatpush.msra.mxu0 %v3073
        %3241 = vmatpush.msra.mxu0 %v3072
        %3242 = vmatpush.msra.mxu0 %v3071
        %3243 = vmatpush.msra.mxu0 %v3070
        %3244 = vmatpush.msra.mxu0 %v3069
        %3245 = vmatpush.msra.mxu0 %v3068
        %3246 = vmatpush.msra.mxu0 %v3067
        %3247 = vmatpush.msra.mxu0 %v3066
        %3248 = vmatpush.msra.mxu0 %v3065
        %3249 = vmatpush.msra.mxu0 %v3064
        %3250 = vmatpush.msra.mxu0 %v3063
        %3251 = vmatpush.msra.mxu0 %v3062
        %3252 = vmatpush.msra.mxu0 %v3061
        %3253 = vmatpush.msra.mxu0 %v3060
        %3254 = vmatmul.f32.gmra.mxu0 %v3028
        %v3255 = vpop.f32.mrf.mxu0
        %v3256 = vadd.f32 %v3143, %v3255
        %3257 = vmatmul.f32.gmra.mxu0 %v3029
        %v3258 = vpop.f32.mrf.mxu0
        %v3259 = vadd.f32 %v3146, %v3258
        %3260 = vmatmul.f32.gmra.mxu0 %v3030
        %v3261 = vpop.f32.mrf.mxu0
        %v3262 = vadd.f32 %v3149, %v3261
        %3263 = vmatmul.f32.gmra.mxu0 %v3031
        %v3264 = vpop.f32.mrf.mxu0
        %v3265 = vadd.f32 %v3152, %v3264
        %3266 = vmatmul.f32.gmra.mxu0 %v3032
        %v3267 = vpop.f32.mrf.mxu0
        %v3268 = vadd.f32 %v3155, %v3267
        %3269 = vmatmul.f32.gmra.mxu0 %v3033
        %v3270 = vpop.f32.mrf.mxu0
        %v3271 = vadd.f32 %v3158, %v3270
        %3272 = vmatmul.f32.gmra.mxu0 %v3034
        %v3273 = vpop.f32.mrf.mxu0
        %v3274 = vadd.f32 %v3161, %v3273
        %3275 = vmatmul.f32.gmra.mxu0 %v3035
        %v3276 = vpop.f32.mrf.mxu0
        %v3277 = vadd.f32 %v3164, %v3276
        %3278 = vmatmul.f32.gmra.mxu0 %v3036
        %v3279 = vpop.f32.mrf.mxu0
        %v3280 = vadd.f32 %v3167, %v3279
        %3281 = vmatmul.f32.gmra.mxu0 %v3037
        %v3282 = vpop.f32.mrf.mxu0
        %v3283 = vadd.f32 %v3170, %v3282
        %3284 = vmatmul.f32.gmra.mxu0 %v3038
        %v3285 = vpop.f32.mrf.mxu0
        %v3286 = vadd.f32 %v3173, %v3285
        %3287 = vmatmul.f32.gmra.mxu0 %v3039
        %v3288 = vpop.f32.mrf.mxu0
        %v3289 = vadd.f32 %v3176, %v3288
        %3290 = vmatmul.f32.gmra.mxu0 %v3040
        %v3291 = vpop.f32.mrf.mxu0
        %v3292 = vadd.f32 %v3179, %v3291
        %3293 = vmatmul.f32.gmra.mxu0 %v3041
        %v3294 = vpop.f32.mrf.mxu0
        %v3295 = vadd.f32 %v3182, %v3294
        %3296 = vmatmul.f32.gmra.mxu0 %v3042
        %v3297 = vpop.f32.mrf.mxu0
        %v3298 = vadd.f32 %v3185, %v3297
        %3299 = vmatmul.f32.gmra.mxu0 %v3043
        %v3300 = vpop.f32.mrf.mxu0
        %v3301 = vadd.f32 %v3188, %v3300
        %3302 = vmatmul.f32.gmra.mxu0 %v3044
        %v3303 = vpop.f32.mrf.mxu0
        %v3304 = vadd.f32 %v3191, %v3303
        %3305 = vmatmul.f32.gmra.mxu0 %v3045
        %v3306 = vpop.f32.mrf.mxu0
        %v3307 = vadd.f32 %v3194, %v3306
        %3308 = vmatmul.f32.gmra.mxu0 %v3046
        %v3309 = vpop.f32.mrf.mxu0
        %v3310 = vadd.f32 %v3197, %v3309
        %3311 = vmatmul.f32.gmra.mxu0 %v3047
        %v3312 = vpop.f32.mrf.mxu0
        %v3313 = vadd.f32 %v3200, %v3312
        %3314 = vmatmul.f32.gmra.mxu0 %v3048
        %v3315 = vpop.f32.mrf.mxu0
        %v3316 = vadd.f32 %v3203, %v3315
        %3317 = vmatmul.f32.gmra.mxu0 %v3049
        %v3318 = vpop.f32.mrf.mxu0
        %v3319 = vadd.f32 %v3206, %v3318
        %3320 = vmatmul.f32.gmra.mxu0 %v3050
        %v3321 = vpop.f32.mrf.mxu0
        %v3322 = vadd.f32 %v3209, %v3321
        %3323 = vmatmul.f32.gmra.mxu0 %v3051
        %v3324 = vpop.f32.mrf.mxu0
        %v3325 = vadd.f32 %v3212, %v3324
        %3326 = vmatmul.f32.gmra.mxu0 %v3052
        %v3327 = vpop.f32.mrf.mxu0
        %v3328 = vadd.f32 %v3215, %v3327
        %3329 = vmatmul.f32.gmra.mxu0 %v3053
        %v3330 = vpop.f32.mrf.mxu0
        %v3331 = vadd.f32 %v3218, %v3330
        %3332 = vmatmul.f32.gmra.mxu0 %v3054
        %v3333 = vpop.f32.mrf.mxu0
        %v3334 = vadd.f32 %v3221, %v3333
        %3335 = vmatmul.f32.gmra.mxu0 %v3055
        %v3336 = vpop.f32.mrf.mxu0
        %v3337 = vadd.f32 %v3224, %v3336
        %3338 = vmatmul.f32.gmra.mxu0 %v3056
        %v3339 = vpop.f32.mrf.mxu0
        %v3340 = vadd.f32 %v3227, %v3339
        %3341 = vmatmul.f32.gmra.mxu0 %v3057
        %v3342 = vpop.f32.mrf.mxu0
        %v3343 = vadd.f32 %v3230, %v3342
        %3344 = vmatmul.f32.gmra.mxu0 %v3058
        %v3345 = vpop.f32.mrf.mxu0
        %v3346 = vadd.f32 %v3233, %v3345
        %3347 = vmatmul.f32.gmra.mxu0 %v3059
        %v3348 = vpop.f32.mrf.mxu0
        %v3349 = vadd.f32 %v3236, %v3348
        %3350 = vdwg.mxu0
        %v3351 = vld [vmem:[#allocation3 + $0x2] sm:$0xff]
        %v3352 = vld [vmem:[#allocation3 + $0xa] sm:$0xff]
        %v3353 = vld [vmem:[#allocation3 + $0x1a] sm:$0xff]
        %v3354 = vld [vmem:[#allocation3 + $0x22] sm:$0xff]
        %v3355 = vld [vmem:[#allocation3 + $0x32] sm:$0xff]
        %v3356 = vld [vmem:[#allocation3 + $0x3a] sm:$0xff]
        %v3357 = vld [vmem:[#allocation3 + $0x4a] sm:$0xff]
        %v3358 = vld [vmem:[#allocation3 + $0x52] sm:$0xff]
        %v3359 = vld [vmem:[#allocation3 + $0x62] sm:$0xff]
        %v3360 = vld [vmem:[#allocation3 + $0x6a] sm:$0xff]
        %v3361 = vld [vmem:[#allocation3 + $0x7a] sm:$0xff]
        %v3362 = vld [vmem:[#allocation3 + $0x82] sm:$0xff]
        %v3363 = vld [vmem:[#allocation3 + $0x92] sm:$0xff]
        %v3364 = vld [vmem:[#allocation3 + $0x9a] sm:$0xff]
        %v3365 = vld [vmem:[#allocation3 + $0xaa] sm:$0xff]
        %v3366 = vld [vmem:[#allocation3 + $0xb2] sm:$0xff]
        %v3367 = vld [vmem:[#allocation3 + $0xc2] sm:$0xff]
        %v3368 = vld [vmem:[#allocation3 + $0xca] sm:$0xff]
        %v3369 = vld [vmem:[#allocation3 + $0xda] sm:$0xff]
        %v3370 = vld [vmem:[#allocation3 + $0xe2] sm:$0xff]
        %v3371 = vld [vmem:[#allocation3 + $0xf2] sm:$0xff]
        %v3372 = vld [vmem:[#allocation3 + $0xfa] sm:$0xff]
        %v3373 = vld [vmem:[#allocation3 + $0x10a] sm:$0xff]
        %v3374 = vld [vmem:[#allocation3 + $0x112] sm:$0xff]
        %v3375 = vld [vmem:[#allocation3 + $0x122] sm:$0xff]
        %v3376 = vld [vmem:[#allocation3 + $0x12a] sm:$0xff]
        %v3377 = vld [vmem:[#allocation3 + $0x13a] sm:$0xff]
        %v3378 = vld [vmem:[#allocation3 + $0x142] sm:$0xff]
        %v3379 = vld [vmem:[#allocation3 + $0x152] sm:$0xff]
        %v3380 = vld [vmem:[#allocation3 + $0x15a] sm:$0xff]
        %v3381 = vld [vmem:[#allocation3 + $0x16a] sm:$0xff]
        %v3382 = vld [vmem:[#allocation3 + $0x172] sm:$0xff]
        %s3383 = scalar_lea.vmem [#allocation9], 256
        %v3384 = vld [vmem:[%s3383] sm:$0xff]
        %v3385 = vld [vmem:[%s3383 + $0x8] sm:$0xff]
        %v3386 = vld [vmem:[%s3383 + $0x10] sm:$0xff]
        %v3387 = vld [vmem:[%s3383 + $0x18] sm:$0xff]
        %v3388 = vld [vmem:[%s3383 + $0x20] sm:$0xff]
        %v3389 = vld [vmem:[%s3383 + $0x28] sm:$0xff]
        %v3390 = vld [vmem:[%s3383 + $0x30] sm:$0xff]
        %v3391 = vld [vmem:[%s3383 + $0x38] sm:$0xff]
        %v3392 = vld [vmem:[%s3383 + $0x40] sm:$0xff]
        %v3393 = vld [vmem:[%s3383 + $0x48] sm:$0xff]
        %v3394 = vld [vmem:[%s3383 + $0x50] sm:$0xff]
        %v3395 = vld [vmem:[%s3383 + $0x58] sm:$0xff]
        %v3396 = vld [vmem:[%s3383 + $0x60] sm:$0xff]
        %v3397 = vld [vmem:[%s3383 + $0x68] sm:$0xff]
        %v3398 = vld [vmem:[%s3383 + $0x70] sm:$0xff]
        %v3399 = vld [vmem:[%s3383 + $0x78] sm:$0xff]
        %3400 = vmatpush.msra.mxu0 %v3399
        %3401 = vmatpush.msra.mxu0 %v3398
        %3402 = vmatpush.msra.mxu0 %v3397
        %3403 = vmatpush.msra.mxu0 %v3396
        %3404 = vmatpush.msra.mxu0 %v3395
        %3405 = vmatpush.msra.mxu0 %v3394
        %3406 = vmatpush.msra.mxu0 %v3393
        %3407 = vmatpush.msra.mxu0 %v3392
        %3408 = vmatpush.msra.mxu0 %v3391
        %3409 = vmatpush.msra.mxu0 %v3390
        %3410 = vmatpush.msra.mxu0 %v3389
        %3411 = vmatpush.msra.mxu0 %v3388
        %3412 = vmatpush.msra.mxu0 %v3387
        %3413 = vmatpush.msra.mxu0 %v3386
        %3414 = vmatpush.msra.mxu0 %v3385
        %3415 = vmatpush.msra.mxu0 %v3384
        %3416 = vmatmul.f32.gmra.mxu0 %v3351
        %v3417 = vpop.f32.mrf.mxu0
        %v3418 = vadd.f32 0.0, %v3417
        %3419 = vmatmul.f32.gmra.mxu0 %v3352
        %v3420 = vpop.f32.mrf.mxu0
        %v3421 = vadd.f32 0.0, %v3420
        %3422 = vmatmul.f32.gmra.mxu0 %v3353
        %v3423 = vpop.f32.mrf.mxu0
        %v3424 = vadd.f32 0.0, %v3423
        %3425 = vmatmul.f32.gmra.mxu0 %v3354
        %v3426 = vpop.f32.mrf.mxu0
        %v3427 = vadd.f32 0.0, %v3426
        %3428 = vmatmul.f32.gmra.mxu0 %v3355
        %v3429 = vpop.f32.mrf.mxu0
        %v3430 = vadd.f32 0.0, %v3429
        %3431 = vmatmul.f32.gmra.mxu0 %v3356
        %v3432 = vpop.f32.mrf.mxu0
        %v3433 = vadd.f32 0.0, %v3432
        %3434 = vmatmul.f32.gmra.mxu0 %v3357
        %v3435 = vpop.f32.mrf.mxu0
        %v3436 = vadd.f32 0.0, %v3435
        %3437 = vmatmul.f32.gmra.mxu0 %v3358
        %v3438 = vpop.f32.mrf.mxu0
        %v3439 = vadd.f32 0.0, %v3438
        %3440 = vmatmul.f32.gmra.mxu0 %v3359
        %v3441 = vpop.f32.mrf.mxu0
        %v3442 = vadd.f32 0.0, %v3441
        %3443 = vmatmul.f32.gmra.mxu0 %v3360
        %v3444 = vpop.f32.mrf.mxu0
        %v3445 = vadd.f32 0.0, %v3444
        %3446 = vmatmul.f32.gmra.mxu0 %v3361
        %v3447 = vpop.f32.mrf.mxu0
        %v3448 = vadd.f32 0.0, %v3447
        %3449 = vmatmul.f32.gmra.mxu0 %v3362
        %v3450 = vpop.f32.mrf.mxu0
        %v3451 = vadd.f32 0.0, %v3450
        %3452 = vmatmul.f32.gmra.mxu0 %v3363
        %v3453 = vpop.f32.mrf.mxu0
        %v3454 = vadd.f32 0.0, %v3453
        %3455 = vmatmul.f32.gmra.mxu0 %v3364
        %v3456 = vpop.f32.mrf.mxu0
        %v3457 = vadd.f32 0.0, %v3456
        %3458 = vmatmul.f32.gmra.mxu0 %v3365
        %v3459 = vpop.f32.mrf.mxu0
        %v3460 = vadd.f32 0.0, %v3459
        %3461 = vmatmul.f32.gmra.mxu0 %v3366
        %v3462 = vpop.f32.mrf.mxu0
        %v3463 = vadd.f32 0.0, %v3462
        %3464 = vmatmul.f32.gmra.mxu0 %v3367
        %v3465 = vpop.f32.mrf.mxu0
        %v3466 = vadd.f32 0.0, %v3465
        %3467 = vmatmul.f32.gmra.mxu0 %v3368
        %v3468 = vpop.f32.mrf.mxu0
        %v3469 = vadd.f32 0.0, %v3468
        %3470 = vmatmul.f32.gmra.mxu0 %v3369
        %v3471 = vpop.f32.mrf.mxu0
        %v3472 = vadd.f32 0.0, %v3471
        %3473 = vmatmul.f32.gmra.mxu0 %v3370
        %v3474 = vpop.f32.mrf.mxu0
        %v3475 = vadd.f32 0.0, %v3474
        %3476 = vmatmul.f32.gmra.mxu0 %v3371
        %v3477 = vpop.f32.mrf.mxu0
        %v3478 = vadd.f32 0.0, %v3477
        %3479 = vmatmul.f32.gmra.mxu0 %v3372
        %v3480 = vpop.f32.mrf.mxu0
        %v3481 = vadd.f32 0.0, %v3480
        %3482 = vmatmul.f32.gmra.mxu0 %v3373
        %v3483 = vpop.f32.mrf.mxu0
        %v3484 = vadd.f32 0.0, %v3483
        %3485 = vmatmul.f32.gmra.mxu0 %v3374
        %v3486 = vpop.f32.mrf.mxu0
        %v3487 = vadd.f32 0.0, %v3486
        %3488 = vmatmul.f32.gmra.mxu0 %v3375
        %v3489 = vpop.f32.mrf.mxu0
        %v3490 = vadd.f32 0.0, %v3489
        %3491 = vmatmul.f32.gmra.mxu0 %v3376
        %v3492 = vpop.f32.mrf.mxu0
        %v3493 = vadd.f32 0.0, %v3492
        %3494 = vmatmul.f32.gmra.mxu0 %v3377
        %v3495 = vpop.f32.mrf.mxu0
        %v3496 = vadd.f32 0.0, %v3495
        %3497 = vmatmul.f32.gmra.mxu0 %v3378
        %v3498 = vpop.f32.mrf.mxu0
        %v3499 = vadd.f32 0.0, %v3498
        %3500 = vmatmul.f32.gmra.mxu0 %v3379
        %v3501 = vpop.f32.mrf.mxu0
        %v3502 = vadd.f32 0.0, %v3501
        %3503 = vmatmul.f32.gmra.mxu0 %v3380
        %v3504 = vpop.f32.mrf.mxu0
        %v3505 = vadd.f32 0.0, %v3504
        %3506 = vmatmul.f32.gmra.mxu0 %v3381
        %v3507 = vpop.f32.mrf.mxu0
        %v3508 = vadd.f32 0.0, %v3507
        %3509 = vmatmul.f32.gmra.mxu0 %v3382
        %v3510 = vpop.f32.mrf.mxu0
        %v3511 = vadd.f32 0.0, %v3510
        %3512 = vdwg.mxu0
        %v3513 = vadd.f32 %v3256, %v3418
        %v3514 = vadd.f32 %v3259, %v3421
        %v3515 = vadd.f32 %v3262, %v3424
        %v3516 = vadd.f32 %v3265, %v3427
        %v3517 = vadd.f32 %v3268, %v3430
        %v3518 = vadd.f32 %v3271, %v3433
        %v3519 = vadd.f32 %v3274, %v3436
        %v3520 = vadd.f32 %v3277, %v3439
        %v3521 = vadd.f32 %v3280, %v3442
        %v3522 = vadd.f32 %v3283, %v3445
        %v3523 = vadd.f32 %v3286, %v3448
        %v3524 = vadd.f32 %v3289, %v3451
        %v3525 = vadd.f32 %v3292, %v3454
        %v3526 = vadd.f32 %v3295, %v3457
        %v3527 = vadd.f32 %v3298, %v3460
        %v3528 = vadd.f32 %v3301, %v3463
        %v3529 = vadd.f32 %v3304, %v3466
        %v3530 = vadd.f32 %v3307, %v3469
        %v3531 = vadd.f32 %v3310, %v3472
        %v3532 = vadd.f32 %v3313, %v3475
        %v3533 = vadd.f32 %v3316, %v3478
        %v3534 = vadd.f32 %v3319, %v3481
        %v3535 = vadd.f32 %v3322, %v3484
        %v3536 = vadd.f32 %v3325, %v3487
        %v3537 = vadd.f32 %v3328, %v3490
        %v3538 = vadd.f32 %v3331, %v3493
        %v3539 = vadd.f32 %v3334, %v3496
        %v3540 = vadd.f32 %v3337, %v3499
        %v3541 = vadd.f32 %v3340, %v3502
        %v3542 = vadd.f32 %v3343, %v3505
        %v3543 = vadd.f32 %v3346, %v3508
        %v3544 = vadd.f32 %v3349, %v3511
        %v3545 = vld [vmem:[%s2995] sm:$0xff]
        %v3546 = vld [vmem:[%s2995 + $0x8] sm:$0xff]
        %v3547 = vld [vmem:[%s2995 + $0x18] sm:$0xff]
        %v3548 = vld [vmem:[%s2995 + $0x20] sm:$0xff]
        %v3549 = vld [vmem:[%s2995 + $0x30] sm:$0xff]
        %v3550 = vld [vmem:[%s2995 + $0x38] sm:$0xff]
        %v3551 = vld [vmem:[%s2995 + $0x48] sm:$0xff]
        %v3552 = vld [vmem:[%s2995 + $0x50] sm:$0xff]
        %v3553 = vld [vmem:[%s2995 + $0x60] sm:$0xff]
        %v3554 = vld [vmem:[%s2995 + $0x68] sm:$0xff]
        %v3555 = vld [vmem:[%s2995 + $0x78] sm:$0xff]
        %v3556 = vld [vmem:[%s2995 + $0x80] sm:$0xff]
        %v3557 = vld [vmem:[%s2995 + $0x90] sm:$0xff]
        %v3558 = vld [vmem:[%s2995 + $0x98] sm:$0xff]
        %v3559 = vld [vmem:[%s2995 + $0xa8] sm:$0xff]
        %v3560 = vld [vmem:[%s2995 + $0xb0] sm:$0xff]
        %v3561 = vld [vmem:[%s2995 + $0xc0] sm:$0xff]
        %v3562 = vld [vmem:[%s2995 + $0xc8] sm:$0xff]
        %v3563 = vld [vmem:[%s2995 + $0xd8] sm:$0xff]
        %v3564 = vld [vmem:[%s2995 + $0xe0] sm:$0xff]
        %v3565 = vld [vmem:[%s2995 + $0xf0] sm:$0xff]
        %v3566 = vld [vmem:[%s2995 + $0xf8] sm:$0xff]
        %v3567 = vld [vmem:[%s2995 + $0x108] sm:$0xff]
        %v3568 = vld [vmem:[%s2995 + $0x110] sm:$0xff]
        %v3569 = vld [vmem:[%s2995 + $0x120] sm:$0xff]
        %v3570 = vld [vmem:[%s2995 + $0x128] sm:$0xff]
        %v3571 = vld [vmem:[%s2995 + $0x138] sm:$0xff]
        %v3572 = vld [vmem:[%s2995 + $0x140] sm:$0xff]
        %v3573 = vld [vmem:[%s2995 + $0x150] sm:$0xff]
        %v3574 = vld [vmem:[%s2995 + $0x158] sm:$0xff]
        %v3575 = vld [vmem:[%s2995 + $0x168] sm:$0xff]
        %v3576 = vld [vmem:[%s2995 + $0x170] sm:$0xff]
        %s3577 = scalar_lea.vmem [#allocation9], 384
        %v3578 = vld [vmem:[%s3577] sm:$0xff]
        %v3579 = vld [vmem:[%s3577 + $0x8] sm:$0xff]
        %v3580 = vld [vmem:[%s3577 + $0x10] sm:$0xff]
        %v3581 = vld [vmem:[%s3577 + $0x18] sm:$0xff]
        %v3582 = vld [vmem:[%s3577 + $0x20] sm:$0xff]
        %v3583 = vld [vmem:[%s3577 + $0x28] sm:$0xff]
        %v3584 = vld [vmem:[%s3577 + $0x30] sm:$0xff]
        %v3585 = vld [vmem:[%s3577 + $0x38] sm:$0xff]
        %v3586 = vld [vmem:[%s3577 + $0x40] sm:$0xff]
        %v3587 = vld [vmem:[%s3577 + $0x48] sm:$0xff]
        %v3588 = vld [vmem:[%s3577 + $0x50] sm:$0xff]
        %v3589 = vld [vmem:[%s3577 + $0x58] sm:$0xff]
        %v3590 = vld [vmem:[%s3577 + $0x60] sm:$0xff]
        %v3591 = vld [vmem:[%s3577 + $0x68] sm:$0xff]
        %v3592 = vld [vmem:[%s3577 + $0x70] sm:$0xff]
        %v3593 = vld [vmem:[%s3577 + $0x78] sm:$0xff]
        %3594 = vmatpush.msra.mxu0 %v3593
        %3595 = vmatpush.msra.mxu0 %v3592
        %3596 = vmatpush.msra.mxu0 %v3591
        %3597 = vmatpush.msra.mxu0 %v3590
        %3598 = vmatpush.msra.mxu0 %v3589
        %3599 = vmatpush.msra.mxu0 %v3588
        %3600 = vmatpush.msra.mxu0 %v3587
        %3601 = vmatpush.msra.mxu0 %v3586
        %3602 = vmatpush.msra.mxu0 %v3585
        %3603 = vmatpush.msra.mxu0 %v3584
        %3604 = vmatpush.msra.mxu0 %v3583
        %3605 = vmatpush.msra.mxu0 %v3582
        %3606 = vmatpush.msra.mxu0 %v3581
        %3607 = vmatpush.msra.mxu0 %v3580
        %3608 = vmatpush.msra.mxu0 %v3579
        %3609 = vmatpush.msra.mxu0 %v3578
        %3610 = vmatmul.f32.gmra.mxu0 %v3545
        %v3611 = vpop.f32.mrf.mxu0
        %v3612 = vadd.f32 0.0, %v3611
        %3613 = vmatmul.f32.gmra.mxu0 %v3546
        %v3614 = vpop.f32.mrf.mxu0
        %v3615 = vadd.f32 0.0, %v3614
        %3616 = vmatmul.f32.gmra.mxu0 %v3547
        %v3617 = vpop.f32.mrf.mxu0
        %v3618 = vadd.f32 0.0, %v3617
        %3619 = vmatmul.f32.gmra.mxu0 %v3548
        %v3620 = vpop.f32.mrf.mxu0
        %v3621 = vadd.f32 0.0, %v3620
        %3622 = vmatmul.f32.gmra.mxu0 %v3549
        %v3623 = vpop.f32.mrf.mxu0
        %v3624 = vadd.f32 0.0, %v3623
        %3625 = vmatmul.f32.gmra.mxu0 %v3550
        %v3626 = vpop.f32.mrf.mxu0
        %v3627 = vadd.f32 0.0, %v3626
        %3628 = vmatmul.f32.gmra.mxu0 %v3551
        %v3629 = vpop.f32.mrf.mxu0
        %v3630 = vadd.f32 0.0, %v3629
        %3631 = vmatmul.f32.gmra.mxu0 %v3552
        %v3632 = vpop.f32.mrf.mxu0
        %v3633 = vadd.f32 0.0, %v3632
        %3634 = vmatmul.f32.gmra.mxu0 %v3553
        %v3635 = vpop.f32.mrf.mxu0
        %v3636 = vadd.f32 0.0, %v3635
        %3637 = vmatmul.f32.gmra.mxu0 %v3554
        %v3638 = vpop.f32.mrf.mxu0
        %v3639 = vadd.f32 0.0, %v3638
        %3640 = vmatmul.f32.gmra.mxu0 %v3555
        %v3641 = vpop.f32.mrf.mxu0
        %v3642 = vadd.f32 0.0, %v3641
        %3643 = vmatmul.f32.gmra.mxu0 %v3556
        %v3644 = vpop.f32.mrf.mxu0
        %v3645 = vadd.f32 0.0, %v3644
        %3646 = vmatmul.f32.gmra.mxu0 %v3557
        %v3647 = vpop.f32.mrf.mxu0
        %v3648 = vadd.f32 0.0, %v3647
        %3649 = vmatmul.f32.gmra.mxu0 %v3558
        %v3650 = vpop.f32.mrf.mxu0
        %v3651 = vadd.f32 0.0, %v3650
        %3652 = vmatmul.f32.gmra.mxu0 %v3559
        %v3653 = vpop.f32.mrf.mxu0
        %v3654 = vadd.f32 0.0, %v3653
        %3655 = vmatmul.f32.gmra.mxu0 %v3560
        %v3656 = vpop.f32.mrf.mxu0
        %v3657 = vadd.f32 0.0, %v3656
        %3658 = vmatmul.f32.gmra.mxu0 %v3561
        %v3659 = vpop.f32.mrf.mxu0
        %v3660 = vadd.f32 0.0, %v3659
        %3661 = vmatmul.f32.gmra.mxu0 %v3562
        %v3662 = vpop.f32.mrf.mxu0
        %v3663 = vadd.f32 0.0, %v3662
        %3664 = vmatmul.f32.gmra.mxu0 %v3563
        %v3665 = vpop.f32.mrf.mxu0
        %v3666 = vadd.f32 0.0, %v3665
        %3667 = vmatmul.f32.gmra.mxu0 %v3564
        %v3668 = vpop.f32.mrf.mxu0
        %v3669 = vadd.f32 0.0, %v3668
        %3670 = vmatmul.f32.gmra.mxu0 %v3565
        %v3671 = vpop.f32.mrf.mxu0
        %v3672 = vadd.f32 0.0, %v3671
        %3673 = vmatmul.f32.gmra.mxu0 %v3566
        %v3674 = vpop.f32.mrf.mxu0
        %v3675 = vadd.f32 0.0, %v3674
        %3676 = vmatmul.f32.gmra.mxu0 %v3567
        %v3677 = vpop.f32.mrf.mxu0
        %v3678 = vadd.f32 0.0, %v3677
        %3679 = vmatmul.f32.gmra.mxu0 %v3568
        %v3680 = vpop.f32.mrf.mxu0
        %v3681 = vadd.f32 0.0, %v3680
        %3682 = vmatmul.f32.gmra.mxu0 %v3569
        %v3683 = vpop.f32.mrf.mxu0
        %v3684 = vadd.f32 0.0, %v3683
        %3685 = vmatmul.f32.gmra.mxu0 %v3570
        %v3686 = vpop.f32.mrf.mxu0
        %v3687 = vadd.f32 0.0, %v3686
        %3688 = vmatmul.f32.gmra.mxu0 %v3571
        %v3689 = vpop.f32.mrf.mxu0
        %v3690 = vadd.f32 0.0, %v3689
        %3691 = vmatmul.f32.gmra.mxu0 %v3572
        %v3692 = vpop.f32.mrf.mxu0
        %v3693 = vadd.f32 0.0, %v3692
        %3694 = vmatmul.f32.gmra.mxu0 %v3573
        %v3695 = vpop.f32.mrf.mxu0
        %v3696 = vadd.f32 0.0, %v3695
        %3697 = vmatmul.f32.gmra.mxu0 %v3574
        %v3698 = vpop.f32.mrf.mxu0
        %v3699 = vadd.f32 0.0, %v3698
        %3700 = vmatmul.f32.gmra.mxu0 %v3575
        %v3701 = vpop.f32.mrf.mxu0
        %v3702 = vadd.f32 0.0, %v3701
        %3703 = vmatmul.f32.gmra.mxu0 %v3576
        %v3704 = vpop.f32.mrf.mxu0
        %v3705 = vadd.f32 0.0, %v3704
        %3706 = vdwg.mxu0
        %v3707 = vadd.f32 %v3513, %v3612
        %v3708 = vadd.f32 %v3514, %v3615
        %v3709 = vadd.f32 %v3515, %v3618
        %v3710 = vadd.f32 %v3516, %v3621
        %v3711 = vadd.f32 %v3517, %v3624
        %v3712 = vadd.f32 %v3518, %v3627
        %v3713 = vadd.f32 %v3519, %v3630
        %v3714 = vadd.f32 %v3520, %v3633
        %v3715 = vadd.f32 %v3521, %v3636
        %v3716 = vadd.f32 %v3522, %v3639
        %v3717 = vadd.f32 %v3523, %v3642
        %v3718 = vadd.f32 %v3524, %v3645
        %v3719 = vadd.f32 %v3525, %v3648
        %v3720 = vadd.f32 %v3526, %v3651
        %v3721 = vadd.f32 %v3527, %v3654
        %v3722 = vadd.f32 %v3528, %v3657
        %v3723 = vadd.f32 %v3529, %v3660
        %v3724 = vadd.f32 %v3530, %v3663
        %v3725 = vadd.f32 %v3531, %v3666
        %v3726 = vadd.f32 %v3532, %v3669
        %v3727 = vadd.f32 %v3533, %v3672
        %v3728 = vadd.f32 %v3534, %v3675
        %v3729 = vadd.f32 %v3535, %v3678
        %v3730 = vadd.f32 %v3536, %v3681
        %v3731 = vadd.f32 %v3537, %v3684
        %v3732 = vadd.f32 %v3538, %v3687
        %v3733 = vadd.f32 %v3539, %v3690
        %v3734 = vadd.f32 %v3540, %v3693
        %v3735 = vadd.f32 %v3541, %v3696
        %v3736 = vadd.f32 %v3542, %v3699
        %v3737 = vadd.f32 %v3543, %v3702
        %v3738 = vadd.f32 %v3544, %v3705
        %v3739 = vld [vmem:[%s2995 + $0x1] sm:$0xff]
        %v3740 = vld [vmem:[%s2995 + $0x9] sm:$0xff]
        %v3741 = vld [vmem:[%s2995 + $0x19] sm:$0xff]
        %v3742 = vld [vmem:[%s2995 + $0x21] sm:$0xff]
        %v3743 = vld [vmem:[%s2995 + $0x31] sm:$0xff]
        %v3744 = vld [vmem:[%s2995 + $0x39] sm:$0xff]
        %v3745 = vld [vmem:[%s2995 + $0x49] sm:$0xff]
        %v3746 = vld [vmem:[%s2995 + $0x51] sm:$0xff]
        %v3747 = vld [vmem:[%s2995 + $0x61] sm:$0xff]
        %v3748 = vld [vmem:[%s2995 + $0x69] sm:$0xff]
        %v3749 = vld [vmem:[%s2995 + $0x79] sm:$0xff]
        %v3750 = vld [vmem:[%s2995 + $0x81] sm:$0xff]
        %v3751 = vld [vmem:[%s2995 + $0x91] sm:$0xff]
        %v3752 = vld [vmem:[%s2995 + $0x99] sm:$0xff]
        %v3753 = vld [vmem:[%s2995 + $0xa9] sm:$0xff]
        %v3754 = vld [vmem:[%s2995 + $0xb1] sm:$0xff]
        %v3755 = vld [vmem:[%s2995 + $0xc1] sm:$0xff]
        %v3756 = vld [vmem:[%s2995 + $0xc9] sm:$0xff]
        %v3757 = vld [vmem:[%s2995 + $0xd9] sm:$0xff]
        %v3758 = vld [vmem:[%s2995 + $0xe1] sm:$0xff]
        %v3759 = vld [vmem:[%s2995 + $0xf1] sm:$0xff]
        %v3760 = vld [vmem:[%s2995 + $0xf9] sm:$0xff]
        %v3761 = vld [vmem:[%s2995 + $0x109] sm:$0xff]
        %v3762 = vld [vmem:[%s2995 + $0x111] sm:$0xff]
        %v3763 = vld [vmem:[%s2995 + $0x121] sm:$0xff]
        %v3764 = vld [vmem:[%s2995 + $0x129] sm:$0xff]
        %v3765 = vld [vmem:[%s2995 + $0x139] sm:$0xff]
        %v3766 = vld [vmem:[%s2995 + $0x141] sm:$0xff]
        %v3767 = vld [vmem:[%s2995 + $0x151] sm:$0xff]
        %v3768 = vld [vmem:[%s2995 + $0x159] sm:$0xff]
        %v3769 = vld [vmem:[%s2995 + $0x169] sm:$0xff]
        %v3770 = vld [vmem:[%s2995 + $0x171] sm:$0xff]
        %s3771 = scalar_lea.vmem [#allocation9], 512
        %v3772 = vld [vmem:[%s3771] sm:$0xff]
        %v3773 = vld [vmem:[%s3771 + $0x8] sm:$0xff]
        %v3774 = vld [vmem:[%s3771 + $0x10] sm:$0xff]
        %v3775 = vld [vmem:[%s3771 + $0x18] sm:$0xff]
        %v3776 = vld [vmem:[%s3771 + $0x20] sm:$0xff]
        %v3777 = vld [vmem:[%s3771 + $0x28] sm:$0xff]
        %v3778 = vld [vmem:[%s3771 + $0x30] sm:$0xff]
        %v3779 = vld [vmem:[%s3771 + $0x38] sm:$0xff]
        %v3780 = vld [vmem:[%s3771 + $0x40] sm:$0xff]
        %v3781 = vld [vmem:[%s3771 + $0x48] sm:$0xff]
        %v3782 = vld [vmem:[%s3771 + $0x50] sm:$0xff]
        %v3783 = vld [vmem:[%s3771 + $0x58] sm:$0xff]
        %v3784 = vld [vmem:[%s3771 + $0x60] sm:$0xff]
        %v3785 = vld [vmem:[%s3771 + $0x68] sm:$0xff]
        %v3786 = vld [vmem:[%s3771 + $0x70] sm:$0xff]
        %v3787 = vld [vmem:[%s3771 + $0x78] sm:$0xff]
        %3788 = vmatpush.msra.mxu0 %v3787
        %3789 = vmatpush.msra.mxu0 %v3786
        %3790 = vmatpush.msra.mxu0 %v3785
        %3791 = vmatpush.msra.mxu0 %v3784
        %3792 = vmatpush.msra.mxu0 %v3783
        %3793 = vmatpush.msra.mxu0 %v3782
        %3794 = vmatpush.msra.mxu0 %v3781
        %3795 = vmatpush.msra.mxu0 %v3780
        %3796 = vmatpush.msra.mxu0 %v3779
        %3797 = vmatpush.msra.mxu0 %v3778
        %3798 = vmatpush.msra.mxu0 %v3777
        %3799 = vmatpush.msra.mxu0 %v3776
        %3800 = vmatpush.msra.mxu0 %v3775
        %3801 = vmatpush.msra.mxu0 %v3774
        %3802 = vmatpush.msra.mxu0 %v3773
        %3803 = vmatpush.msra.mxu0 %v3772
        %3804 = vmatmul.f32.gmra.mxu0 %v3739
        %v3805 = vpop.f32.mrf.mxu0
        %v3806 = vadd.f32 0.0, %v3805
        %3807 = vmatmul.f32.gmra.mxu0 %v3740
        %v3808 = vpop.f32.mrf.mxu0
        %v3809 = vadd.f32 0.0, %v3808
        %3810 = vmatmul.f32.gmra.mxu0 %v3741
        %v3811 = vpop.f32.mrf.mxu0
        %v3812 = vadd.f32 0.0, %v3811
        %3813 = vmatmul.f32.gmra.mxu0 %v3742
        %v3814 = vpop.f32.mrf.mxu0
        %v3815 = vadd.f32 0.0, %v3814
        %3816 = vmatmul.f32.gmra.mxu0 %v3743
        %v3817 = vpop.f32.mrf.mxu0
        %v3818 = vadd.f32 0.0, %v3817
        %3819 = vmatmul.f32.gmra.mxu0 %v3744
        %v3820 = vpop.f32.mrf.mxu0
        %v3821 = vadd.f32 0.0, %v3820
        %3822 = vmatmul.f32.gmra.mxu0 %v3745
        %v3823 = vpop.f32.mrf.mxu0
        %v3824 = vadd.f32 0.0, %v3823
        %3825 = vmatmul.f32.gmra.mxu0 %v3746
        %v3826 = vpop.f32.mrf.mxu0
        %v3827 = vadd.f32 0.0, %v3826
        %3828 = vmatmul.f32.gmra.mxu0 %v3747
        %v3829 = vpop.f32.mrf.mxu0
        %v3830 = vadd.f32 0.0, %v3829
        %3831 = vmatmul.f32.gmra.mxu0 %v3748
        %v3832 = vpop.f32.mrf.mxu0
        %v3833 = vadd.f32 0.0, %v3832
        %3834 = vmatmul.f32.gmra.mxu0 %v3749
        %v3835 = vpop.f32.mrf.mxu0
        %v3836 = vadd.f32 0.0, %v3835
        %3837 = vmatmul.f32.gmra.mxu0 %v3750
        %v3838 = vpop.f32.mrf.mxu0
        %v3839 = vadd.f32 0.0, %v3838
        %3840 = vmatmul.f32.gmra.mxu0 %v3751
        %v3841 = vpop.f32.mrf.mxu0
        %v3842 = vadd.f32 0.0, %v3841
        %3843 = vmatmul.f32.gmra.mxu0 %v3752
        %v3844 = vpop.f32.mrf.mxu0
        %v3845 = vadd.f32 0.0, %v3844
        %3846 = vmatmul.f32.gmra.mxu0 %v3753
        %v3847 = vpop.f32.mrf.mxu0
        %v3848 = vadd.f32 0.0, %v3847
        %3849 = vmatmul.f32.gmra.mxu0 %v3754
        %v3850 = vpop.f32.mrf.mxu0
        %v3851 = vadd.f32 0.0, %v3850
        %3852 = vmatmul.f32.gmra.mxu0 %v3755
        %v3853 = vpop.f32.mrf.mxu0
        %v3854 = vadd.f32 0.0, %v3853
        %3855 = vmatmul.f32.gmra.mxu0 %v3756
        %v3856 = vpop.f32.mrf.mxu0
        %v3857 = vadd.f32 0.0, %v3856
        %3858 = vmatmul.f32.gmra.mxu0 %v3757
        %v3859 = vpop.f32.mrf.mxu0
        %v3860 = vadd.f32 0.0, %v3859
        %3861 = vmatmul.f32.gmra.mxu0 %v3758
        %v3862 = vpop.f32.mrf.mxu0
        %v3863 = vadd.f32 0.0, %v3862
        %3864 = vmatmul.f32.gmra.mxu0 %v3759
        %v3865 = vpop.f32.mrf.mxu0
        %v3866 = vadd.f32 0.0, %v3865
        %3867 = vmatmul.f32.gmra.mxu0 %v3760
        %v3868 = vpop.f32.mrf.mxu0
        %v3869 = vadd.f32 0.0, %v3868
        %3870 = vmatmul.f32.gmra.mxu0 %v3761
        %v3871 = vpop.f32.mrf.mxu0
        %v3872 = vadd.f32 0.0, %v3871
        %3873 = vmatmul.f32.gmra.mxu0 %v3762
        %v3874 = vpop.f32.mrf.mxu0
        %v3875 = vadd.f32 0.0, %v3874
        %3876 = vmatmul.f32.gmra.mxu0 %v3763
        %v3877 = vpop.f32.mrf.mxu0
        %v3878 = vadd.f32 0.0, %v3877
        %3879 = vmatmul.f32.gmra.mxu0 %v3764
        %v3880 = vpop.f32.mrf.mxu0
        %v3881 = vadd.f32 0.0, %v3880
        %3882 = vmatmul.f32.gmra.mxu0 %v3765
        %v3883 = vpop.f32.mrf.mxu0
        %v3884 = vadd.f32 0.0, %v3883
        %3885 = vmatmul.f32.gmra.mxu0 %v3766
        %v3886 = vpop.f32.mrf.mxu0
        %v3887 = vadd.f32 0.0, %v3886
        %3888 = vmatmul.f32.gmra.mxu0 %v3767
        %v3889 = vpop.f32.mrf.mxu0
        %v3890 = vadd.f32 0.0, %v3889
        %3891 = vmatmul.f32.gmra.mxu0 %v3768
        %v3892 = vpop.f32.mrf.mxu0
        %v3893 = vadd.f32 0.0, %v3892
        %3894 = vmatmul.f32.gmra.mxu0 %v3769
        %v3895 = vpop.f32.mrf.mxu0
        %v3896 = vadd.f32 0.0, %v3895
        %3897 = vmatmul.f32.gmra.mxu0 %v3770
        %v3898 = vpop.f32.mrf.mxu0
        %v3899 = vadd.f32 0.0, %v3898
        %3900 = vdwg.mxu0
        %v3901 = vadd.f32 %v3707, %v3806
        %v3902 = vadd.f32 %v3708, %v3809
        %v3903 = vadd.f32 %v3709, %v3812
        %v3904 = vadd.f32 %v3710, %v3815
        %v3905 = vadd.f32 %v3711, %v3818
        %v3906 = vadd.f32 %v3712, %v3821
        %v3907 = vadd.f32 %v3713, %v3824
        %v3908 = vadd.f32 %v3714, %v3827
        %v3909 = vadd.f32 %v3715, %v3830
        %v3910 = vadd.f32 %v3716, %v3833
        %v3911 = vadd.f32 %v3717, %v3836
        %v3912 = vadd.f32 %v3718, %v3839
        %v3913 = vadd.f32 %v3719, %v3842
        %v3914 = vadd.f32 %v3720, %v3845
        %v3915 = vadd.f32 %v3721, %v3848
        %v3916 = vadd.f32 %v3722, %v3851
        %v3917 = vadd.f32 %v3723, %v3854
        %v3918 = vadd.f32 %v3724, %v3857
        %v3919 = vadd.f32 %v3725, %v3860
        %v3920 = vadd.f32 %v3726, %v3863
        %v3921 = vadd.f32 %v3727, %v3866
        %v3922 = vadd.f32 %v3728, %v3869
        %v3923 = vadd.f32 %v3729, %v3872
        %v3924 = vadd.f32 %v3730, %v3875
        %v3925 = vadd.f32 %v3731, %v3878
        %v3926 = vadd.f32 %v3732, %v3881
        %v3927 = vadd.f32 %v3733, %v3884
        %v3928 = vadd.f32 %v3734, %v3887
        %v3929 = vadd.f32 %v3735, %v3890
        %v3930 = vadd.f32 %v3736, %v3893
        %v3931 = vadd.f32 %v3737, %v3896
        %v3932 = vadd.f32 %v3738, %v3899
        %v3933 = vld [vmem:[%s2995 + $0x2] sm:$0xff]
        %v3934 = vld [vmem:[%s2995 + $0xa] sm:$0xff]
        %v3935 = vld [vmem:[%s2995 + $0x1a] sm:$0xff]
        %v3936 = vld [vmem:[%s2995 + $0x22] sm:$0xff]
        %v3937 = vld [vmem:[%s2995 + $0x32] sm:$0xff]
        %v3938 = vld [vmem:[%s2995 + $0x3a] sm:$0xff]
        %v3939 = vld [vmem:[%s2995 + $0x4a] sm:$0xff]
        %v3940 = vld [vmem:[%s2995 + $0x52] sm:$0xff]
        %v3941 = vld [vmem:[%s2995 + $0x62] sm:$0xff]
        %v3942 = vld [vmem:[%s2995 + $0x6a] sm:$0xff]
        %v3943 = vld [vmem:[%s2995 + $0x7a] sm:$0xff]
        %v3944 = vld [vmem:[%s2995 + $0x82] sm:$0xff]
        %v3945 = vld [vmem:[%s2995 + $0x92] sm:$0xff]
        %v3946 = vld [vmem:[%s2995 + $0x9a] sm:$0xff]
        %v3947 = vld [vmem:[%s2995 + $0xaa] sm:$0xff]
        %v3948 = vld [vmem:[%s2995 + $0xb2] sm:$0xff]
        %v3949 = vld [vmem:[%s2995 + $0xc2] sm:$0xff]
        %v3950 = vld [vmem:[%s2995 + $0xca] sm:$0xff]
        %v3951 = vld [vmem:[%s2995 + $0xda] sm:$0xff]
        %v3952 = vld [vmem:[%s2995 + $0xe2] sm:$0xff]
        %v3953 = vld [vmem:[%s2995 + $0xf2] sm:$0xff]
        %v3954 = vld [vmem:[%s2995 + $0xfa] sm:$0xff]
        %v3955 = vld [vmem:[%s2995 + $0x10a] sm:$0xff]
        %v3956 = vld [vmem:[%s2995 + $0x112] sm:$0xff]
        %v3957 = vld [vmem:[%s2995 + $0x122] sm:$0xff]
        %v3958 = vld [vmem:[%s2995 + $0x12a] sm:$0xff]
        %v3959 = vld [vmem:[%s2995 + $0x13a] sm:$0xff]
        %v3960 = vld [vmem:[%s2995 + $0x142] sm:$0xff]
        %v3961 = vld [vmem:[%s2995 + $0x152] sm:$0xff]
        %v3962 = vld [vmem:[%s2995 + $0x15a] sm:$0xff]
        %v3963 = vld [vmem:[%s2995 + $0x16a] sm:$0xff]
        %v3964 = vld [vmem:[%s2995 + $0x172] sm:$0xff]
        %s3965 = scalar_lea.vmem [#allocation9], 640
        %v3966 = vld [vmem:[%s3965] sm:$0xff]
        %v3967 = vld [vmem:[%s3965 + $0x8] sm:$0xff]
        %v3968 = vld [vmem:[%s3965 + $0x10] sm:$0xff]
        %v3969 = vld [vmem:[%s3965 + $0x18] sm:$0xff]
        %v3970 = vld [vmem:[%s3965 + $0x20] sm:$0xff]
        %v3971 = vld [vmem:[%s3965 + $0x28] sm:$0xff]
        %v3972 = vld [vmem:[%s3965 + $0x30] sm:$0xff]
        %v3973 = vld [vmem:[%s3965 + $0x38] sm:$0xff]
        %v3974 = vld [vmem:[%s3965 + $0x40] sm:$0xff]
        %v3975 = vld [vmem:[%s3965 + $0x48] sm:$0xff]
        %v3976 = vld [vmem:[%s3965 + $0x50] sm:$0xff]
        %v3977 = vld [vmem:[%s3965 + $0x58] sm:$0xff]
        %v3978 = vld [vmem:[%s3965 + $0x60] sm:$0xff]
        %v3979 = vld [vmem:[%s3965 + $0x68] sm:$0xff]
        %v3980 = vld [vmem:[%s3965 + $0x70] sm:$0xff]
        %v3981 = vld [vmem:[%s3965 + $0x78] sm:$0xff]
        %3982 = vmatpush.msra.mxu0 %v3981
        %3983 = vmatpush.msra.mxu0 %v3980
        %3984 = vmatpush.msra.mxu0 %v3979
        %3985 = vmatpush.msra.mxu0 %v3978
        %3986 = vmatpush.msra.mxu0 %v3977
        %3987 = vmatpush.msra.mxu0 %v3976
        %3988 = vmatpush.msra.mxu0 %v3975
        %3989 = vmatpush.msra.mxu0 %v3974
        %3990 = vmatpush.msra.mxu0 %v3973
        %3991 = vmatpush.msra.mxu0 %v3972
        %3992 = vmatpush.msra.mxu0 %v3971
        %3993 = vmatpush.msra.mxu0 %v3970
        %3994 = vmatpush.msra.mxu0 %v3969
        %3995 = vmatpush.msra.mxu0 %v3968
        %3996 = vmatpush.msra.mxu0 %v3967
        %3997 = vmatpush.msra.mxu0 %v3966
        %3998 = vmatmul.f32.gmra.mxu0 %v3933
        %v3999 = vpop.f32.mrf.mxu0
        %v4000 = vadd.f32 0.0, %v3999
        %4001 = vmatmul.f32.gmra.mxu0 %v3934
        %v4002 = vpop.f32.mrf.mxu0
        %v4003 = vadd.f32 0.0, %v4002
        %4004 = vmatmul.f32.gmra.mxu0 %v3935
        %v4005 = vpop.f32.mrf.mxu0
        %v4006 = vadd.f32 0.0, %v4005
        %4007 = vmatmul.f32.gmra.mxu0 %v3936
        %v4008 = vpop.f32.mrf.mxu0
        %v4009 = vadd.f32 0.0, %v4008
        %4010 = vmatmul.f32.gmra.mxu0 %v3937
        %v4011 = vpop.f32.mrf.mxu0
        %v4012 = vadd.f32 0.0, %v4011
        %4013 = vmatmul.f32.gmra.mxu0 %v3938
        %v4014 = vpop.f32.mrf.mxu0
        %v4015 = vadd.f32 0.0, %v4014
        %4016 = vmatmul.f32.gmra.mxu0 %v3939
        %v4017 = vpop.f32.mrf.mxu0
        %v4018 = vadd.f32 0.0, %v4017
        %4019 = vmatmul.f32.gmra.mxu0 %v3940
        %v4020 = vpop.f32.mrf.mxu0
        %v4021 = vadd.f32 0.0, %v4020
        %4022 = vmatmul.f32.gmra.mxu0 %v3941
        %v4023 = vpop.f32.mrf.mxu0
        %v4024 = vadd.f32 0.0, %v4023
        %4025 = vmatmul.f32.gmra.mxu0 %v3942
        %v4026 = vpop.f32.mrf.mxu0
        %v4027 = vadd.f32 0.0, %v4026
        %4028 = vmatmul.f32.gmra.mxu0 %v3943
        %v4029 = vpop.f32.mrf.mxu0
        %v4030 = vadd.f32 0.0, %v4029
        %4031 = vmatmul.f32.gmra.mxu0 %v3944
        %v4032 = vpop.f32.mrf.mxu0
        %v4033 = vadd.f32 0.0, %v4032
        %4034 = vmatmul.f32.gmra.mxu0 %v3945
        %v4035 = vpop.f32.mrf.mxu0
        %v4036 = vadd.f32 0.0, %v4035
        %4037 = vmatmul.f32.gmra.mxu0 %v3946
        %v4038 = vpop.f32.mrf.mxu0
        %v4039 = vadd.f32 0.0, %v4038
        %4040 = vmatmul.f32.gmra.mxu0 %v3947
        %v4041 = vpop.f32.mrf.mxu0
        %v4042 = vadd.f32 0.0, %v4041
        %4043 = vmatmul.f32.gmra.mxu0 %v3948
        %v4044 = vpop.f32.mrf.mxu0
        %v4045 = vadd.f32 0.0, %v4044
        %4046 = vmatmul.f32.gmra.mxu0 %v3949
        %v4047 = vpop.f32.mrf.mxu0
        %v4048 = vadd.f32 0.0, %v4047
        %4049 = vmatmul.f32.gmra.mxu0 %v3950
        %v4050 = vpop.f32.mrf.mxu0
        %v4051 = vadd.f32 0.0, %v4050
        %4052 = vmatmul.f32.gmra.mxu0 %v3951
        %v4053 = vpop.f32.mrf.mxu0
        %v4054 = vadd.f32 0.0, %v4053
        %4055 = vmatmul.f32.gmra.mxu0 %v3952
        %v4056 = vpop.f32.mrf.mxu0
        %v4057 = vadd.f32 0.0, %v4056
        %4058 = vmatmul.f32.gmra.mxu0 %v3953
        %v4059 = vpop.f32.mrf.mxu0
        %v4060 = vadd.f32 0.0, %v4059
        %4061 = vmatmul.f32.gmra.mxu0 %v3954
        %v4062 = vpop.f32.mrf.mxu0
        %v4063 = vadd.f32 0.0, %v4062
        %4064 = vmatmul.f32.gmra.mxu0 %v3955
        %v4065 = vpop.f32.mrf.mxu0
        %v4066 = vadd.f32 0.0, %v4065
        %4067 = vmatmul.f32.gmra.mxu0 %v3956
        %v4068 = vpop.f32.mrf.mxu0
        %v4069 = vadd.f32 0.0, %v4068
        %4070 = vmatmul.f32.gmra.mxu0 %v3957
        %v4071 = vpop.f32.mrf.mxu0
        %v4072 = vadd.f32 0.0, %v4071
        %4073 = vmatmul.f32.gmra.mxu0 %v3958
        %v4074 = vpop.f32.mrf.mxu0
        %v4075 = vadd.f32 0.0, %v4074
        %4076 = vmatmul.f32.gmra.mxu0 %v3959
        %v4077 = vpop.f32.mrf.mxu0
        %v4078 = vadd.f32 0.0, %v4077
        %4079 = vmatmul.f32.gmra.mxu0 %v3960
        %v4080 = vpop.f32.mrf.mxu0
        %v4081 = vadd.f32 0.0, %v4080
        %4082 = vmatmul.f32.gmra.mxu0 %v3961
        %v4083 = vpop.f32.mrf.mxu0
        %v4084 = vadd.f32 0.0, %v4083
        %4085 = vmatmul.f32.gmra.mxu0 %v3962
        %v4086 = vpop.f32.mrf.mxu0
        %v4087 = vadd.f32 0.0, %v4086
        %4088 = vmatmul.f32.gmra.mxu0 %v3963
        %v4089 = vpop.f32.mrf.mxu0
        %v4090 = vadd.f32 0.0, %v4089
        %4091 = vmatmul.f32.gmra.mxu0 %v3964
        %v4092 = vpop.f32.mrf.mxu0
        %v4093 = vadd.f32 0.0, %v4092
        %4094 = vdwg.mxu0
        %v4095 = vadd.f32 %v3901, %v4000
        %v4096 = vadd.f32 %v3902, %v4003
        %v4097 = vadd.f32 %v3903, %v4006
        %v4098 = vadd.f32 %v3904, %v4009
        %v4099 = vadd.f32 %v3905, %v4012
        %v4100 = vadd.f32 %v3906, %v4015
        %v4101 = vadd.f32 %v3907, %v4018
        %v4102 = vadd.f32 %v3908, %v4021
        %v4103 = vadd.f32 %v3909, %v4024
        %v4104 = vadd.f32 %v3910, %v4027
        %v4105 = vadd.f32 %v3911, %v4030
        %v4106 = vadd.f32 %v3912, %v4033
        %v4107 = vadd.f32 %v3913, %v4036
        %v4108 = vadd.f32 %v3914, %v4039
        %v4109 = vadd.f32 %v3915, %v4042
        %v4110 = vadd.f32 %v3916, %v4045
        %v4111 = vadd.f32 %v3917, %v4048
        %v4112 = vadd.f32 %v3918, %v4051
        %v4113 = vadd.f32 %v3919, %v4054
        %v4114 = vadd.f32 %v3920, %v4057
        %v4115 = vadd.f32 %v3921, %v4060
        %v4116 = vadd.f32 %v3922, %v4063
        %v4117 = vadd.f32 %v3923, %v4066
        %v4118 = vadd.f32 %v3924, %v4069
        %v4119 = vadd.f32 %v3925, %v4072
        %v4120 = vadd.f32 %v3926, %v4075
        %v4121 = vadd.f32 %v3927, %v4078
        %v4122 = vadd.f32 %v3928, %v4081
        %v4123 = vadd.f32 %v3929, %v4084
        %v4124 = vadd.f32 %v3930, %v4087
        %v4125 = vadd.f32 %v3931, %v4090
        %v4126 = vadd.f32 %v3932, %v4093
        %s4127 = scalar_lea.vmem [#allocation3], 48
        %v4128 = vld [vmem:[%s4127] sm:$0xff]
        %v4129 = vld [vmem:[%s4127 + $0x8] sm:$0xff]
        %v4130 = vld [vmem:[%s4127 + $0x18] sm:$0xff]
        %v4131 = vld [vmem:[%s4127 + $0x20] sm:$0xff]
        %v4132 = vld [vmem:[%s4127 + $0x30] sm:$0xff]
        %v4133 = vld [vmem:[%s4127 + $0x38] sm:$0xff]
        %v4134 = vld [vmem:[%s4127 + $0x48] sm:$0xff]
        %v4135 = vld [vmem:[%s4127 + $0x50] sm:$0xff]
        %v4136 = vld [vmem:[%s4127 + $0x60] sm:$0xff]
        %v4137 = vld [vmem:[%s4127 + $0x68] sm:$0xff]
        %v4138 = vld [vmem:[%s4127 + $0x78] sm:$0xff]
        %v4139 = vld [vmem:[%s4127 + $0x80] sm:$0xff]
        %v4140 = vld [vmem:[%s4127 + $0x90] sm:$0xff]
        %v4141 = vld [vmem:[%s4127 + $0x98] sm:$0xff]
        %v4142 = vld [vmem:[%s4127 + $0xa8] sm:$0xff]
        %v4143 = vld [vmem:[%s4127 + $0xb0] sm:$0xff]
        %v4144 = vld [vmem:[%s4127 + $0xc0] sm:$0xff]
        %v4145 = vld [vmem:[%s4127 + $0xc8] sm:$0xff]
        %v4146 = vld [vmem:[%s4127 + $0xd8] sm:$0xff]
        %v4147 = vld [vmem:[%s4127 + $0xe0] sm:$0xff]
        %v4148 = vld [vmem:[%s4127 + $0xf0] sm:$0xff]
        %v4149 = vld [vmem:[%s4127 + $0xf8] sm:$0xff]
        %v4150 = vld [vmem:[%s4127 + $0x108] sm:$0xff]
        %v4151 = vld [vmem:[%s4127 + $0x110] sm:$0xff]
        %v4152 = vld [vmem:[%s4127 + $0x120] sm:$0xff]
        %v4153 = vld [vmem:[%s4127 + $0x128] sm:$0xff]
        %v4154 = vld [vmem:[%s4127 + $0x138] sm:$0xff]
        %v4155 = vld [vmem:[%s4127 + $0x140] sm:$0xff]
        %v4156 = vld [vmem:[%s4127 + $0x150] sm:$0xff]
        %v4157 = vld [vmem:[%s4127 + $0x158] sm:$0xff]
        %v4158 = vld [vmem:[%s4127 + $0x168] sm:$0xff]
        %v4159 = vld [vmem:[%s4127 + $0x170] sm:$0xff]
        %s4160 = scalar_lea.vmem [#allocation9], 768
        %v4161 = vld [vmem:[%s4160] sm:$0xff]
        %v4162 = vld [vmem:[%s4160 + $0x8] sm:$0xff]
        %v4163 = vld [vmem:[%s4160 + $0x10] sm:$0xff]
        %v4164 = vld [vmem:[%s4160 + $0x18] sm:$0xff]
        %v4165 = vld [vmem:[%s4160 + $0x20] sm:$0xff]
        %v4166 = vld [vmem:[%s4160 + $0x28] sm:$0xff]
        %v4167 = vld [vmem:[%s4160 + $0x30] sm:$0xff]
        %v4168 = vld [vmem:[%s4160 + $0x38] sm:$0xff]
        %v4169 = vld [vmem:[%s4160 + $0x40] sm:$0xff]
        %v4170 = vld [vmem:[%s4160 + $0x48] sm:$0xff]
        %v4171 = vld [vmem:[%s4160 + $0x50] sm:$0xff]
        %v4172 = vld [vmem:[%s4160 + $0x58] sm:$0xff]
        %v4173 = vld [vmem:[%s4160 + $0x60] sm:$0xff]
        %v4174 = vld [vmem:[%s4160 + $0x68] sm:$0xff]
        %v4175 = vld [vmem:[%s4160 + $0x70] sm:$0xff]
        %v4176 = vld [vmem:[%s4160 + $0x78] sm:$0xff]
        %4177 = vmatpush.msra.mxu0 %v4176
        %4178 = vmatpush.msra.mxu0 %v4175
        %4179 = vmatpush.msra.mxu0 %v4174
        %4180 = vmatpush.msra.mxu0 %v4173
        %4181 = vmatpush.msra.mxu0 %v4172
        %4182 = vmatpush.msra.mxu0 %v4171
        %4183 = vmatpush.msra.mxu0 %v4170
        %4184 = vmatpush.msra.mxu0 %v4169
        %4185 = vmatpush.msra.mxu0 %v4168
        %4186 = vmatpush.msra.mxu0 %v4167
        %4187 = vmatpush.msra.mxu0 %v4166
        %4188 = vmatpush.msra.mxu0 %v4165
        %4189 = vmatpush.msra.mxu0 %v4164
        %4190 = vmatpush.msra.mxu0 %v4163
        %4191 = vmatpush.msra.mxu0 %v4162
        %4192 = vmatpush.msra.mxu0 %v4161
        %4193 = vmatmul.f32.gmra.mxu0 %v4128
        %v4194 = vpop.f32.mrf.mxu0
        %v4195 = vadd.f32 0.0, %v4194
        %4196 = vmatmul.f32.gmra.mxu0 %v4129
        %v4197 = vpop.f32.mrf.mxu0
        %v4198 = vadd.f32 0.0, %v4197
        %4199 = vmatmul.f32.gmra.mxu0 %v4130
        %v4200 = vpop.f32.mrf.mxu0
        %v4201 = vadd.f32 0.0, %v4200
        %4202 = vmatmul.f32.gmra.mxu0 %v4131
        %v4203 = vpop.f32.mrf.mxu0
        %v4204 = vadd.f32 0.0, %v4203
        %4205 = vmatmul.f32.gmra.mxu0 %v4132
        %v4206 = vpop.f32.mrf.mxu0
        %v4207 = vadd.f32 0.0, %v4206
        %4208 = vmatmul.f32.gmra.mxu0 %v4133
        %v4209 = vpop.f32.mrf.mxu0
        %v4210 = vadd.f32 0.0, %v4209
        %4211 = vmatmul.f32.gmra.mxu0 %v4134
        %v4212 = vpop.f32.mrf.mxu0
        %v4213 = vadd.f32 0.0, %v4212
        %4214 = vmatmul.f32.gmra.mxu0 %v4135
        %v4215 = vpop.f32.mrf.mxu0
        %v4216 = vadd.f32 0.0, %v4215
        %4217 = vmatmul.f32.gmra.mxu0 %v4136
        %v4218 = vpop.f32.mrf.mxu0
        %v4219 = vadd.f32 0.0, %v4218
        %4220 = vmatmul.f32.gmra.mxu0 %v4137
        %v4221 = vpop.f32.mrf.mxu0
        %v4222 = vadd.f32 0.0, %v4221
        %4223 = vmatmul.f32.gmra.mxu0 %v4138
        %v4224 = vpop.f32.mrf.mxu0
        %v4225 = vadd.f32 0.0, %v4224
        %4226 = vmatmul.f32.gmra.mxu0 %v4139
        %v4227 = vpop.f32.mrf.mxu0
        %v4228 = vadd.f32 0.0, %v4227
        %4229 = vmatmul.f32.gmra.mxu0 %v4140
        %v4230 = vpop.f32.mrf.mxu0
        %v4231 = vadd.f32 0.0, %v4230
        %4232 = vmatmul.f32.gmra.mxu0 %v4141
        %v4233 = vpop.f32.mrf.mxu0
        %v4234 = vadd.f32 0.0, %v4233
        %4235 = vmatmul.f32.gmra.mxu0 %v4142
        %v4236 = vpop.f32.mrf.mxu0
        %v4237 = vadd.f32 0.0, %v4236
        %4238 = vmatmul.f32.gmra.mxu0 %v4143
        %v4239 = vpop.f32.mrf.mxu0
        %v4240 = vadd.f32 0.0, %v4239
        %4241 = vmatmul.f32.gmra.mxu0 %v4144
        %v4242 = vpop.f32.mrf.mxu0
        %v4243 = vadd.f32 0.0, %v4242
        %4244 = vmatmul.f32.gmra.mxu0 %v4145
        %v4245 = vpop.f32.mrf.mxu0
        %v4246 = vadd.f32 0.0, %v4245
        %4247 = vmatmul.f32.gmra.mxu0 %v4146
        %v4248 = vpop.f32.mrf.mxu0
        %v4249 = vadd.f32 0.0, %v4248
        %4250 = vmatmul.f32.gmra.mxu0 %v4147
        %v4251 = vpop.f32.mrf.mxu0
        %v4252 = vadd.f32 0.0, %v4251
        %4253 = vmatmul.f32.gmra.mxu0 %v4148
        %v4254 = vpop.f32.mrf.mxu0
        %v4255 = vadd.f32 0.0, %v4254
        %4256 = vmatmul.f32.gmra.mxu0 %v4149
        %v4257 = vpop.f32.mrf.mxu0
        %v4258 = vadd.f32 0.0, %v4257
        %4259 = vmatmul.f32.gmra.mxu0 %v4150
        %v4260 = vpop.f32.mrf.mxu0
        %v4261 = vadd.f32 0.0, %v4260
        %4262 = vmatmul.f32.gmra.mxu0 %v4151
        %v4263 = vpop.f32.mrf.mxu0
        %v4264 = vadd.f32 0.0, %v4263
        %4265 = vmatmul.f32.gmra.mxu0 %v4152
        %v4266 = vpop.f32.mrf.mxu0
        %v4267 = vadd.f32 0.0, %v4266
        %4268 = vmatmul.f32.gmra.mxu0 %v4153
        %v4269 = vpop.f32.mrf.mxu0
        %v4270 = vadd.f32 0.0, %v4269
        %4271 = vmatmul.f32.gmra.mxu0 %v4154
        %v4272 = vpop.f32.mrf.mxu0
        %v4273 = vadd.f32 0.0, %v4272
        %4274 = vmatmul.f32.gmra.mxu0 %v4155
        %v4275 = vpop.f32.mrf.mxu0
        %v4276 = vadd.f32 0.0, %v4275
        %4277 = vmatmul.f32.gmra.mxu0 %v4156
        %v4278 = vpop.f32.mrf.mxu0
        %v4279 = vadd.f32 0.0, %v4278
        %4280 = vmatmul.f32.gmra.mxu0 %v4157
        %v4281 = vpop.f32.mrf.mxu0
        %v4282 = vadd.f32 0.0, %v4281
        %4283 = vmatmul.f32.gmra.mxu0 %v4158
        %v4284 = vpop.f32.mrf.mxu0
        %v4285 = vadd.f32 0.0, %v4284
        %4286 = vmatmul.f32.gmra.mxu0 %v4159
        %v4287 = vpop.f32.mrf.mxu0
        %v4288 = vadd.f32 0.0, %v4287
        %4289 = vdwg.mxu0
        %v4290 = vadd.f32 %v4095, %v4195
        %v4291 = vadd.f32 %v4096, %v4198
        %v4292 = vadd.f32 %v4097, %v4201
        %v4293 = vadd.f32 %v4098, %v4204
        %v4294 = vadd.f32 %v4099, %v4207
        %v4295 = vadd.f32 %v4100, %v4210
        %v4296 = vadd.f32 %v4101, %v4213
        %v4297 = vadd.f32 %v4102, %v4216
        %v4298 = vadd.f32 %v4103, %v4219
        %v4299 = vadd.f32 %v4104, %v4222
        %v4300 = vadd.f32 %v4105, %v4225
        %v4301 = vadd.f32 %v4106, %v4228
        %v4302 = vadd.f32 %v4107, %v4231
        %v4303 = vadd.f32 %v4108, %v4234
        %v4304 = vadd.f32 %v4109, %v4237
        %v4305 = vadd.f32 %v4110, %v4240
        %v4306 = vadd.f32 %v4111, %v4243
        %v4307 = vadd.f32 %v4112, %v4246
        %v4308 = vadd.f32 %v4113, %v4249
        %v4309 = vadd.f32 %v4114, %v4252
        %v4310 = vadd.f32 %v4115, %v4255
        %v4311 = vadd.f32 %v4116, %v4258
        %v4312 = vadd.f32 %v4117, %v4261
        %v4313 = vadd.f32 %v4118, %v4264
        %v4314 = vadd.f32 %v4119, %v4267
        %v4315 = vadd.f32 %v4120, %v4270
        %v4316 = vadd.f32 %v4121, %v4273
        %v4317 = vadd.f32 %v4122, %v4276
        %v4318 = vadd.f32 %v4123, %v4279
        %v4319 = vadd.f32 %v4124, %v4282
        %v4320 = vadd.f32 %v4125, %v4285
        %v4321 = vadd.f32 %v4126, %v4288
        %v4322 = vld [vmem:[%s4127 + $0x1] sm:$0xff]
        %v4323 = vld [vmem:[%s4127 + $0x9] sm:$0xff]
        %v4324 = vld [vmem:[%s4127 + $0x19] sm:$0xff]
        %v4325 = vld [vmem:[%s4127 + $0x21] sm:$0xff]
        %v4326 = vld [vmem:[%s4127 + $0x31] sm:$0xff]
        %v4327 = vld [vmem:[%s4127 + $0x39] sm:$0xff]
        %v4328 = vld [vmem:[%s4127 + $0x49] sm:$0xff]
        %v4329 = vld [vmem:[%s4127 + $0x51] sm:$0xff]
        %v4330 = vld [vmem:[%s4127 + $0x61] sm:$0xff]
        %v4331 = vld [vmem:[%s4127 + $0x69] sm:$0xff]
        %v4332 = vld [vmem:[%s4127 + $0x79] sm:$0xff]
        %v4333 = vld [vmem:[%s4127 + $0x81] sm:$0xff]
        %v4334 = vld [vmem:[%s4127 + $0x91] sm:$0xff]
        %v4335 = vld [vmem:[%s4127 + $0x99] sm:$0xff]
        %v4336 = vld [vmem:[%s4127 + $0xa9] sm:$0xff]
        %v4337 = vld [vmem:[%s4127 + $0xb1] sm:$0xff]
        %v4338 = vld [vmem:[%s4127 + $0xc1] sm:$0xff]
        %v4339 = vld [vmem:[%s4127 + $0xc9] sm:$0xff]
        %v4340 = vld [vmem:[%s4127 + $0xd9] sm:$0xff]
        %v4341 = vld [vmem:[%s4127 + $0xe1] sm:$0xff]
        %v4342 = vld [vmem:[%s4127 + $0xf1] sm:$0xff]
        %v4343 = vld [vmem:[%s4127 + $0xf9] sm:$0xff]
        %v4344 = vld [vmem:[%s4127 + $0x109] sm:$0xff]
        %v4345 = vld [vmem:[%s4127 + $0x111] sm:$0xff]
        %v4346 = vld [vmem:[%s4127 + $0x121] sm:$0xff]
        %v4347 = vld [vmem:[%s4127 + $0x129] sm:$0xff]
        %v4348 = vld [vmem:[%s4127 + $0x139] sm:$0xff]
        %v4349 = vld [vmem:[%s4127 + $0x141] sm:$0xff]
        %v4350 = vld [vmem:[%s4127 + $0x151] sm:$0xff]
        %v4351 = vld [vmem:[%s4127 + $0x159] sm:$0xff]
        %v4352 = vld [vmem:[%s4127 + $0x169] sm:$0xff]
        %v4353 = vld [vmem:[%s4127 + $0x171] sm:$0xff]
        %s4354 = scalar_lea.vmem [#allocation9], 896
        %v4355 = vld [vmem:[%s4354] sm:$0xff]
        %v4356 = vld [vmem:[%s4354 + $0x8] sm:$0xff]
        %v4357 = vld [vmem:[%s4354 + $0x10] sm:$0xff]
        %v4358 = vld [vmem:[%s4354 + $0x18] sm:$0xff]
        %v4359 = vld [vmem:[%s4354 + $0x20] sm:$0xff]
        %v4360 = vld [vmem:[%s4354 + $0x28] sm:$0xff]
        %v4361 = vld [vmem:[%s4354 + $0x30] sm:$0xff]
        %v4362 = vld [vmem:[%s4354 + $0x38] sm:$0xff]
        %v4363 = vld [vmem:[%s4354 + $0x40] sm:$0xff]
        %v4364 = vld [vmem:[%s4354 + $0x48] sm:$0xff]
        %v4365 = vld [vmem:[%s4354 + $0x50] sm:$0xff]
        %v4366 = vld [vmem:[%s4354 + $0x58] sm:$0xff]
        %v4367 = vld [vmem:[%s4354 + $0x60] sm:$0xff]
        %v4368 = vld [vmem:[%s4354 + $0x68] sm:$0xff]
        %v4369 = vld [vmem:[%s4354 + $0x70] sm:$0xff]
        %v4370 = vld [vmem:[%s4354 + $0x78] sm:$0xff]
        %4371 = vmatpush.msra.mxu0 %v4370
        %4372 = vmatpush.msra.mxu0 %v4369
        %4373 = vmatpush.msra.mxu0 %v4368
        %4374 = vmatpush.msra.mxu0 %v4367
        %4375 = vmatpush.msra.mxu0 %v4366
        %4376 = vmatpush.msra.mxu0 %v4365
        %4377 = vmatpush.msra.mxu0 %v4364
        %4378 = vmatpush.msra.mxu0 %v4363
        %4379 = vmatpush.msra.mxu0 %v4362
        %4380 = vmatpush.msra.mxu0 %v4361
        %4381 = vmatpush.msra.mxu0 %v4360
        %4382 = vmatpush.msra.mxu0 %v4359
        %4383 = vmatpush.msra.mxu0 %v4358
        %4384 = vmatpush.msra.mxu0 %v4357
        %4385 = vmatpush.msra.mxu0 %v4356
        %4386 = vmatpush.msra.mxu0 %v4355
        %4387 = vmatmul.f32.gmra.mxu0 %v4322
        %v4388 = vpop.f32.mrf.mxu0
        %v4389 = vadd.f32 0.0, %v4388
        %4390 = vmatmul.f32.gmra.mxu0 %v4323
        %v4391 = vpop.f32.mrf.mxu0
        %v4392 = vadd.f32 0.0, %v4391
        %4393 = vmatmul.f32.gmra.mxu0 %v4324
        %v4394 = vpop.f32.mrf.mxu0
        %v4395 = vadd.f32 0.0, %v4394
        %4396 = vmatmul.f32.gmra.mxu0 %v4325
        %v4397 = vpop.f32.mrf.mxu0
        %v4398 = vadd.f32 0.0, %v4397
        %4399 = vmatmul.f32.gmra.mxu0 %v4326
        %v4400 = vpop.f32.mrf.mxu0
        %v4401 = vadd.f32 0.0, %v4400
        %4402 = vmatmul.f32.gmra.mxu0 %v4327
        %v4403 = vpop.f32.mrf.mxu0
        %v4404 = vadd.f32 0.0, %v4403
        %4405 = vmatmul.f32.gmra.mxu0 %v4328
        %v4406 = vpop.f32.mrf.mxu0
        %v4407 = vadd.f32 0.0, %v4406
        %4408 = vmatmul.f32.gmra.mxu0 %v4329
        %v4409 = vpop.f32.mrf.mxu0
        %v4410 = vadd.f32 0.0, %v4409
        %4411 = vmatmul.f32.gmra.mxu0 %v4330
        %v4412 = vpop.f32.mrf.mxu0
        %v4413 = vadd.f32 0.0, %v4412
        %4414 = vmatmul.f32.gmra.mxu0 %v4331
        %v4415 = vpop.f32.mrf.mxu0
        %v4416 = vadd.f32 0.0, %v4415
        %4417 = vmatmul.f32.gmra.mxu0 %v4332
        %v4418 = vpop.f32.mrf.mxu0
        %v4419 = vadd.f32 0.0, %v4418
        %4420 = vmatmul.f32.gmra.mxu0 %v4333
        %v4421 = vpop.f32.mrf.mxu0
        %v4422 = vadd.f32 0.0, %v4421
        %4423 = vmatmul.f32.gmra.mxu0 %v4334
        %v4424 = vpop.f32.mrf.mxu0
        %v4425 = vadd.f32 0.0, %v4424
        %4426 = vmatmul.f32.gmra.mxu0 %v4335
        %v4427 = vpop.f32.mrf.mxu0
        %v4428 = vadd.f32 0.0, %v4427
        %4429 = vmatmul.f32.gmra.mxu0 %v4336
        %v4430 = vpop.f32.mrf.mxu0
        %v4431 = vadd.f32 0.0, %v4430
        %4432 = vmatmul.f32.gmra.mxu0 %v4337
        %v4433 = vpop.f32.mrf.mxu0
        %v4434 = vadd.f32 0.0, %v4433
        %4435 = vmatmul.f32.gmra.mxu0 %v4338
        %v4436 = vpop.f32.mrf.mxu0
        %v4437 = vadd.f32 0.0, %v4436
        %4438 = vmatmul.f32.gmra.mxu0 %v4339
        %v4439 = vpop.f32.mrf.mxu0
        %v4440 = vadd.f32 0.0, %v4439
        %4441 = vmatmul.f32.gmra.mxu0 %v4340
        %v4442 = vpop.f32.mrf.mxu0
        %v4443 = vadd.f32 0.0, %v4442
        %4444 = vmatmul.f32.gmra.mxu0 %v4341
        %v4445 = vpop.f32.mrf.mxu0
        %v4446 = vadd.f32 0.0, %v4445
        %4447 = vmatmul.f32.gmra.mxu0 %v4342
        %v4448 = vpop.f32.mrf.mxu0
        %v4449 = vadd.f32 0.0, %v4448
        %4450 = vmatmul.f32.gmra.mxu0 %v4343
        %v4451 = vpop.f32.mrf.mxu0
        %v4452 = vadd.f32 0.0, %v4451
        %4453 = vmatmul.f32.gmra.mxu0 %v4344
        %v4454 = vpop.f32.mrf.mxu0
        %v4455 = vadd.f32 0.0, %v4454
        %4456 = vmatmul.f32.gmra.mxu0 %v4345
        %v4457 = vpop.f32.mrf.mxu0
        %v4458 = vadd.f32 0.0, %v4457
        %4459 = vmatmul.f32.gmra.mxu0 %v4346
        %v4460 = vpop.f32.mrf.mxu0
        %v4461 = vadd.f32 0.0, %v4460
        %4462 = vmatmul.f32.gmra.mxu0 %v4347
        %v4463 = vpop.f32.mrf.mxu0
        %v4464 = vadd.f32 0.0, %v4463
        %4465 = vmatmul.f32.gmra.mxu0 %v4348
        %v4466 = vpop.f32.mrf.mxu0
        %v4467 = vadd.f32 0.0, %v4466
        %4468 = vmatmul.f32.gmra.mxu0 %v4349
        %v4469 = vpop.f32.mrf.mxu0
        %v4470 = vadd.f32 0.0, %v4469
        %4471 = vmatmul.f32.gmra.mxu0 %v4350
        %v4472 = vpop.f32.mrf.mxu0
        %v4473 = vadd.f32 0.0, %v4472
        %4474 = vmatmul.f32.gmra.mxu0 %v4351
        %v4475 = vpop.f32.mrf.mxu0
        %v4476 = vadd.f32 0.0, %v4475
        %4477 = vmatmul.f32.gmra.mxu0 %v4352
        %v4478 = vpop.f32.mrf.mxu0
        %v4479 = vadd.f32 0.0, %v4478
        %4480 = vmatmul.f32.gmra.mxu0 %v4353
        %v4481 = vpop.f32.mrf.mxu0
        %v4482 = vadd.f32 0.0, %v4481
        %4483 = vdwg.mxu0
        %v4484 = vadd.f32 %v4290, %v4389
        %v4485 = vadd.f32 %v4291, %v4392
        %v4486 = vadd.f32 %v4292, %v4395
        %v4487 = vadd.f32 %v4293, %v4398
        %v4488 = vadd.f32 %v4294, %v4401
        %v4489 = vadd.f32 %v4295, %v4404
        %v4490 = vadd.f32 %v4296, %v4407
        %v4491 = vadd.f32 %v4297, %v4410
        %v4492 = vadd.f32 %v4298, %v4413
        %v4493 = vadd.f32 %v4299, %v4416
        %v4494 = vadd.f32 %v4300, %v4419
        %v4495 = vadd.f32 %v4301, %v4422
        %v4496 = vadd.f32 %v4302, %v4425
        %v4497 = vadd.f32 %v4303, %v4428
        %v4498 = vadd.f32 %v4304, %v4431
        %v4499 = vadd.f32 %v4305, %v4434
        %v4500 = vadd.f32 %v4306, %v4437
        %v4501 = vadd.f32 %v4307, %v4440
        %v4502 = vadd.f32 %v4308, %v4443
        %v4503 = vadd.f32 %v4309, %v4446
        %v4504 = vadd.f32 %v4310, %v4449
        %v4505 = vadd.f32 %v4311, %v4452
        %v4506 = vadd.f32 %v4312, %v4455
        %v4507 = vadd.f32 %v4313, %v4458
        %v4508 = vadd.f32 %v4314, %v4461
        %v4509 = vadd.f32 %v4315, %v4464
        %v4510 = vadd.f32 %v4316, %v4467
        %v4511 = vadd.f32 %v4317, %v4470
        %v4512 = vadd.f32 %v4318, %v4473
        %v4513 = vadd.f32 %v4319, %v4476
        %v4514 = vadd.f32 %v4320, %v4479
        %v4515 = vadd.f32 %v4321, %v4482
        %v4516 = vld [vmem:[%s4127 + $0x2] sm:$0xff]
        %v4517 = vld [vmem:[%s4127 + $0xa] sm:$0xff]
        %v4518 = vld [vmem:[%s4127 + $0x1a] sm:$0xff]
        %v4519 = vld [vmem:[%s4127 + $0x22] sm:$0xff]
        %v4520 = vld [vmem:[%s4127 + $0x32] sm:$0xff]
        %v4521 = vld [vmem:[%s4127 + $0x3a] sm:$0xff]
        %v4522 = vld [vmem:[%s4127 + $0x4a] sm:$0xff]
        %v4523 = vld [vmem:[%s4127 + $0x52] sm:$0xff]
        %v4524 = vld [vmem:[%s4127 + $0x62] sm:$0xff]
        %v4525 = vld [vmem:[%s4127 + $0x6a] sm:$0xff]
        %v4526 = vld [vmem:[%s4127 + $0x7a] sm:$0xff]
        %v4527 = vld [vmem:[%s4127 + $0x82] sm:$0xff]
        %v4528 = vld [vmem:[%s4127 + $0x92] sm:$0xff]
        %v4529 = vld [vmem:[%s4127 + $0x9a] sm:$0xff]
        %v4530 = vld [vmem:[%s4127 + $0xaa] sm:$0xff]
        %v4531 = vld [vmem:[%s4127 + $0xb2] sm:$0xff]
        %v4532 = vld [vmem:[%s4127 + $0xc2] sm:$0xff]
        %v4533 = vld [vmem:[%s4127 + $0xca] sm:$0xff]
        %v4534 = vld [vmem:[%s4127 + $0xda] sm:$0xff]
        %v4535 = vld [vmem:[%s4127 + $0xe2] sm:$0xff]
        %v4536 = vld [vmem:[%s4127 + $0xf2] sm:$0xff]
        %v4537 = vld [vmem:[%s4127 + $0xfa] sm:$0xff]
        %v4538 = vld [vmem:[%s4127 + $0x10a] sm:$0xff]
        %v4539 = vld [vmem:[%s4127 + $0x112] sm:$0xff]
        %v4540 = vld [vmem:[%s4127 + $0x122] sm:$0xff]
        %v4541 = vld [vmem:[%s4127 + $0x12a] sm:$0xff]
        %v4542 = vld [vmem:[%s4127 + $0x13a] sm:$0xff]
        %v4543 = vld [vmem:[%s4127 + $0x142] sm:$0xff]
        %v4544 = vld [vmem:[%s4127 + $0x152] sm:$0xff]
        %v4545 = vld [vmem:[%s4127 + $0x15a] sm:$0xff]
        %v4546 = vld [vmem:[%s4127 + $0x16a] sm:$0xff]
        %v4547 = vld [vmem:[%s4127 + $0x172] sm:$0xff]
        %s4548 = scalar_lea.vmem [#allocation9], 1024
        %v4549 = vld [vmem:[%s4548] sm:$0xff]
        %v4550 = vld [vmem:[%s4548 + $0x8] sm:$0xff]
        %v4551 = vld [vmem:[%s4548 + $0x10] sm:$0xff]
        %v4552 = vld [vmem:[%s4548 + $0x18] sm:$0xff]
        %v4553 = vld [vmem:[%s4548 + $0x20] sm:$0xff]
        %v4554 = vld [vmem:[%s4548 + $0x28] sm:$0xff]
        %v4555 = vld [vmem:[%s4548 + $0x30] sm:$0xff]
        %v4556 = vld [vmem:[%s4548 + $0x38] sm:$0xff]
        %v4557 = vld [vmem:[%s4548 + $0x40] sm:$0xff]
        %v4558 = vld [vmem:[%s4548 + $0x48] sm:$0xff]
        %v4559 = vld [vmem:[%s4548 + $0x50] sm:$0xff]
        %v4560 = vld [vmem:[%s4548 + $0x58] sm:$0xff]
        %v4561 = vld [vmem:[%s4548 + $0x60] sm:$0xff]
        %v4562 = vld [vmem:[%s4548 + $0x68] sm:$0xff]
        %v4563 = vld [vmem:[%s4548 + $0x70] sm:$0xff]
        %v4564 = vld [vmem:[%s4548 + $0x78] sm:$0xff]
        %4565 = vmatpush.msra.mxu0 %v4564
        %4566 = vmatpush.msra.mxu0 %v4563
        %4567 = vmatpush.msra.mxu0 %v4562
        %4568 = vmatpush.msra.mxu0 %v4561
        %4569 = vmatpush.msra.mxu0 %v4560
        %4570 = vmatpush.msra.mxu0 %v4559
        %4571 = vmatpush.msra.mxu0 %v4558
        %4572 = vmatpush.msra.mxu0 %v4557
        %4573 = vmatpush.msra.mxu0 %v4556
        %4574 = vmatpush.msra.mxu0 %v4555
        %4575 = vmatpush.msra.mxu0 %v4554
        %4576 = vmatpush.msra.mxu0 %v4553
        %4577 = vmatpush.msra.mxu0 %v4552
        %4578 = vmatpush.msra.mxu0 %v4551
        %4579 = vmatpush.msra.mxu0 %v4550
        %4580 = vmatpush.msra.mxu0 %v4549
        %4581 = vmatmul.f32.gmra.mxu0 %v4516
        %v4582 = vpop.f32.mrf.mxu0
        %v4583 = vadd.f32 0.0, %v4582
        %4584 = vmatmul.f32.gmra.mxu0 %v4517
        %v4585 = vpop.f32.mrf.mxu0
        %v4586 = vadd.f32 0.0, %v4585
        %4587 = vmatmul.f32.gmra.mxu0 %v4518
        %v4588 = vpop.f32.mrf.mxu0
        %v4589 = vadd.f32 0.0, %v4588
        %4590 = vmatmul.f32.gmra.mxu0 %v4519
        %v4591 = vpop.f32.mrf.mxu0
        %v4592 = vadd.f32 0.0, %v4591
        %4593 = vmatmul.f32.gmra.mxu0 %v4520
        %v4594 = vpop.f32.mrf.mxu0
        %v4595 = vadd.f32 0.0, %v4594
        %4596 = vmatmul.f32.gmra.mxu0 %v4521
        %v4597 = vpop.f32.mrf.mxu0
        %v4598 = vadd.f32 0.0, %v4597
        %4599 = vmatmul.f32.gmra.mxu0 %v4522
        %v4600 = vpop.f32.mrf.mxu0
        %v4601 = vadd.f32 0.0, %v4600
        %4602 = vmatmul.f32.gmra.mxu0 %v4523
        %v4603 = vpop.f32.mrf.mxu0
        %v4604 = vadd.f32 0.0, %v4603
        %4605 = vmatmul.f32.gmra.mxu0 %v4524
        %v4606 = vpop.f32.mrf.mxu0
        %v4607 = vadd.f32 0.0, %v4606
        %4608 = vmatmul.f32.gmra.mxu0 %v4525
        %v4609 = vpop.f32.mrf.mxu0
        %v4610 = vadd.f32 0.0, %v4609
        %4611 = vmatmul.f32.gmra.mxu0 %v4526
        %v4612 = vpop.f32.mrf.mxu0
        %v4613 = vadd.f32 0.0, %v4612
        %4614 = vmatmul.f32.gmra.mxu0 %v4527
        %v4615 = vpop.f32.mrf.mxu0
        %v4616 = vadd.f32 0.0, %v4615
        %4617 = vmatmul.f32.gmra.mxu0 %v4528
        %v4618 = vpop.f32.mrf.mxu0
        %v4619 = vadd.f32 0.0, %v4618
        %4620 = vmatmul.f32.gmra.mxu0 %v4529
        %v4621 = vpop.f32.mrf.mxu0
        %v4622 = vadd.f32 0.0, %v4621
        %4623 = vmatmul.f32.gmra.mxu0 %v4530
        %v4624 = vpop.f32.mrf.mxu0
        %v4625 = vadd.f32 0.0, %v4624
        %4626 = vmatmul.f32.gmra.mxu0 %v4531
        %v4627 = vpop.f32.mrf.mxu0
        %v4628 = vadd.f32 0.0, %v4627
        %4629 = vmatmul.f32.gmra.mxu0 %v4532
        %v4630 = vpop.f32.mrf.mxu0
        %v4631 = vadd.f32 0.0, %v4630
        %4632 = vmatmul.f32.gmra.mxu0 %v4533
        %v4633 = vpop.f32.mrf.mxu0
        %v4634 = vadd.f32 0.0, %v4633
        %4635 = vmatmul.f32.gmra.mxu0 %v4534
        %v4636 = vpop.f32.mrf.mxu0
        %v4637 = vadd.f32 0.0, %v4636
        %4638 = vmatmul.f32.gmra.mxu0 %v4535
        %v4639 = vpop.f32.mrf.mxu0
        %v4640 = vadd.f32 0.0, %v4639
        %4641 = vmatmul.f32.gmra.mxu0 %v4536
        %v4642 = vpop.f32.mrf.mxu0
        %v4643 = vadd.f32 0.0, %v4642
        %4644 = vmatmul.f32.gmra.mxu0 %v4537
        %v4645 = vpop.f32.mrf.mxu0
        %v4646 = vadd.f32 0.0, %v4645
        %4647 = vmatmul.f32.gmra.mxu0 %v4538
        %v4648 = vpop.f32.mrf.mxu0
        %v4649 = vadd.f32 0.0, %v4648
        %4650 = vmatmul.f32.gmra.mxu0 %v4539
        %v4651 = vpop.f32.mrf.mxu0
        %v4652 = vadd.f32 0.0, %v4651
        %4653 = vmatmul.f32.gmra.mxu0 %v4540
        %v4654 = vpop.f32.mrf.mxu0
        %v4655 = vadd.f32 0.0, %v4654
        %4656 = vmatmul.f32.gmra.mxu0 %v4541
        %v4657 = vpop.f32.mrf.mxu0
        %v4658 = vadd.f32 0.0, %v4657
        %4659 = vmatmul.f32.gmra.mxu0 %v4542
        %v4660 = vpop.f32.mrf.mxu0
        %v4661 = vadd.f32 0.0, %v4660
        %4662 = vmatmul.f32.gmra.mxu0 %v4543
        %v4663 = vpop.f32.mrf.mxu0
        %v4664 = vadd.f32 0.0, %v4663
        %4665 = vmatmul.f32.gmra.mxu0 %v4544
        %v4666 = vpop.f32.mrf.mxu0
        %v4667 = vadd.f32 0.0, %v4666
        %4668 = vmatmul.f32.gmra.mxu0 %v4545
        %v4669 = vpop.f32.mrf.mxu0
        %v4670 = vadd.f32 0.0, %v4669
        %4671 = vmatmul.f32.gmra.mxu0 %v4546
        %v4672 = vpop.f32.mrf.mxu0
        %v4673 = vadd.f32 0.0, %v4672
        %4674 = vmatmul.f32.gmra.mxu0 %v4547
        %v4675 = vpop.f32.mrf.mxu0
        %v4676 = vadd.f32 0.0, %v4675
        %4677 = vdwg.mxu0
        %v4678 = vadd.f32 %v4484, %v4583
        %v4679 = vadd.f32 %v4485, %v4586
        %v4680 = vadd.f32 %v4486, %v4589
        %v4681 = vadd.f32 %v4487, %v4592
        %v4682 = vadd.f32 %v4488, %v4595
        %v4683 = vadd.f32 %v4489, %v4598
        %v4684 = vadd.f32 %v4490, %v4601
        %v4685 = vadd.f32 %v4491, %v4604
        %v4686 = vadd.f32 %v4492, %v4607
        %v4687 = vadd.f32 %v4493, %v4610
        %v4688 = vadd.f32 %v4494, %v4613
        %v4689 = vadd.f32 %v4495, %v4616
        %v4690 = vadd.f32 %v4496, %v4619
        %v4691 = vadd.f32 %v4497, %v4622
        %v4692 = vadd.f32 %v4498, %v4625
        %v4693 = vadd.f32 %v4499, %v4628
        %v4694 = vadd.f32 %v4500, %v4631
        %v4695 = vadd.f32 %v4501, %v4634
        %v4696 = vadd.f32 %v4502, %v4637
        %v4697 = vadd.f32 %v4503, %v4640
        %v4698 = vadd.f32 %v4504, %v4643
        %v4699 = vadd.f32 %v4505, %v4646
        %v4700 = vadd.f32 %v4506, %v4649
        %v4701 = vadd.f32 %v4507, %v4652
        %v4702 = vadd.f32 %v4508, %v4655
        %v4703 = vadd.f32 %v4509, %v4658
        %v4704 = vadd.f32 %v4510, %v4661
        %v4705 = vadd.f32 %v4511, %v4664
        %v4706 = vadd.f32 %v4512, %v4667
        %v4707 = vadd.f32 %v4513, %v4670
        %v4708 = vadd.f32 %v4514, %v4673
        %v4709 = vadd.f32 %v4515, %v4676
        %v4710 = vld [vmem:[%s4] sm:$0x1]
        %v4712 = vperm.slane %v4710, 0
        %v4714 = vadd.f32 %v4678, %v4712
        %v4715 = vadd.f32 %v4679, %v4712
        %v4716 = vadd.f32 %v4680, %v4712
        %v4717 = vadd.f32 %v4681, %v4712
        %v4718 = vadd.f32 %v4682, %v4712
        %v4719 = vadd.f32 %v4683, %v4712
        %v4720 = vadd.f32 %v4684, %v4712
        %v4721 = vadd.f32 %v4685, %v4712
        %v4722 = vadd.f32 %v4686, %v4712
        %v4723 = vadd.f32 %v4687, %v4712
        %v4724 = vadd.f32 %v4688, %v4712
        %v4725 = vadd.f32 %v4689, %v4712
        %v4726 = vadd.f32 %v4690, %v4712
        %v4727 = vadd.f32 %v4691, %v4712
        %v4728 = vadd.f32 %v4692, %v4712
        %v4729 = vadd.f32 %v4693, %v4712
        %v4730 = vadd.f32 %v4694, %v4712
        %v4731 = vadd.f32 %v4695, %v4712
        %v4732 = vadd.f32 %v4696, %v4712
        %v4733 = vadd.f32 %v4697, %v4712
        %v4734 = vadd.f32 %v4698, %v4712
        %v4735 = vadd.f32 %v4699, %v4712
        %v4736 = vadd.f32 %v4700, %v4712
        %v4737 = vadd.f32 %v4701, %v4712
        %v4738 = vadd.f32 %v4702, %v4712
        %v4739 = vadd.f32 %v4703, %v4712
        %v4740 = vadd.f32 %v4704, %v4712
        %v4741 = vadd.f32 %v4705, %v4712
        %v4742 = vadd.f32 %v4706, %v4712
        %v4743 = vadd.f32 %v4707, %v4712
        %v4744 = vadd.f32 %v4708, %v4712
        %v4745 = vadd.f32 %v4709, %v4712
        %v4746 = vmax.f32 %v4714, 0.0
        %v4747 = vmax.f32 %v4715, 0.0
        %v4748 = vmax.f32 %v4716, 0.0
        %v4749 = vmax.f32 %v4717, 0.0
        %v4750 = vmax.f32 %v4718, 0.0
        %v4751 = vmax.f32 %v4719, 0.0
        %v4752 = vmax.f32 %v4720, 0.0
        %v4753 = vmax.f32 %v4721, 0.0
        %v4754 = vmax.f32 %v4722, 0.0
        %v4755 = vmax.f32 %v4723, 0.0
        %v4756 = vmax.f32 %v4724, 0.0
        %v4757 = vmax.f32 %v4725, 0.0
        %v4758 = vmax.f32 %v4726, 0.0
        %v4759 = vmax.f32 %v4727, 0.0
        %v4760 = vmax.f32 %v4728, 0.0
        %v4761 = vmax.f32 %v4729, 0.0
        %v4762 = vmax.f32 %v4730, 0.0
        %v4763 = vmax.f32 %v4731, 0.0
        %v4764 = vmax.f32 %v4732, 0.0
        %v4765 = vmax.f32 %v4733, 0.0
        %v4766 = vmax.f32 %v4734, 0.0
        %v4767 = vmax.f32 %v4735, 0.0
        %v4768 = vmax.f32 %v4736, 0.0
        %v4769 = vmax.f32 %v4737, 0.0
        %v4770 = vmax.f32 %v4738, 0.0
        %v4771 = vmax.f32 %v4739, 0.0
        %v4772 = vmax.f32 %v4740, 0.0
        %v4773 = vmax.f32 %v4741, 0.0
        %v4774 = vmax.f32 %v4742, 0.0
        %v4775 = vmax.f32 %v4743, 0.0
        %v4776 = vmax.f32 %v4744, 0.0
        %v4777 = vmax.f32 %v4745, 0.0
        %4778 = vst [vmem:[%s277] sm:$0xff] %v4746
        %4779 = vst [vmem:[%s277 + $0x8] sm:$0xff] %v4747
        %4780 = vst [vmem:[%s277 + $0x10] sm:$0xff] %v4748
        %4781 = vst [vmem:[%s277 + $0x18] sm:$0xff] %v4749
        %4782 = vst [vmem:[%s277 + $0x20] sm:$0xff] %v4750
        %4783 = vst [vmem:[%s277 + $0x28] sm:$0xff] %v4751
        %4784 = vst [vmem:[%s277 + $0x30] sm:$0xff] %v4752
        %4785 = vst [vmem:[%s277 + $0x38] sm:$0xff] %v4753
        %4786 = vst [vmem:[%s277 + $0x40] sm:$0xff] %v4754
        %4787 = vst [vmem:[%s277 + $0x48] sm:$0xff] %v4755
        %4788 = vst [vmem:[%s277 + $0x50] sm:$0xff] %v4756
        %4789 = vst [vmem:[%s277 + $0x58] sm:$0xff] %v4757
        %4790 = vst [vmem:[%s277 + $0x60] sm:$0xff] %v4758
        %4791 = vst [vmem:[%s277 + $0x68] sm:$0xff] %v4759
        %4792 = vst [vmem:[%s277 + $0x70] sm:$0xff] %v4760
        %4793 = vst [vmem:[%s277 + $0x78] sm:$0xff] %v4761
        %4794 = vst [vmem:[%s277 + $0x80] sm:$0xff] %v4762
        %4795 = vst [vmem:[%s277 + $0x88] sm:$0xff] %v4763
        %4796 = vst [vmem:[%s277 + $0x90] sm:$0xff] %v4764
        %4797 = vst [vmem:[%s277 + $0x98] sm:$0xff] %v4765
        %4798 = vst [vmem:[%s277 + $0xa0] sm:$0xff] %v4766
        %4799 = vst [vmem:[%s277 + $0xa8] sm:$0xff] %v4767
        %4800 = vst [vmem:[%s277 + $0xb0] sm:$0xff] %v4768
        %4801 = vst [vmem:[%s277 + $0xb8] sm:$0xff] %v4769
        %4802 = vst [vmem:[%s277 + $0xc0] sm:$0xff] %v4770
        %4803 = vst [vmem:[%s277 + $0xc8] sm:$0xff] %v4771
        %4804 = vst [vmem:[%s277 + $0xd0] sm:$0xff] %v4772
        %4805 = vst [vmem:[%s277 + $0xd8] sm:$0xff] %v4773
        %4806 = vst [vmem:[%s277 + $0xe0] sm:$0xff] %v4774
        %4807 = vst [vmem:[%s277 + $0xe8] sm:$0xff] %v4775
        %4808 = vst [vmem:[%s277 + $0xf0] sm:$0xff] %v4776
        %4809 = vst [vmem:[%s277 + $0xf8] sm:$0xff] %v4777
        %s4810 = sand.u32 %s141, 1
        %s4811 = scalar_lea.sflag [#allocation6], %s4810
        %s4812 = sand.u32 %s141, 1
        %s4813 = smul.addr %s4812, 256
        %s4814 = scalar_lea.vmem [#allocation10], %s4813
        // Predicated region
        $region53: #{tpu_custom_call.1} parent=39 // pred_check
          %p4815 = pneg %p151
        $region54: #{tpu_custom_call.1} parent=39 // pred_check_branch
          %4817 = sbr.rel (%p4815) target = $region56
        $region55: #{tpu_custom_call.1} parent=39 // pred_region
          %4819 = vsyncadd %s4811, 0
          %s4820 = smul.addr %s23, 32
          %s4821 = smul.addr %s4820, 8
          %s4822 = scalar_lea.hbm %s5, %s4821
          %s4823 = sshll.u32 %s4814, 4
          %s4824 = int_to_ptr.vmem [resolvable:$true] %s4823
          %s4825 = sshll.u32 %s4822, 4
          %s4826 = int_to_ptr.hbm [resolvable:$true] %s4825
          %4831 = dma.vmem_to_hbm [thread:$0]  %s4824, 4096, %s4826, %s4811, 128, 128, 8
        $region56: #{tpu_custom_call.1} parent=39 // pred_fallthru
          _
      $region40: #{tpu_custom_call.1} parent=5 // pred_fallthru
        _
      %p4832 = scmp.le.s32.totalorder 2, %s18
      // Predicated region
      $region57: #{tpu_custom_call.1} parent=5 // pred_check
        %p4833 = pneg %p4832
      $region58: #{tpu_custom_call.1} parent=5 // pred_check_branch
        %4835 = sbr.rel (%p4833) target = $region60
      $region59: #{tpu_custom_call.1} parent=5 // pred_region
        %s4836 = ssub.s32 %s18, 2
        // Predicated region
        $region61: #{tpu_custom_call.1} parent=59 // pred_check
          %p4837 = pneg %p157
        $region62: #{tpu_custom_call.1} parent=59 // pred_check_branch
          %4839 = sbr.rel (%p4837) target = $region64
        $region63: #{tpu_custom_call.1} parent=59 // pred_region
          %s4840 = sand.u32 %s142, 1
          %s4841 = scalar_lea.sflag [#allocation6], %s4840
          %s4842 = sand.u32 %s142, 1
          %s4843 = smul.addr %s4842, 256
          %s4844 = scalar_lea.vmem [#allocation10], %s4843
          %4846 = dma.done %s4841, 4096
        $region64: #{tpu_custom_call.1} parent=59 // pred_fallthru
          _
      $region60: #{tpu_custom_call.1} parent=5 // pred_fallthru
        _
    $region6: #{tpu_custom_call.1} parent=1 // loop_footer
      %s22 = sadd.s32 1, %s18
    $region7: #{tpu_custom_call.1} parent=1 // loop_footer_branch
      %17 = sbr.rel target = $region3
    $region8: #{tpu_custom_call.1} parent=1 // loop_exit
      _
    %4847 = vsyncpa [#allocation5], 1
    %s4848 = scalar_lea.sflag [#allocation5], 1
    %4849 = vsyncpa %s4848, 1
    %4850 = vsyncpa [#allocation8], 1
    %4851 = vsyncpa [#allocation6], 1
    %s4852 = scalar_lea.sflag [#allocation6], 1
    %4853 = vsyncpa %s4852, 1

</llo_original>
